<compile_context>
chip_gen: v5e
topology: v5e:2x2
jax: 0.10.0
libtpu: 0.0.40
codegen_flags: <defaults>
</compile_context>

<pallas_src>
import jax
import jax.numpy as jnp
from jax.experimental import pallas as pl
from jax.experimental.pallas import tpu as pltpu

NOISE_SIGMA = 0.01
NEG_SLOPE = 0.2
NUM_RESBLOCKS = 6
C_IN = 80
C_HID = 256
LANE = 128


def _leaky(x):
    # LeakyReLU(0.2) == max(x, 0.2*x) for slope < 1.
    return jnp.maximum(x, NEG_SLOPE * x)


def discriminator_kernel(x_ref, noise_ref, w_in_ref, b_in_ref,
                         res_w_ref, res_b_ref, w_out_ref, b_out_ref,
                         o_ref, h_ref, hp_ref):
    """Grid = (num_resblocks,). Blocks seen by the kernel:

    x_ref, noise_ref : (B, T, 128)        f32   (C_IN zero-padded to 128)
    w_in_ref         : (128, C)           bf16  (spectrally normalized, transposed)
    b_in_ref         : (1, C)             f32
    res_w_ref        : (1, 2, 5*C, C)     bf16  (this block's im2col weights)
    res_b_ref        : (1, 2, 1, C)       f32
    w_out_ref        : (1, C)             f32
    b_out_ref        : (1, 1)             f32
    o_ref            : (B, 1, 1)          f32   (written on the last grid step)
    h_ref            : (B, T, C)          f32   persistent activation scratch
    hp_ref           : (B, T+8, C)        bf16  persistent padded conv scratch
    """
    B, T, _ = x_ref.shape
    C = h_ref.shape[-1]
    r = pl.program_id(0)
    last = pl.num_programs(0) - 1

    # ---- input layer (only on the first grid step) --------------------------
    @pl.when(r == 0)
    def _input_layer():
        # zero the conv halo rows once; they stay zero for the whole kernel.
        hp_ref[...] = jnp.zeros_like(hp_ref)
        x = x_ref[...] + NOISE_SIGMA * noise_ref[...]            # (B, T, 128) f32
        xb = x.astype(jnp.bfloat16).reshape(B * T, -1)           # fold batch into M
        h0 = jnp.dot(xb, w_in_ref[...],
                     preferred_element_type=jnp.float32)         # (B*T, C) f32
        h0 = _leaky(h0 + b_in_ref[...])
        h_ref[...] = h0.reshape(B, T, C)

    # ---- residual block r ----------------------------------------------------
    def conv5(h, c):
        # Conv1d(C->C, k=5, stride=1, pad=2) as ONE im2col matmul (K = 5*C).
        hp_ref[:, 2:2 + T, :] = h.astype(jnp.bfloat16)           # halo rows stay zero
        slab = jnp.concatenate([hp_ref[:, k:k + T, :] for k in range(5)],
                               axis=-1)                          # (B, T, 5C) bf16
        y = jnp.dot(slab.reshape(B * T, 5 * C), res_w_ref[0, c],
                    preferred_element_type=jnp.float32)          # (B*T, C) f32
        return y.reshape(B, T, C) + res_b_ref[0, c]              # bias (1, C) broadcasts

    h = h_ref[...]                                               # (B, T, C) f32
    y = _leaky(conv5(h, 0))
    y = conv5(y, 1)
    h_ref[...] = h + y

    # ---- output layer (only on the last grid step) ---------------------------
    @pl.when(r == last)
    def _output_layer():
        hf = h_ref[...]                                          # (B, T, C) f32
        # Conv1d(C -> 1, k=1) is a lane reduction against the (1, C) row weight.
        o = _leaky(jnp.sum(hf * w_out_ref[...], axis=-1, keepdims=True)
                   + b_out_ref[...])                             # (B, T, 1)
        o_ref[...] = jnp.mean(o, axis=1, keepdims=True)          # global avg pool -> (B,1,1)


def discriminator_forward(x_ncl, noise_ncl, params):
    """x_ncl, noise_ncl: (B, C_IN, T) in the PyTorch NCL convention."""
    x = jnp.transpose(x_ncl, (0, 2, 1)).astype(jnp.float32)      # (B, T, C_IN)
    noise = jnp.transpose(noise_ncl, (0, 2, 1)).astype(jnp.float32)
    B, T, cin = x.shape
    C = params["w_in"].shape[1]
    R = params["res_w"].shape[0]

    # pad C_IN (80) -> 128 lanes with zeros (result unchanged: padded weight rows are 0).
    pad = (-cin) % LANE
    cinp = cin + pad
    x = jnp.pad(x, ((0, 0), (0, 0), (0, pad)))
    noise = jnp.pad(noise, ((0, 0), (0, 0), (0, pad)))
    w_in = jnp.pad(params["w_in"], ((0, pad), (0, 0))).astype(jnp.bfloat16)   # (128, C)

    # im2col weight layout: (R, 2, 5, Cin, Cout) -> (R, 2, 5*Cin, Cout), bf16.
    res_w = params["res_w"].reshape(R, 2, 5 * C, C).astype(jnp.bfloat16)
    res_b = params["res_b"].astype(jnp.float32)                               # (R, 2, 1, C)
    b_in = params["b_in"].astype(jnp.float32)
    w_out = params["w_out"].astype(jnp.float32)
    b_out = params["b_out"].astype(jnp.float32)

    grid_spec = pltpu.PrefetchScalarGridSpec(
        num_scalar_prefetch=0,
        grid=(R,),
        in_specs=[
            pl.BlockSpec((B, T, cinp), lambda r: (0, 0, 0)),        # x
            pl.BlockSpec((B, T, cinp), lambda r: (0, 0, 0)),        # noise
            pl.BlockSpec((cinp, C), lambda r: (0, 0)),              # w_in
            pl.BlockSpec((1, C), lambda r: (0, 0)),                 # b_in
            pl.BlockSpec((1, 2, 5 * C, C), lambda r: (r, 0, 0, 0)),  # res_w (pipelined)
            pl.BlockSpec((1, 2, 1, C), lambda r: (r, 0, 0, 0)),      # res_b (pipelined)
            pl.BlockSpec((1, C), lambda r: (0, 0)),                 # w_out
            pl.BlockSpec((1, 1), lambda r: (0, 0)),                 # b_out
        ],
        out_specs=pl.BlockSpec((B, 1, 1), lambda r: (0, 0, 0)),
        scratch_shapes=[
            pltpu.VMEM((B, T, C), jnp.float32),        # persistent activations h
            pltpu.VMEM((B, T + 8, C), jnp.bfloat16),   # pre-zeroed padded conv buffer
        ],
    )

    out = pl.pallas_call(
        discriminator_kernel,
        out_shape=jax.ShapeDtypeStruct((B, 1, 1), jnp.float32),
        grid_spec=grid_spec,
        compiler_params=pltpu.CompilerParams(
            dimension_semantics=("arbitrary",),        # sequential dependency across resblocks
            vmem_limit_bytes=32 * 1024 * 1024,         # fits v7x (64 MiB physical VMEM)
        ),
    )(x, noise, w_in, b_in, res_w, res_b, w_out, b_out)
    return out


def _spectral_normalize(w_pt):
    # nn.utils.spectral_norm normalizes W (reshaped to (out, -1)) by its largest
    # singular value (power iteration in PyTorch). Applied here exactly, once, as
    # deterministic parameter preprocessing (glue).
    cout = w_pt.shape[0]
    sigma = jnp.linalg.svd(w_pt.reshape(cout, -1), compute_uv=False)[0]
    return w_pt / sigma


def init_params(key, num_resblocks=NUM_RESBLOCKS, cin=C_IN, c=C_HID):
    def conv_w(k, cout, cin_, ksz, scale=0.05):
        w = jax.random.normal(k, (cout, cin_, ksz), jnp.float32) * scale
        return _spectral_normalize(w)                  # PyTorch layout (Cout, Cin, K)

    # input layer: Conv1d(80, 256, k=1)
    w_in_pt = conv_w(jax.random.fold_in(key, 0), c, cin, 1)
    w_in = jnp.transpose(w_in_pt[:, :, 0])             # (cin, c)
    b_in = jax.random.normal(jax.random.fold_in(key, 1), (1, c), jnp.float32) * 0.01

    # residual blocks: 2 x Conv1d(256, 256, k=5, pad=2) each
    res_w, res_b = [], []
    for r in range(num_resblocks):
        ws, bs = [], []
        for cidx in range(2):
            kw = jax.random.fold_in(key, 100 + 10 * r + cidx)
            kb = jax.random.fold_in(key, 200 + 10 * r + cidx)
            w_pt = conv_w(kw, c, c, 5)                 # (c, c, 5)
            ws.append(jnp.transpose(w_pt, (2, 1, 0)))  # (5, cin, cout)
            bs.append(jax.random.normal(kb, (1, c), jnp.float32) * 0.01)
        res_w.append(jnp.stack(ws))                    # (2, 5, c, c)
        res_b.append(jnp.stack(bs))                    # (2, 1, c)
    res_w = jnp.stack(res_w)                           # (R, 2, 5, c, c)
    res_b = jnp.stack(res_b)                           # (R, 2, 1, c)

    # output layer: Conv1d(256, 1, k=1)
    w_out_pt = conv_w(jax.random.fold_in(key, 300), 1, c, 1)
    w_out = w_out_pt[:, :, 0]                          # (1, c) row vector
    b_out = jax.random.normal(jax.random.fold_in(key, 301), (1, 1), jnp.float32) * 0.01

    return {"w_in": w_in, "b_in": b_in, "res_w": res_w, "res_b": res_b,
            "w_out": w_out, "b_out": b_out}


if __name__ == "__main__":
    key = jax.random.PRNGKey(0)
    B, T = 2, 16                                        # small batch / sequence
    x = jax.random.normal(jax.random.fold_in(key, 1), (B, C_IN, T), jnp.float32)
    # noise for `x + randn_like(x) * 0.01` is drawn deterministically here (glue);
    # the scaled add itself happens inside the kernel.
    # TODO(synk): could be generated in-kernel with pltpu.prng_random_bits to skip this DMA.
    noise = jax.random.normal(jax.random.fold_in(key, 2), (B, C_IN, T), jnp.float32)
    params = init_params(jax.random.fold_in(key, 3))

    out = discriminator_forward(x, noise, params)
    out = jax.block_until_ready(out)
    assert out.shape == (B, 1, 1) and out.dtype == jnp.float32
    print("KERNEL_OK")
</pallas_src>

<mosaic_0001>
module attributes {stable_mosaic.version = 11 : i64} {
  func.func @discriminator_kernel(%arg0: i32, %arg1: memref<2x16x128xf32, #tpu.memory_space<vmem>>, %arg2: memref<2x16x128xf32, #tpu.memory_space<vmem>>, %arg3: memref<128x256xbf16, #tpu.memory_space<vmem>>, %arg4: memref<1x256xf32, #tpu.memory_space<vmem>>, %arg5: memref<1x2x1280x256xbf16, #tpu.memory_space<vmem>>, %arg6: memref<1x2x1x256xf32, #tpu.memory_space<vmem>>, %arg7: memref<1x256xf32, #tpu.memory_space<vmem>>, %arg8: memref<1x1xf32, #tpu.memory_space<vmem>>, %arg9: memref<2x1x1xf32, #tpu.memory_space<vmem>>, %arg10: memref<2x16x256xf32, #tpu.memory_space<vmem>>, %arg11: memref<2x24x256xbf16, #tpu.memory_space<vmem>>) attributes {dimension_semantics = [#tpu.dimension_semantics<arbitrary>], iteration_bounds = array<i64: 6>, scalar_prefetch = 0 : i64, scratch_operands = 2 : i64, tpu.core_type = #tpu.core_type<tc>, window_params = [{pipeline_mode = #tpu.pipeline_mode<synchronous>, transform_indices = @transform_0, window_bounds = array<i64: 2, 16, 128>}, {pipeline_mode = #tpu.pipeline_mode<synchronous>, transform_indices = @transform_1, window_bounds = array<i64: 2, 16, 128>}, {pipeline_mode = #tpu.pipeline_mode<synchronous>, transform_indices = @transform_2, window_bounds = array<i64: 128, 256>}, {pipeline_mode = #tpu.pipeline_mode<synchronous>, transform_indices = @transform_3, window_bounds = array<i64: 1, 256>}, {transform_indices = @transform_4, window_bounds = array<i64: 1, 2, 1280, 256>}, {transform_indices = @transform_5, window_bounds = array<i64: 1, 2, 1, 256>}, {pipeline_mode = #tpu.pipeline_mode<synchronous>, transform_indices = @transform_6, window_bounds = array<i64: 1, 256>}, {pipeline_mode = #tpu.pipeline_mode<synchronous>, transform_indices = @transform_7, window_bounds = array<i64: 1, 1>}, {pipeline_mode = #tpu.pipeline_mode<synchronous>, transform_indices = @transform_8, window_bounds = array<i64: 2, 1, 1>}]} {
    %c0_i32 = arith.constant 0 : i32
    %0 = arith.cmpi eq, %arg0, %c0_i32 : i32
    %1 = arith.extui %0 : i1 to i32
    %c0_i32_0 = arith.constant 0 : i32
    %2 = arith.cmpi ne, %1, %c0_i32_0 : i32
    scf.if %2 {
      %cst_57 = arith.constant 0.000000e+00 : bf16
      %48 = vector.broadcast %cst_57 : bf16 to vector<2x24x256xbf16>
      %c0_58 = arith.constant 0 : index
      %c0_59 = arith.constant 0 : index
      %c0_60 = arith.constant 0 : index
      %49 = vector.load %arg11[%c0_58, %c0_59, %c0_60] : memref<2x24x256xbf16, #tpu.memory_space<vmem>>, vector<2x24x256xbf16>
      tpu.vector_store %arg11[%c0_58, %c0_59, %c0_60], %48 {strides = array<i32>} : memref<2x24x256xbf16, #tpu.memory_space<vmem>>, vector<2x24x256xbf16>,
      %c0_61 = arith.constant 0 : index
      %c0_62 = arith.constant 0 : index
      %c0_63 = arith.constant 0 : index
      %50 = vector.load %arg1[%c0_61, %c0_62, %c0_63] : memref<2x16x128xf32, #tpu.memory_space<vmem>>, vector<2x16x128xf32>
      %c0_64 = arith.constant 0 : index
      %c0_65 = arith.constant 0 : index
      %c0_66 = arith.constant 0 : index
      %51 = vector.load %arg2[%c0_64, %c0_65, %c0_66] : memref<2x16x128xf32, #tpu.memory_space<vmem>>, vector<2x16x128xf32>
      %cst_67 = arith.constant 0.00999999977 : f32
      %52 = vector.broadcast %cst_67 : f32 to vector<2x16x128xf32>
      %53 = arith.mulf %52, %51 : vector<2x16x128xf32>
      %54 = arith.addf %50, %53 : vector<2x16x128xf32>
      %55 = arith.truncf %54 : vector<2x16x128xf32> to vector<2x16x128xbf16>
      %56 = vector.shape_cast %55 : vector<2x16x128xbf16> to vector<32x128xbf16>
      %c0_68 = arith.constant 0 : index
      %c0_69 = arith.constant 0 : index
      %57 = vector.load %arg3[%c0_68, %c0_69] : memref<128x256xbf16, #tpu.memory_space<vmem>>, vector<128x256xbf16>
      %cst_70 = arith.constant dense<0.000000e+00> : vector<32x256xf32>
      %58 = tpu.matmul %56, %57, %cst_70 {dimension_numbers = #tpu.dot_dimension_numbers<[1], [0], [0], [1], [0, 0, 1, 1], [], []>} : vector<32x128xbf16>, vector<128x256xbf16>, vector<32x256xf32> -> vector<32x256xf32>
      %c0_71 = arith.constant 0 : index
      %c0_72 = arith.constant 0 : index
      %59 = vector.load %arg4[%c0_71, %c0_72] : memref<1x256xf32, #tpu.memory_space<vmem>>, vector<1x256xf32>
      %60 = vector.broadcast %59 : vector<1x256xf32> to vector<32x256xf32>
      %61 = arith.addf %58, %60 : vector<32x256xf32>
      %cst_73 = arith.constant 2.000000e-01 : f32
      %62 = vector.broadcast %cst_73 : f32 to vector<32x256xf32>
      %63 = arith.mulf %62, %61 : vector<32x256xf32>
      %64 = arith.maximumf %61, %63 : vector<32x256xf32>
      %65 = vector.shape_cast %64 : vector<32x256xf32> to vector<2x16x256xf32>
      %c0_74 = arith.constant 0 : index
      %c0_75 = arith.constant 0 : index
      %c0_76 = arith.constant 0 : index
      %66 = vector.load %arg10[%c0_74, %c0_75, %c0_76] : memref<2x16x256xf32, #tpu.memory_space<vmem>>, vector<2x16x256xf32>
      tpu.vector_store %arg10[%c0_74, %c0_75, %c0_76], %65 {strides = array<i32>} : memref<2x16x256xf32, #tpu.memory_space<vmem>>, vector<2x16x256xf32>,
    } else {
    }
    %c0 = arith.constant 0 : index
    %c0_1 = arith.constant 0 : index
    %c0_2 = arith.constant 0 : index
    %3 = vector.load %arg10[%c0, %c0_1, %c0_2] : memref<2x16x256xf32, #tpu.memory_space<vmem>>, vector<2x16x256xf32>
    %4 = arith.truncf %3 : vector<2x16x256xf32> to vector<2x16x256xbf16>
    %c0_3 = arith.constant 0 : index
    %c2 = arith.constant 2 : index
    %c0_4 = arith.constant 0 : index
    %5 = vector.load %arg11[%c0_3, %c2, %c0_4] : memref<2x24x256xbf16, #tpu.memory_space<vmem>>, vector<2x16x256xbf16>
    tpu.vector_store %arg11[%c0_3, %c2, %c0_4], %4 {strides = array<i32>} : memref<2x24x256xbf16, #tpu.memory_space<vmem>>, vector<2x16x256xbf16>,
    %c0_5 = arith.constant 0 : index
    %c0_6 = arith.constant 0 : index
    %c0_7 = arith.constant 0 : index
    %6 = vector.load %arg11[%c0_5, %c0_6, %c0_7] : memref<2x24x256xbf16, #tpu.memory_space<vmem>>, vector<2x16x256xbf16>
    %c0_8 = arith.constant 0 : index
    %c1 = arith.constant 1 : index
    %c0_9 = arith.constant 0 : index
    %7 = vector.load %arg11[%c0_8, %c1, %c0_9] : memref<2x24x256xbf16, #tpu.memory_space<vmem>>, vector<2x16x256xbf16>
    %c0_10 = arith.constant 0 : index
    %c2_11 = arith.constant 2 : index
    %c0_12 = arith.constant 0 : index
    %8 = vector.load %arg11[%c0_10, %c2_11, %c0_12] : memref<2x24x256xbf16, #tpu.memory_space<vmem>>, vector<2x16x256xbf16>
    %c0_13 = arith.constant 0 : index
    %c3 = arith.constant 3 : index
    %c0_14 = arith.constant 0 : index
    %9 = vector.load %arg11[%c0_13, %c3, %c0_14] : memref<2x24x256xbf16, #tpu.memory_space<vmem>>, vector<2x16x256xbf16>
    %c0_15 = arith.constant 0 : index
    %c4 = arith.constant 4 : index
    %c0_16 = arith.constant 0 : index
    %10 = vector.load %arg11[%c0_15, %c4, %c0_16] : memref<2x24x256xbf16, #tpu.memory_space<vmem>>, vector<2x16x256xbf16>
    %11 = tpu.concatenate %6, %7, %8, %9, %10 in 2 : vector<2x16x256xbf16>, vector<2x16x256xbf16>, vector<2x16x256xbf16>, vector<2x16x256xbf16>, vector<2x16x256xbf16> -> vector<2x16x1280xbf16>
    %12 = vector.shape_cast %11 : vector<2x16x1280xbf16> to vector<32x1280xbf16>
    %c0_17 = arith.constant 0 : index
    %c0_18 = arith.constant 0 : index
    %c0_19 = arith.constant 0 : index
    %c0_20 = arith.constant 0 : index
    %13 = vector.load %arg5[%c0_17, %c0_18, %c0_19, %c0_20] : memref<1x2x1280x256xbf16, #tpu.memory_space<vmem>>, vector<1x1x1280x256xbf16>
    %14 = vector.shape_cast %13 : vector<1x1x1280x256xbf16> to vector<1280x256xbf16>
    %cst = arith.constant dense<0.000000e+00> : vector<32x256xf32>
    %15 = tpu.matmul %12, %14, %cst {dimension_numbers = #tpu.dot_dimension_numbers<[1], [0], [0], [1], [0, 0, 1, 1], [], []>} : vector<32x1280xbf16>, vector<1280x256xbf16>, vector<32x256xf32> -> vector<32x256xf32>
    %16 = vector.shape_cast %15 : vector<32x256xf32> to vector<2x16x256xf32>
    %c0_21 = arith.constant 0 : index
    %c0_22 = arith.constant 0 : index
    %c0_23 = arith.constant 0 : index
    %c0_24 = arith.constant 0 : index
    %17 = vector.load %arg6[%c0_21, %c0_22, %c0_23, %c0_24] : memref<1x2x1x256xf32, #tpu.memory_space<vmem>>, vector<1x1x1x256xf32>
    %18 = vector.shape_cast %17 : vector<1x1x1x256xf32> to vector<1x256xf32>
    %19 = vector.shape_cast %18 : vector<1x256xf32> to vector<1x1x256xf32>
    %20 = vector.broadcast %19 : vector<1x1x256xf32> to vector<2x16x256xf32>
    %21 = arith.addf %16, %20 : vector<2x16x256xf32>
    %cst_25 = arith.constant 2.000000e-01 : f32
    %22 = vector.broadcast %cst_25 : f32 to vector<2x16x256xf32>
    %23 = arith.mulf %22, %21 : vector<2x16x256xf32>
    %24 = arith.maximumf %21, %23 : vector<2x16x256xf32>
    %25 = arith.truncf %24 : vector<2x16x256xf32> to vector<2x16x256xbf16>
    %c0_26 = arith.constant 0 : index
    %c2_27 = arith.constant 2 : index
    %c0_28 = arith.constant 0 : index
    %26 = vector.load %arg11[%c0_26, %c2_27, %c0_28] : memref<2x24x256xbf16, #tpu.memory_space<vmem>>, vector<2x16x256xbf16>
    tpu.vector_store %arg11[%c0_26, %c2_27, %c0_28], %25 {strides = array<i32>} : memref<2x24x256xbf16, #tpu.memory_space<vmem>>, vector<2x16x256xbf16>,
    %c0_29 = arith.constant 0 : index
    %c0_30 = arith.constant 0 : index
    %c0_31 = arith.constant 0 : index
    %27 = vector.load %arg11[%c0_29, %c0_30, %c0_31] : memref<2x24x256xbf16, #tpu.memory_space<vmem>>, vector<2x16x256xbf16>
    %c0_32 = arith.constant 0 : index
    %c1_33 = arith.constant 1 : index
    %c0_34 = arith.constant 0 : index
    %28 = vector.load %arg11[%c0_32, %c1_33, %c0_34] : memref<2x24x256xbf16, #tpu.memory_space<vmem>>, vector<2x16x256xbf16>
    %c0_35 = arith.constant 0 : index
    %c2_36 = arith.constant 2 : index
    %c0_37 = arith.constant 0 : index
    %29 = vector.load %arg11[%c0_35, %c2_36, %c0_37] : memref<2x24x256xbf16, #tpu.memory_space<vmem>>, vector<2x16x256xbf16>
    %c0_38 = arith.constant 0 : index
    %c3_39 = arith.constant 3 : index
    %c0_40 = arith.constant 0 : index
    %30 = vector.load %arg11[%c0_38, %c3_39, %c0_40] : memref<2x24x256xbf16, #tpu.memory_space<vmem>>, vector<2x16x256xbf16>
    %c0_41 = arith.constant 0 : index
    %c4_42 = arith.constant 4 : index
    %c0_43 = arith.constant 0 : index
    %31 = vector.load %arg11[%c0_41, %c4_42, %c0_43] : memref<2x24x256xbf16, #tpu.memory_space<vmem>>, vector<2x16x256xbf16>
    %32 = tpu.concatenate %27, %28, %29, %30, %31 in 2 : vector<2x16x256xbf16>, vector<2x16x256xbf16>, vector<2x16x256xbf16>, vector<2x16x256xbf16>, vector<2x16x256xbf16> -> vector<2x16x1280xbf16>
    %33 = vector.shape_cast %32 : vector<2x16x1280xbf16> to vector<32x1280xbf16>
    %c0_44 = arith.constant 0 : index
    %c1_45 = arith.constant 1 : index
    %c0_46 = arith.constant 0 : index
    %c0_47 = arith.constant 0 : index
    %34 = vector.load %arg5[%c0_44, %c1_45, %c0_46, %c0_47] : memref<1x2x1280x256xbf16, #tpu.memory_space<vmem>>, vector<1x1x1280x256xbf16>
    %35 = vector.shape_cast %34 : vector<1x1x1280x256xbf16> to vector<1280x256xbf16>
    %cst_48 = arith.constant dense<0.000000e+00> : vector<32x256xf32>
    %36 = tpu.matmul %33, %35, %cst_48 {dimension_numbers = #tpu.dot_dimension_numbers<[1], [0], [0], [1], [0, 0, 1, 1], [], []>} : vector<32x1280xbf16>, vector<1280x256xbf16>, vector<32x256xf32> -> vector<32x256xf32>
    %37 = vector.shape_cast %36 : vector<32x256xf32> to vector<2x16x256xf32>
    %c0_49 = arith.constant 0 : index
    %c1_50 = arith.constant 1 : index
    %c0_51 = arith.constant 0 : index
    %c0_52 = arith.constant 0 : index
    %38 = vector.load %arg6[%c0_49, %c1_50, %c0_51, %c0_52] : memref<1x2x1x256xf32, #tpu.memory_space<vmem>>, vector<1x1x1x256xf32>
    %39 = vector.shape_cast %38 : vector<1x1x1x256xf32> to vector<1x256xf32>
    %40 = vector.shape_cast %39 : vector<1x256xf32> to vector<1x1x256xf32>
    %41 = vector.broadcast %40 : vector<1x1x256xf32> to vector<2x16x256xf32>
    %42 = arith.addf %37, %41 : vector<2x16x256xf32>
    %43 = arith.addf %3, %42 : vector<2x16x256xf32>
    %c0_53 = arith.constant 0 : index
    %c0_54 = arith.constant 0 : index
    %c0_55 = arith.constant 0 : index
    %44 = vector.load %arg10[%c0_53, %c0_54, %c0_55] : memref<2x16x256xf32, #tpu.memory_space<vmem>>, vector<2x16x256xf32>
    tpu.vector_store %arg10[%c0_53, %c0_54, %c0_55], %43 {strides = array<i32>} : memref<2x16x256xf32, #tpu.memory_space<vmem>>, vector<2x16x256xf32>,
    %c5_i32 = arith.constant 5 : i32
    %45 = arith.cmpi eq, %arg0, %c5_i32 : i32
    %46 = arith.extui %45 : i1 to i32
    %c0_i32_56 = arith.constant 0 : i32
    %47 = arith.cmpi ne, %46, %c0_i32_56 : i32
    scf.if %47 {
      %c0_57 = arith.constant 0 : index
      %c0_58 = arith.constant 0 : index
      %c0_59 = arith.constant 0 : index
      %48 = vector.load %arg10[%c0_57, %c0_58, %c0_59] : memref<2x16x256xf32, #tpu.memory_space<vmem>>, vector<2x16x256xf32>
      %c0_60 = arith.constant 0 : index
      %c0_61 = arith.constant 0 : index
      %49 = vector.load %arg7[%c0_60, %c0_61] : memref<1x256xf32, #tpu.memory_space<vmem>>, vector<1x256xf32>
      %50 = vector.shape_cast %49 : vector<1x256xf32> to vector<1x1x256xf32>
      %51 = vector.broadcast %50 : vector<1x1x256xf32> to vector<2x16x256xf32>
      %52 = arith.mulf %48, %51 : vector<2x16x256xf32>
      %cst_62 = arith.constant dense<0.000000e+00> : vector<2x16xf32>
      %53 = vector.multi_reduction <add>, %52, %cst_62 [2] : vector<2x16x256xf32> to vector<2x16xf32>
      %54 = vector.shape_cast %53 : vector<2x16xf32> to vector<2x16x1xf32>
      %c0_63 = arith.constant 0 : index
      %c0_64 = arith.constant 0 : index
      %55 = vector.load %arg8[%c0_63, %c0_64] : memref<1x1xf32, #tpu.memory_space<vmem>>, vector<1x1xf32>
      %56 = vector.shape_cast %55 : vector<1x1xf32> to vector<1x1x1xf32>
      %57 = vector.broadcast %56 : vector<1x1x1xf32> to vector<2x16x1xf32>
      %58 = arith.addf %54, %57 : vector<2x16x1xf32>
      %cst_65 = arith.constant 2.000000e-01 : f32
      %59 = vector.broadcast %cst_65 : f32 to vector<2x16x1xf32>
      %60 = arith.mulf %59, %58 : vector<2x16x1xf32>
      %61 = arith.maximumf %58, %60 : vector<2x16x1xf32>
      %cst_66 = arith.constant dense<0.000000e+00> : vector<2x1xf32>
      %62 = vector.multi_reduction <add>, %61, %cst_66 [1] : vector<2x16x1xf32> to vector<2x1xf32>
      %63 = vector.shape_cast %62 : vector<2x1xf32> to vector<2x1x1xf32>
      %cst_67 = arith.constant 1.600000e+01 : f32
      %64 = vector.broadcast %cst_67 : f32 to vector<2x1x1xf32>
      %65 = arith.divf %63, %64 : vector<2x1x1xf32>
      %c0_68 = arith.constant 0 : index
      %c0_69 = arith.constant 0 : index
      %c0_70 = arith.constant 0 : index
      %66 = vector.load %arg9[%c0_68, %c0_69, %c0_70] : memref<2x1x1xf32, #tpu.memory_space<vmem>>, vector<2x1x1xf32>
      tpu.vector_store %arg9[%c0_68, %c0_69, %c0_70], %65 {strides = array<i32>} : memref<2x1x1xf32, #tpu.memory_space<vmem>>, vector<2x1x1xf32>,
    } else {
    }
    return
  }
  func.func @transform_0(%arg0: i32) -> (i32, i32, i32) {
    %c0_i32 = arith.constant 0 : i32
    %c0_i32_0 = arith.constant 0 : i32
    %c0_i32_1 = arith.constant 0 : i32
    %c0_i32_2 = arith.constant 0 : i32
    return %c0_i32, %c0_i32_0, %c0_i32_1 : i32, i32, i32
  }
  func.func @transform_1(%arg0: i32) -> (i32, i32, i32) {
    %c0_i32 = arith.constant 0 : i32
    %c0_i32_0 = arith.constant 0 : i32
    %c0_i32_1 = arith.constant 0 : i32
    %c0_i32_2 = arith.constant 0 : i32
    return %c0_i32, %c0_i32_0, %c0_i32_1 : i32, i32, i32
  }
  func.func @transform_2(%arg0: i32) -> (i32, i32) {
    %c0_i32 = arith.constant 0 : i32
    %c0_i32_0 = arith.constant 0 : i32
    %c0_i32_1 = arith.constant 0 : i32
    return %c0_i32, %c0_i32_0 : i32, i32
  }
  func.func @transform_3(%arg0: i32) -> (i32, i32) {
    %c0_i32 = arith.constant 0 : i32
    %c0_i32_0 = arith.constant 0 : i32
    %c0_i32_1 = arith.constant 0 : i32
    return %c0_i32, %c0_i32_0 : i32, i32
  }
  func.func @transform_4(%arg0: i32) -> (i32, i32, i32, i32) {
    %c0_i32 = arith.constant 0 : i32
    %c0_i32_0 = arith.constant 0 : i32
    %c0_i32_1 = arith.constant 0 : i32
    %c0_i32_2 = arith.constant 0 : i32
    return %arg0, %c0_i32, %c0_i32_0, %c0_i32_1 : i32, i32, i32, i32
  }
  func.func @transform_5(%arg0: i32) -> (i32, i32, i32, i32) {
    %c0_i32 = arith.constant 0 : i32
    %c0_i32_0 = arith.constant 0 : i32
    %c0_i32_1 = arith.constant 0 : i32
    %c0_i32_2 = arith.constant 0 : i32
    return %arg0, %c0_i32, %c0_i32_0, %c0_i32_1 : i32, i32, i32, i32
  }
  func.func @transform_6(%arg0: i32) -> (i32, i32) {
    %c0_i32 = arith.constant 0 : i32
    %c0_i32_0 = arith.constant 0 : i32
    %c0_i32_1 = arith.constant 0 : i32
    return %c0_i32, %c0_i32_0 : i32, i32
  }
  func.func @transform_7(%arg0: i32) -> (i32, i32) {
    %c0_i32 = arith.constant 0 : i32
    %c0_i32_0 = arith.constant 0 : i32
    %c0_i32_1 = arith.constant 0 : i32
    return %c0_i32, %c0_i32_0 : i32, i32
  }
  func.func @transform_8(%arg0: i32) -> (i32, i32, i32) {
    %c0_i32 = arith.constant 0 : i32
    %c0_i32_0 = arith.constant 0 : i32
    %c0_i32_1 = arith.constant 0 : i32
    %c0_i32_2 = arith.constant 0 : i32
    return %c0_i32, %c0_i32_0, %c0_i32_1 : i32, i32, i32
  }
}

</mosaic_0001>

<llo_original>
// kernel: tpu_custom_call.1
$region0: #{tpu_custom_call.1}
  #allocation0 [shape = 'u32[]', space=smem, size = 0x4, offset = 0x4, fixed_abs, tag = 'smem constant byte address 0x4 - core index']
  #allocation1 [shape = 'u32[72,128]{1,0:T(1,128)}', space=vmem, size = 0x9000, scoped, tag = 'internal scratch']
  #allocation2 [shape = 'f32[2,16,256]{2,1,0:T(8,128)}', space=vmem, size = 0x8000, scoped, tag = 'scratch operand']
  #allocation3 [shape = 'bf16[2,24,256]{2,1,0:T(8,128)(2,1)}', space=vmem, size = 0x6000, scoped, tag = 'scratch operand']
  #allocation4 [shape = 'f32[1,1]{1,0:T(1,128)S(1)}', space=vmem, size = 0x200, scoped, tag = 'scoped memory for tpu_custom_call.1']
  %s0 = inlined_call_operand.hbm [shape: f32[2,16,128], index: 0, kind: input, shape index: {}]
  %s1 = inlined_call_operand.hbm [shape: f32[2,16,128], index: 1, kind: input, shape index: {}]
  %s2 = inlined_call_operand.hbm [shape: bf16[128,256], index: 2, kind: input, shape index: {}]
  %s3 = inlined_call_operand.hbm [shape: f32[1,256], index: 3, kind: input, shape index: {}]
  %s4 = inlined_call_operand.hbm [shape: bf16[6,2,1280,256], index: 4, kind: input, shape index: {}]
  %s5 = inlined_call_operand.hbm [shape: f32[6,2,1,256], index: 5, kind: input, shape index: {}]
  %s6 = inlined_call_operand.hbm [shape: f32[1,256], index: 6, kind: input, shape index: {}]
  %s7 = inlined_call_operand.<no memory space> [shape: f32[1,1], index: 7, kind: input, shape index: {}]
  %s8 = inlined_call_operand.vmem [shape: f32[2,1,1], index: 8, kind: output, shape index: {}]
  %s9 = sld [smem:[#allocation0]]
  $region101: #{tpu_custom_call.1} parent=0
    _
  %s11 = ssub.s32 1, %s9
  %s12 = scalar_select 0, %s11, %s9
  %v13 = vstv %s7
  %14 = vst [vmem:[#allocation4] sm:$0x1] %v13
  $region1: #{tpu_custom_call.1} parent=0
    #allocation5 [shape = 'u8[16384]{0}', space=vmem, size = 0x4000, scoped, tag = 'input window, operand 0, single buffered']
    #allocation6 [shape = 's32[2]{0}', space=sflag, size = 0x8, scoped, tag = 'scoped memory for tpu_custom_call.1']
    #allocation7 [shape = 'u8[16384]{0}', space=vmem, size = 0x4000, scoped, tag = 'input window, operand 1, single buffered']
    #allocation8 [shape = 's32[1]{0}', space=sflag, size = 0x4, scoped, tag = 'scoped memory for tpu_custom_call.1']
    #allocation9 [shape = 'u8[65536]{0}', space=vmem, size = 0x10000, scoped, tag = 'input window, operand 2, single buffered']
    #allocation10 [shape = 'u8[1024]{0}', space=vmem, size = 0x400, scoped, tag = 'input window, operand 3, single buffered']
    #allocation11 [shape = 's32[1]{0}', space=sflag, size = 0x4, scoped, tag = 'scoped memory for tpu_custom_call.1']
    #allocation12 [shape = 'u8[2621440]{0}', space=vmem, size = 0x280000, scoped, tag = 'input window, operand 4']
    #allocation13 [shape = 'u8[4096]{0}', space=vmem, size = 0x1000, scoped, tag = 'input window, operand 5']
    #allocation14 [shape = 'u8[1024]{0}', space=vmem, size = 0x400, scoped, tag = 'input window, operand 6, single buffered']
    %15 = vsyncpa [#allocation6], 0
    %16 = vsyncpa [#allocation8], 0
    %17 = vsyncpa [#allocation11], 0
    loop: start=0, step=1, limit=8
    $region2: #{tpu_custom_call.1} parent=1 // loop_pre_header
      _
    $region3: #{tpu_custom_call.1} parent=1 // loop_header
      %s19 = sphi 0, %s23
      %p20 = scmp.ge.s32.totalorder %s19, 8
      %s27 = sphi 0, %s27
      %s29 = sphi 0, %s27
      %s30 = sphi 0, %s29
      %s44 = sphi 0, %s30
      %s48 = sphi 0, %s48
      %s50 = sphi 0, %s48
      %s51 = sphi 0, %s50
      %s65 = sphi 0, %s51
      %s69 = sphi 0, %s69
      %s71 = sphi 0, %s69
      %s72 = sphi 0, %s71
      %s86 = sphi 0, %s72
      %s90 = sphi 0, %s90
      %s92 = sphi 0, %s90
      %s93 = sphi 0, %s92
      %s107 = sphi 0, %s93
      %s113 = sphi 0, %s115
      %s116 = sphi 0, %s113
      %s117 = sphi 0, %s116
      %s133 = sphi 0, %s117
      %s139 = sphi 0, %s141
      %s142 = sphi 0, %s139
      %s143 = sphi 0, %s142
      %s159 = sphi 0, %s143
      %s163 = sphi 0, %s163
      %s165 = sphi 0, %s163
      %s166 = sphi 0, %s165
      %s180 = sphi 0, %s166
      %s184 = sphi 0, %s184
      %s186 = sphi 0, %s184
      %s187 = sphi 0, %s186
      %s201 = sphi 0, %s187
      %s205 = sphi 0, %s205
      %s207 = sphi 0, %s205
      %s208 = sphi 0, %s207
      %s222 = sphi 0, %s208
    $region4: #{tpu_custom_call.1} parent=1 // loop_header_branch
      %22 = sbr.rel (%p20) target = $region8
    $region5: #{tpu_custom_call.1} parent=1 // loop_body
      %s24 = ssub.s32 %s19, 1
      %s25 = ssub.s32 %s19, 2
      %s26 = sadd.s32 %s19, 1
      %s28 = sadd.s32 %s27, 1
      %p31 = scmp.eq.s32.totalorder %s19, 5
      %p32 = scmp.ne.s32.totalorder %s27, %s29
      %p33 = scmp.eq.s32.totalorder %s19, 0
      %p34 = por %p32, %p33
      %p35 = scmp.ne.s32.totalorder %s27, %s29
      %p36 = scmp.eq.s32.totalorder %s24, 5
      %p37 = por %p35, %p36
      %p38 = scmp.ne.s32.totalorder %s29, %s30
      %p39 = scmp.eq.s32.totalorder %s24, 0
      %p40 = por %p38, %p39
      %p41 = scmp.ne.s32.totalorder %s29, %s30
      %p42 = scmp.eq.s32.totalorder %s25, 5
      %p43 = por %p41, %p42
      %p45 = scmp.ne.s32.totalorder %s30, %s44
      %p46 = scmp.eq.s32.totalorder %s25, 0
      %p47 = por %p45, %p46
      %s49 = sadd.s32 %s48, 1
      %p52 = scmp.eq.s32.totalorder %s19, 5
      %p53 = scmp.ne.s32.totalorder %s48, %s50
      %p54 = scmp.eq.s32.totalorder %s19, 0
      %p55 = por %p53, %p54
      %p56 = scmp.ne.s32.totalorder %s48, %s50
      %p57 = scmp.eq.s32.totalorder %s24, 5
      %p58 = por %p56, %p57
      %p59 = scmp.ne.s32.totalorder %s50, %s51
      %p60 = scmp.eq.s32.totalorder %s24, 0
      %p61 = por %p59, %p60
      %p62 = scmp.ne.s32.totalorder %s50, %s51
      %p63 = scmp.eq.s32.totalorder %s25, 5
      %p64 = por %p62, %p63
      %p66 = scmp.ne.s32.totalorder %s51, %s65
      %p67 = scmp.eq.s32.totalorder %s25, 0
      %p68 = por %p66, %p67
      %s70 = sadd.s32 %s69, 1
      %p73 = scmp.eq.s32.totalorder %s19, 5
      %p74 = scmp.ne.s32.totalorder %s69, %s71
      %p75 = scmp.eq.s32.totalorder %s19, 0
      %p76 = por %p74, %p75
      %p77 = scmp.ne.s32.totalorder %s69, %s71
      %p78 = scmp.eq.s32.totalorder %s24, 5
      %p79 = por %p77, %p78
      %p80 = scmp.ne.s32.totalorder %s71, %s72
      %p81 = scmp.eq.s32.totalorder %s24, 0
      %p82 = por %p80, %p81
      %p83 = scmp.ne.s32.totalorder %s71, %s72
      %p84 = scmp.eq.s32.totalorder %s25, 5
      %p85 = por %p83, %p84
      %p87 = scmp.ne.s32.totalorder %s72, %s86
      %p88 = scmp.eq.s32.totalorder %s25, 0
      %p89 = por %p87, %p88
      %s91 = sadd.s32 %s90, 1
      %p94 = scmp.eq.s32.totalorder %s19, 5
      %p95 = scmp.ne.s32.totalorder %s90, %s92
      %p96 = scmp.eq.s32.totalorder %s19, 0
      %p97 = por %p95, %p96
      %p98 = scmp.ne.s32.totalorder %s90, %s92
      %p99 = scmp.eq.s32.totalorder %s24, 5
      %p100 = por %p98, %p99
      %p101 = scmp.ne.s32.totalorder %s92, %s93
      %p102 = scmp.eq.s32.totalorder %s24, 0
      %p103 = por %p101, %p102
      %p104 = scmp.ne.s32.totalorder %s92, %s93
      %p105 = scmp.eq.s32.totalorder %s25, 5
      %p106 = por %p104, %p105
      %p108 = scmp.ne.s32.totalorder %s93, %s107
      %p109 = scmp.eq.s32.totalorder %s25, 0
      %p110 = por %p108, %p109
      %s111 = ssub.s32 %s19, %s26
      %p112 = scmp.eq.s32.totalorder %s111, 0
      %s114 = sadd.s32 %s113, 1
      %s115 = scalar_select %p112, %s113, %s114
      %p118 = pneg %p112
      %p119 = scmp.eq.s32.totalorder %s19, 5
      %p120 = por %p118, %p119
      %p121 = scmp.ne.s32.totalorder %s113, %s116
      %p122 = scmp.eq.s32.totalorder %s19, 0
      %p123 = por %p121, %p122
      %p124 = scmp.ne.s32.totalorder %s113, %s116
      %p125 = scmp.eq.s32.totalorder %s24, 5
      %p126 = por %p124, %p125
      %p127 = scmp.ne.s32.totalorder %s116, %s117
      %p128 = scmp.eq.s32.totalorder %s24, 0
      %p129 = por %p127, %p128
      %p130 = scmp.ne.s32.totalorder %s116, %s117
      %p131 = scmp.eq.s32.totalorder %s25, 5
      %p132 = por %p130, %p131
      %p134 = scmp.ne.s32.totalorder %s117, %s133
      %p135 = scmp.eq.s32.totalorder %s25, 0
      %p136 = por %p134, %p135
      %s137 = ssub.s32 %s19, %s26
      %p138 = scmp.eq.s32.totalorder %s137, 0
      %s140 = sadd.s32 %s139, 1
      %s141 = scalar_select %p138, %s139, %s140
      %p144 = pneg %p138
      %p145 = scmp.eq.s32.totalorder %s19, 5
      %p146 = por %p144, %p145
      %p147 = scmp.ne.s32.totalorder %s139, %s142
      %p148 = scmp.eq.s32.totalorder %s19, 0
      %p149 = por %p147, %p148
      %p150 = scmp.ne.s32.totalorder %s139, %s142
      %p151 = scmp.eq.s32.totalorder %s24, 5
      %p152 = por %p150, %p151
      %p153 = scmp.ne.s32.totalorder %s142, %s143
      %p154 = scmp.eq.s32.totalorder %s24, 0
      %p155 = por %p153, %p154
      %p156 = scmp.ne.s32.totalorder %s142, %s143
      %p157 = scmp.eq.s32.totalorder %s25, 5
      %p158 = por %p156, %p157
      %p160 = scmp.ne.s32.totalorder %s143, %s159
      %p161 = scmp.eq.s32.totalorder %s25, 0
      %p162 = por %p160, %p161
      %s164 = sadd.s32 %s163, 1
      %p167 = scmp.eq.s32.totalorder %s19, 5
      %p168 = scmp.ne.s32.totalorder %s163, %s165
      %p169 = scmp.eq.s32.totalorder %s19, 0
      %p170 = por %p168, %p169
      %p171 = scmp.ne.s32.totalorder %s163, %s165
      %p172 = scmp.eq.s32.totalorder %s24, 5
      %p173 = por %p171, %p172
      %p174 = scmp.ne.s32.totalorder %s165, %s166
      %p175 = scmp.eq.s32.totalorder %s24, 0
      %p176 = por %p174, %p175
      %p177 = scmp.ne.s32.totalorder %s165, %s166
      %p178 = scmp.eq.s32.totalorder %s25, 5
      %p179 = por %p177, %p178
      %p181 = scmp.ne.s32.totalorder %s166, %s180
      %p182 = scmp.eq.s32.totalorder %s25, 0
      %p183 = por %p181, %p182
      %s185 = sadd.s32 %s184, 1
      %p188 = scmp.eq.s32.totalorder %s19, 5
      %p189 = scmp.ne.s32.totalorder %s184, %s186
      %p190 = scmp.eq.s32.totalorder %s19, 0
      %p191 = por %p189, %p190
      %p192 = scmp.ne.s32.totalorder %s184, %s186
      %p193 = scmp.eq.s32.totalorder %s24, 5
      %p194 = por %p192, %p193
      %p195 = scmp.ne.s32.totalorder %s186, %s187
      %p196 = scmp.eq.s32.totalorder %s24, 0
      %p197 = por %p195, %p196
      %p198 = scmp.ne.s32.totalorder %s186, %s187
      %p199 = scmp.eq.s32.totalorder %s25, 5
      %p200 = por %p198, %p199
      %p202 = scmp.ne.s32.totalorder %s187, %s201
      %p203 = scmp.eq.s32.totalorder %s25, 0
      %p204 = por %p202, %p203
      %s206 = sadd.s32 %s205, 1
      %p209 = scmp.eq.s32.totalorder %s19, 5
      %p210 = scmp.ne.s32.totalorder %s205, %s207
      %p211 = scmp.eq.s32.totalorder %s19, 0
      %p212 = por %p210, %p211
      %p213 = scmp.ne.s32.totalorder %s205, %s207
      %p214 = scmp.eq.s32.totalorder %s24, 5
      %p215 = por %p213, %p214
      %p216 = scmp.ne.s32.totalorder %s207, %s208
      %p217 = scmp.eq.s32.totalorder %s24, 0
      %p218 = por %p216, %p217
      %p219 = scmp.ne.s32.totalorder %s207, %s208
      %p220 = scmp.eq.s32.totalorder %s25, 5
      %p221 = por %p219, %p220
      %p223 = scmp.ne.s32.totalorder %s208, %s222
      %p224 = scmp.eq.s32.totalorder %s25, 0
      %p225 = por %p223, %p224
      %p226 = scmp.le.s32.totalorder 1, %s19
      %p227 = scmp.lt.s32.totalorder %s19, 7
      %p228 = pnand %p226, %p227
      %p229 = pneg %p228
      // Predicated region
      $region9: #{tpu_custom_call.1} parent=5 // pred_check
        _
      $region10: #{tpu_custom_call.1} parent=5 // pred_check_branch
        %231 = sbr.rel (%p228) target = $region12
      $region11: #{tpu_custom_call.1} parent=5 // pred_region
        %s232 = ssub.s32 %s19, 1
        // Predicated region
        $region13: #{tpu_custom_call.1} parent=11 // pred_check
          %p233 = pneg %p40
        $region14: #{tpu_custom_call.1} parent=11 // pred_check_branch
          %235 = sbr.rel (%p233) target = $region16
        $region15: #{tpu_custom_call.1} parent=11 // pred_region
          %237 = vsyncadd [#allocation6], 0
          %s238 = sshll.u32 %s0, 4
          %s239 = int_to_ptr.hbm [resolvable:$true] %s238
          %s240 = sshll.u32 [#allocation5], 4
          %s241 = int_to_ptr.vmem [resolvable:$true] %s240
          %246 = dma.hbm_to_vmem [thread:$0]  %s239, 512, %s241, [#allocation6], 128, 128, 8
        $region16: #{tpu_custom_call.1} parent=11 // pred_fallthru
          _
        // Predicated region
        $region17: #{tpu_custom_call.1} parent=11 // pred_check
          %p247 = pneg %p61
        $region18: #{tpu_custom_call.1} parent=11 // pred_check_branch
          %249 = sbr.rel (%p247) target = $region20
        $region19: #{tpu_custom_call.1} parent=11 // pred_region
          %251 = vsyncadd [#allocation8], 0
          %s252 = sshll.u32 %s1, 4
          %s253 = int_to_ptr.hbm [resolvable:$true] %s252
          %s254 = sshll.u32 [#allocation7], 4
          %s255 = int_to_ptr.vmem [resolvable:$true] %s254
          %260 = dma.hbm_to_vmem [thread:$0]  %s253, 512, %s255, [#allocation8], 128, 128, 8
        $region20: #{tpu_custom_call.1} parent=11 // pred_fallthru
          _
        // Predicated region
        $region21: #{tpu_custom_call.1} parent=11 // pred_check
          %p261 = pneg %p82
        $region22: #{tpu_custom_call.1} parent=11 // pred_check_branch
          %263 = sbr.rel (%p261) target = $region24
        $region23: #{tpu_custom_call.1} parent=11 // pred_region
          %265 = vsyncadd [#allocation8], 0
          %s266 = sshll.u32 %s2, 4
          %s267 = int_to_ptr.hbm [resolvable:$true] %s266
          %s268 = sshll.u32 [#allocation9], 4
          %s269 = int_to_ptr.vmem [resolvable:$true] %s268
          %274 = dma.hbm_to_vmem [thread:$0]  %s267, 2048, %s269, [#allocation8], 128, 128, 8
        $region24: #{tpu_custom_call.1} parent=11 // pred_fallthru
          _
        // Predicated region
        $region25: #{tpu_custom_call.1} parent=11 // pred_check
          %p275 = pneg %p103
        $region26: #{tpu_custom_call.1} parent=11 // pred_check_branch
          %277 = sbr.rel (%p275) target = $region28
        $region27: #{tpu_custom_call.1} parent=11 // pred_region
          %279 = vsyncadd [#allocation11], 0
          %s281 = sshll.u32 %s3, 4
          %s282 = int_to_ptr.hbm [resolvable:$true] %s281
          %s283 = sshll.u32 [#allocation10], 4
          %s284 = int_to_ptr.vmem [resolvable:$true] %s283
          %286 = dma.hbm_to_vmem [thread:$0]  %s282, 32, %s284, [#allocation11]
        $region28: #{tpu_custom_call.1} parent=11 // pred_fallthru
          _
        // Predicated region
        $region29: #{tpu_custom_call.1} parent=11 // pred_check
          %p287 = pneg %p176
        $region30: #{tpu_custom_call.1} parent=11 // pred_check_branch
          %289 = sbr.rel (%p287) target = $region32
        $region31: #{tpu_custom_call.1} parent=11 // pred_region
          %291 = vsyncadd [#allocation8], 0
          %s293 = sshll.u32 %s6, 4
          %s294 = int_to_ptr.hbm [resolvable:$true] %s293
          %s295 = sshll.u32 [#allocation14], 4
          %s296 = int_to_ptr.vmem [resolvable:$true] %s295
          %298 = dma.hbm_to_vmem [thread:$0]  %s294, 32, %s296, [#allocation8]
        $region32: #{tpu_custom_call.1} parent=11 // pred_fallthru
          _
        // Predicated region
        $region33: #{tpu_custom_call.1} parent=11 // pred_check
          %p299 = pneg %p197
        $region34: #{tpu_custom_call.1} parent=11 // pred_check_branch
          %301 = sbr.rel (%p299) target = $region36
        $region35: #{tpu_custom_call.1} parent=11 // pred_region
          _
        $region36: #{tpu_custom_call.1} parent=11 // pred_fallthru
          _
      $region12: #{tpu_custom_call.1} parent=5 // pred_fallthru
        _
      %p302 = scmp.lt.s32.totalorder %s19, 6
      // Predicated region
      $region37: #{tpu_custom_call.1} parent=5 // pred_check
        %p303 = pneg %p302
      $region38: #{tpu_custom_call.1} parent=5 // pred_check_branch
        %305 = sbr.rel (%p303) target = $region40
      $region39: #{tpu_custom_call.1} parent=5 // pred_region
        // Predicated region
        $region41: #{tpu_custom_call.1} parent=39 // pred_check
          %p306 = pneg %p123
        $region42: #{tpu_custom_call.1} parent=39 // pred_check_branch
          %308 = sbr.rel (%p306) target = $region44
        $region43: #{tpu_custom_call.1} parent=39 // pred_region
          %s309 = sand.u32 %s19, 1
          %s310 = scalar_lea.sflag [#allocation6], %s309
          %s311 = sand.u32 %s113, 1
          %s312 = smul.addr %s311, 2560
          %s313 = scalar_lea.vmem [#allocation12], %s312
          %315 = vsyncadd %s310, 0
          %s316 = smul.addr %s19, 640
          %s317 = smul.addr %s316, 4
          %s318 = scalar_lea.hbm %s4, %s317
          %s319 = sshll.u32 %s318, 4
          %s320 = int_to_ptr.hbm [resolvable:$true] %s319
          %s321 = sshll.u32 %s313, 4
          %s322 = int_to_ptr.vmem [resolvable:$true] %s321
          %327 = dma.hbm_to_vmem [thread:$0]  %s320, 40960, %s322, %s310, 128, 128, 8
        $region44: #{tpu_custom_call.1} parent=39 // pred_fallthru
          _
        // Predicated region
        $region45: #{tpu_custom_call.1} parent=39 // pred_check
          %p328 = pneg %p149
        $region46: #{tpu_custom_call.1} parent=39 // pred_check_branch
          %330 = sbr.rel (%p328) target = $region48
        $region47: #{tpu_custom_call.1} parent=39 // pred_region
          %s331 = sand.u32 %s19, 1
          %s332 = scalar_lea.sflag [#allocation6], %s331
          %s333 = sand.u32 %s139, 1
          %s334 = smul.addr %s333, 4
          %s335 = scalar_lea.vmem [#allocation13], %s334
          %337 = vsyncadd %s332, 0
          %s338 = smul.addr %s19, 4
          %s339 = scalar_lea.hbm %s5, %s338
          %s340 = sshll.u32 %s339, 4
          %s341 = int_to_ptr.hbm [resolvable:$true] %s340
          %s342 = sshll.u32 %s335, 4
          %s343 = int_to_ptr.vmem [resolvable:$true] %s342
          %348 = dma.hbm_to_vmem [thread:$0]  %s341, 64, %s343, %s332, 32, 32, 2
        $region48: #{tpu_custom_call.1} parent=39 // pred_fallthru
          _
      $region40: #{tpu_custom_call.1} parent=5 // pred_fallthru
        _
      %p349 = scmp.le.s32.totalorder 1, %s19
      %p350 = scmp.lt.s32.totalorder %s19, 7
      %p351 = pnand %p349, %p350
      %p352 = pneg %p351
      // Predicated region
      $region49: #{tpu_custom_call.1} parent=5 // pred_check
        _
      $region50: #{tpu_custom_call.1} parent=5 // pred_check_branch
        %354 = sbr.rel (%p351) target = $region52
      $region51: #{tpu_custom_call.1} parent=5 // pred_region
        %s355 = ssub.s32 %s19, 1
        // Predicated region
        $region53: #{tpu_custom_call.1} parent=51 // pred_check
          %p356 = pneg %p40
        $region54: #{tpu_custom_call.1} parent=51 // pred_check_branch
          %358 = sbr.rel (%p356) target = $region56
        $region55: #{tpu_custom_call.1} parent=51 // pred_region
          %360 = dma.done [#allocation6], 512
        $region56: #{tpu_custom_call.1} parent=51 // pred_fallthru
          _
        // Predicated region
        $region57: #{tpu_custom_call.1} parent=51 // pred_check
          %p361 = pneg %p61
        $region58: #{tpu_custom_call.1} parent=51 // pred_check_branch
          %363 = sbr.rel (%p361) target = $region60
        $region59: #{tpu_custom_call.1} parent=51 // pred_region
          %365 = dma.done [#allocation8], 512
        $region60: #{tpu_custom_call.1} parent=51 // pred_fallthru
          _
        // Predicated region
        $region61: #{tpu_custom_call.1} parent=51 // pred_check
          %p366 = pneg %p82
        $region62: #{tpu_custom_call.1} parent=51 // pred_check_branch
          %368 = sbr.rel (%p366) target = $region64
        $region63: #{tpu_custom_call.1} parent=51 // pred_region
          %370 = dma.done [#allocation8], 2048
        $region64: #{tpu_custom_call.1} parent=51 // pred_fallthru
          _
        // Predicated region
        $region65: #{tpu_custom_call.1} parent=51 // pred_check
          %p371 = pneg %p103
        $region66: #{tpu_custom_call.1} parent=51 // pred_check_branch
          %373 = sbr.rel (%p371) target = $region68
        $region67: #{tpu_custom_call.1} parent=51 // pred_region
          %375 = dma.done [#allocation11], 32
        $region68: #{tpu_custom_call.1} parent=51 // pred_fallthru
          _
        %s376 = sand.u32 %s24, 1
        %s377 = scalar_lea.sflag [#allocation6], %s376
        %s378 = sand.u32 %s116, 1
        %s379 = smul.addr %s378, 2560
        %s380 = scalar_lea.vmem [#allocation12], %s379
        // Predicated region
        $region69: #{tpu_custom_call.1} parent=51 // pred_check
          %p381 = pneg %p129
        $region70: #{tpu_custom_call.1} parent=51 // pred_check_branch
          %383 = sbr.rel (%p381) target = $region72
        $region71: #{tpu_custom_call.1} parent=51 // pred_region
          %385 = dma.done %s377, 40960
        $region72: #{tpu_custom_call.1} parent=51 // pred_fallthru
          _
        %s386 = sand.u32 %s24, 1
        %s387 = scalar_lea.sflag [#allocation6], %s386
        %s388 = sand.u32 %s142, 1
        %s389 = smul.addr %s388, 4
        %s390 = scalar_lea.vmem [#allocation13], %s389
        // Predicated region
        $region73: #{tpu_custom_call.1} parent=51 // pred_check
          %p391 = pneg %p155
        $region74: #{tpu_custom_call.1} parent=51 // pred_check_branch
          %393 = sbr.rel (%p391) target = $region76
        $region75: #{tpu_custom_call.1} parent=51 // pred_region
          %395 = dma.done %s387, 64
        $region76: #{tpu_custom_call.1} parent=51 // pred_fallthru
          _
        // Predicated region
        $region77: #{tpu_custom_call.1} parent=51 // pred_check
          %p396 = pneg %p176
        $region78: #{tpu_custom_call.1} parent=51 // pred_check_branch
          %398 = sbr.rel (%p396) target = $region80
        $region79: #{tpu_custom_call.1} parent=51 // pred_region
          %400 = dma.done [#allocation8], 32
        $region80: #{tpu_custom_call.1} parent=51 // pred_fallthru
          _
        %p401 = pneg %p40
        %p402 = pneg %p37
        %p403 = pneg %p61
        %p404 = pneg %p58
        %p405 = pneg %p82
        %p406 = pneg %p79
        %p407 = pneg %p103
        %p408 = pneg %p100
        %s409 = sand.u32 %s24, 1
        %s410 = scalar_lea.sflag [#allocation6], %s409
        %s411 = sand.u32 %s116, 1
        %s412 = smul.addr %s411, 2560
        %s413 = scalar_lea.vmem [#allocation12], %s412
        %p414 = pneg %p129
        %p415 = pneg %p126
        %s416 = sand.u32 %s24, 1
        %s417 = scalar_lea.sflag [#allocation6], %s416
        %s418 = sand.u32 %s142, 1
        %s419 = smul.addr %s418, 4
        %s420 = scalar_lea.vmem [#allocation13], %s419
        %p421 = pneg %p155
        %p422 = pneg %p152
        %p423 = pneg %p176
        %p424 = pneg %p173
        %p425 = pneg %p197
        %p426 = pneg %p194
        %p427 = pneg %p218
        %p428 = pneg %p215
        %p430 = scmp.eq.s32.totalorder %s24, 0
        // Predicated region
        $region81: #{tpu_custom_call.1} parent=51 // pred_check
          %p431 = pneg %p430
        $region82: #{tpu_custom_call.1} parent=51 // pred_check_branch
          %433 = sbr.rel (%p431) target = $region84
        $region83: #{tpu_custom_call.1} parent=51 // pred_region
          %434 = vst [vmem:[#allocation3] sm:$0xff] 0
          %435 = vst [vmem:[#allocation3 + $0x8] sm:$0xff] 0
          %436 = vst [vmem:[#allocation3 + $0x10] sm:$0xff] 0
          %437 = vst [vmem:[#allocation3 + $0x18] sm:$0xff] 0
          %438 = vst [vmem:[#allocation3 + $0x20] sm:$0xff] 0
          %439 = vst [vmem:[#allocation3 + $0x28] sm:$0xff] 0
          %v440 = vld [vmem:[#allocation5] sm:$0xff]
          %v441 = vld [vmem:[#allocation5 + $0x8] sm:$0xff]
          %v442 = vld [vmem:[#allocation5 + $0x10] sm:$0xff]
          %v443 = vld [vmem:[#allocation5 + $0x18] sm:$0xff]
          %v444 = vld [vmem:[#allocation7] sm:$0xff]
          %v445 = vld [vmem:[#allocation7 + $0x8] sm:$0xff]
          %v446 = vld [vmem:[#allocation7 + $0x10] sm:$0xff]
          %v447 = vld [vmem:[#allocation7 + $0x18] sm:$0xff]
          %v448 = vmul.f32 %v444, 0.01
          %v449 = vmul.f32 %v445, 0.01
          %v450 = vmul.f32 %v446, 0.01
          %v451 = vmul.f32 %v447, 0.01
          %v452 = vadd.f32 %v440, %v448
          %v453 = vadd.f32 %v441, %v449
          %v454 = vadd.f32 %v442, %v450
          %v455 = vadd.f32 %v443, %v451
          %v456 = vpack.c.bf16 %v452, %v452
          %v457 = vpack.c.bf16 %v453, %v453
          %v458 = vpack.c.bf16 %v454, %v454
          %v459 = vpack.c.bf16 %v455, %v455
          %v460 = vld [vmem:[#allocation9] sm:$0xff]
          %v461 = vld [vmem:[#allocation9 + $0x8] sm:$0xff]
          %v462 = vld [vmem:[#allocation9 + $0x10] sm:$0xff]
          %v463 = vld [vmem:[#allocation9 + $0x18] sm:$0xff]
          %v464 = vld [vmem:[#allocation9 + $0x20] sm:$0xff]
          %v465 = vld [vmem:[#allocation9 + $0x28] sm:$0xff]
          %v466 = vld [vmem:[#allocation9 + $0x30] sm:$0xff]
          %v467 = vld [vmem:[#allocation9 + $0x38] sm:$0xff]
          %v468 = vld [vmem:[#allocation9 + $0x40] sm:$0xff]
          %v469 = vld [vmem:[#allocation9 + $0x48] sm:$0xff]
          %v470 = vld [vmem:[#allocation9 + $0x50] sm:$0xff]
          %v471 = vld [vmem:[#allocation9 + $0x58] sm:$0xff]
          %v472 = vld [vmem:[#allocation9 + $0x60] sm:$0xff]
          %v473 = vld [vmem:[#allocation9 + $0x68] sm:$0xff]
          %v474 = vld [vmem:[#allocation9 + $0x70] sm:$0xff]
          %v475 = vld [vmem:[#allocation9 + $0x78] sm:$0xff]
          %v476 = vld [vmem:[#allocation10] sm:$0x3]
          %v478 = vperm.slane %v476, 0
          %v479 = vperm.slane %v476, 1
          %v486 = vunpack.c.l.b16 %v456
          %v487 = vunpack.c.l.b16 %v457
          %v488 = vunpack.c.l.b16 %v458
          %v489 = vunpack.c.l.b16 %v459
          %v490 = vpack.c.b16 %v487, %v486
          %v491 = vpack.c.b16 %v489, %v488
          %v510 = vunpack.c.l.b16 %v460
          %v511 = vunpack.c.h.b16 %v460
          %v512 = vunpack.c.l.b16 %v461
          %v513 = vunpack.c.h.b16 %v461
          %v514 = vunpack.c.l.b16 %v462
          %v515 = vunpack.c.h.b16 %v462
          %v516 = vunpack.c.l.b16 %v463
          %v517 = vunpack.c.h.b16 %v463
          %v518 = vunpack.c.l.b16 %v464
          %v519 = vunpack.c.h.b16 %v464
          %v520 = vunpack.c.l.b16 %v465
          %v521 = vunpack.c.h.b16 %v465
          %v522 = vunpack.c.l.b16 %v466
          %v523 = vunpack.c.h.b16 %v466
          %v524 = vunpack.c.l.b16 %v467
          %v525 = vunpack.c.h.b16 %v467
          %v526 = vunpack.c.l.b16 %v468
          %v527 = vunpack.c.h.b16 %v468
          %v528 = vunpack.c.l.b16 %v469
          %v529 = vunpack.c.h.b16 %v469
          %v530 = vunpack.c.l.b16 %v470
          %v531 = vunpack.c.h.b16 %v470
          %v532 = vunpack.c.l.b16 %v471
          %v533 = vunpack.c.h.b16 %v471
          %v534 = vunpack.c.l.b16 %v472
          %v535 = vunpack.c.h.b16 %v472
          %v536 = vunpack.c.l.b16 %v473
          %v537 = vunpack.c.h.b16 %v473
          %v538 = vunpack.c.l.b16 %v474
          %v539 = vunpack.c.h.b16 %v474
          %v540 = vunpack.c.l.b16 %v475
          %v541 = vunpack.c.h.b16 %v475
          %v542 = vpack.c.b16 %v512, %v510
          %v543 = vpack.c.b16 %v513, %v511
          %v544 = vpack.c.b16 %v516, %v514
          %v545 = vpack.c.b16 %v517, %v515
          %v546 = vpack.c.b16 %v520, %v518
          %v547 = vpack.c.b16 %v521, %v519
          %v548 = vpack.c.b16 %v524, %v522
          %v549 = vpack.c.b16 %v525, %v523
          %v550 = vpack.c.b16 %v528, %v526
          %v551 = vpack.c.b16 %v529, %v527
          %v552 = vpack.c.b16 %v532, %v530
          %v553 = vpack.c.b16 %v533, %v531
          %v554 = vpack.c.b16 %v536, %v534
          %v555 = vpack.c.b16 %v537, %v535
          %v556 = vpack.c.b16 %v540, %v538
          %v557 = vpack.c.b16 %v541, %v539
          %574 = vmatpush.bf16.msra.mxu0 %v556
          %575 = vmatpush.bf16.msra.mxu0 %v554
          %576 = vmatpush.bf16.msra.mxu0 %v552
          %577 = vmatpush.bf16.msra.mxu0 %v550
          %578 = vmatpush.bf16.msra.mxu0 %v548
          %579 = vmatpush.bf16.msra.mxu0 %v546
          %580 = vmatpush.bf16.msra.mxu0 %v544
          %581 = vmatpush.bf16.msra.mxu0 %v542
          %582 = vmatmul.bf16.gmra.mxu0 %v490
          %v583 = vpop.f32.mrf.mxu0
          %v584 = vadd.f32 %v478, %v583
          %v585 = vpop.f32.mrf.mxu0
          %v586 = vadd.f32 %v478, %v585
          %587 = vmatmul.bf16.gmra.mxu0 %v491
          %v588 = vpop.f32.mrf.mxu0
          %v589 = vadd.f32 %v478, %v588
          %v590 = vpop.f32.mrf.mxu0
          %v591 = vadd.f32 %v478, %v590
          %592 = vdwg.mxu0
          %593 = vmatpush.bf16.msra.mxu0 %v557
          %594 = vmatpush.bf16.msra.mxu0 %v555
          %595 = vmatpush.bf16.msra.mxu0 %v553
          %596 = vmatpush.bf16.msra.mxu0 %v551
          %597 = vmatpush.bf16.msra.mxu0 %v549
          %598 = vmatpush.bf16.msra.mxu0 %v547
          %599 = vmatpush.bf16.msra.mxu0 %v545
          %600 = vmatpush.bf16.msra.mxu0 %v543
          %601 = vmatmul.bf16.gmra.mxu0 %v490
          %v602 = vpop.f32.mrf.mxu0
          %v603 = vadd.f32 %v479, %v602
          %v604 = vpop.f32.mrf.mxu0
          %v605 = vadd.f32 %v479, %v604
          %606 = vmatmul.bf16.gmra.mxu0 %v491
          %v607 = vpop.f32.mrf.mxu0
          %v608 = vadd.f32 %v479, %v607
          %v609 = vpop.f32.mrf.mxu0
          %v610 = vadd.f32 %v479, %v609
          %611 = vdwg.mxu0
          %v612 = vmul.f32 %v584, 0.2
          %v613 = vmul.f32 %v603, 0.2
          %v614 = vmul.f32 %v586, 0.2
          %v615 = vmul.f32 %v605, 0.2
          %v616 = vmul.f32 %v589, 0.2
          %v617 = vmul.f32 %v608, 0.2
          %v618 = vmul.f32 %v591, 0.2
          %v619 = vmul.f32 %v610, 0.2
          %v620 = vmax.f32 %v584, %v612
          %v621 = vmax.f32 %v603, %v613
          %v622 = vmax.f32 %v586, %v614
          %v623 = vmax.f32 %v605, %v615
          %v624 = vmax.f32 %v589, %v616
          %v625 = vmax.f32 %v608, %v617
          %v626 = vmax.f32 %v591, %v618
          %v627 = vmax.f32 %v610, %v619
          %628 = vst [vmem:[#allocation2] sm:$0xff] %v620
          %629 = vst [vmem:[#allocation2 + $0x8] sm:$0xff] %v621
          %630 = vst [vmem:[#allocation2 + $0x10] sm:$0xff] %v622
          %631 = vst [vmem:[#allocation2 + $0x18] sm:$0xff] %v623
          %632 = vst [vmem:[#allocation2 + $0x20] sm:$0xff] %v624
          %633 = vst [vmem:[#allocation2 + $0x28] sm:$0xff] %v625
          %634 = vst [vmem:[#allocation2 + $0x30] sm:$0xff] %v626
          %635 = vst [vmem:[#allocation2 + $0x38] sm:$0xff] %v627
        $region84: #{tpu_custom_call.1} parent=51 // pred_fallthru
          _
        %v636 = vld [vmem:[#allocation2] sm:$0xff]
        %v637 = vld [vmem:[#allocation2 + $0x8] sm:$0xff]
        %v638 = vld [vmem:[#allocation2 + $0x10] sm:$0xff]
        %v639 = vld [vmem:[#allocation2 + $0x18] sm:$0xff]
        %v640 = vld [vmem:[#allocation2 + $0x20] sm:$0xff]
        %v641 = vld [vmem:[#allocation2 + $0x28] sm:$0xff]
        %v642 = vld [vmem:[#allocation2 + $0x30] sm:$0xff]
        %v643 = vld [vmem:[#allocation2 + $0x38] sm:$0xff]
        %v644 = vpack.c.bf16 %v637, %v636
        %v645 = vpack.c.bf16 %v639, %v638
        %v646 = vpack.c.bf16 %v641, %v640
        %v647 = vpack.c.bf16 %v643, %v642
        %vm652 = vcmask 1040384
        %vm653 = vcmask 1044484
        %vm654 = vmor %vm652, %vm653
        %v655 = vrot.slane %v644, 7
        %v656 = vrot.slane %v655, 4
        %v657 = vrot.slane %v645, 7
        %v658 = vsel %vm654, %v656, %v657
        %v659 = vrot.slane %v657, 4
        %v660 = vrot.slane %v646, 7
        %v661 = vrot.slane %v660, 4
        %v662 = vrot.slane %v647, 7
        %v663 = vsel %vm654, %v661, %v662
        %v664 = vrot.slane %v662, 4
        %671 = vst [vmem:[#allocation3] sm:$0xee] %v655
        %672 = vst [vmem:[#allocation3 + $0x8] sm:$0xff] %v658
        %673 = vst [vmem:[#allocation3 + $0x10] sm:$0x11] %v659
        %674 = vst [vmem:[#allocation3 + $0x18] sm:$0xee] %v660
        %675 = vst [vmem:[#allocation3 + $0x20] sm:$0xff] %v663
        %676 = vst [vmem:[#allocation3 + $0x28] sm:$0x11] %v664
        %v677 = vld [vmem:[#allocation3] sm:$0xff]
        %v678 = vld [vmem:[#allocation3 + $0x8] sm:$0xff]
        %v679 = vld [vmem:[#allocation3 + $0x18] sm:$0xff]
        %v680 = vld [vmem:[#allocation3 + $0x20] sm:$0xff]
        %v681 = vld [vmem:[#allocation3] sm:$0xff]
        %v682 = vld [vmem:[#allocation3 + $0x8] sm:$0xff]
        %v683 = vld [vmem:[#allocation3 + $0x10] sm:$0x11]
        %v684 = vld [vmem:[#allocation3 + $0x18] sm:$0xff]
        %v685 = vld [vmem:[#allocation3 + $0x20] sm:$0xff]
        %v686 = vld [vmem:[#allocation3 + $0x28] sm:$0x11]
        %v687 = vld [vmem:[#allocation3] sm:$0xee]
        %v688 = vld [vmem:[#allocation3 + $0x18] sm:$0xee]
        %v689 = vld [vmem:[#allocation3 + $0x10] sm:$0x33]
        %v690 = vld [vmem:[#allocation3 + $0x28] sm:$0x33]
        %v691 = vld [vmem:[#allocation3] sm:$0xcc]
        %v692 = vld [vmem:[#allocation3 + $0x18] sm:$0xcc]
        %v697 = vunpack.c.l.b16 %v677
        %v698 = vunpack.c.h.b16 %v677
        %v699 = vunpack.c.l.b16 %v678
        %v700 = vunpack.c.h.b16 %v678
        %v701 = vunpack.c.l.b16 %v679
        %v702 = vunpack.c.h.b16 %v679
        %v703 = vunpack.c.l.b16 %v680
        %v704 = vunpack.c.h.b16 %v680
        %v705 = vpack.c.b16 %v699, %v697
        %v706 = vpack.c.b16 %v700, %v698
        %v707 = vpack.c.b16 %v703, %v701
        %v708 = vpack.c.b16 %v704, %v702
        %v719 = vunpack.c.l.b16 %v681
        %v720 = vunpack.c.h.b16 %v681
        %v721 = vunpack.c.l.b16 %v682
        %v722 = vunpack.c.h.b16 %v682
        %v723 = vunpack.c.l.b16 %v683
        %v724 = vunpack.c.h.b16 %v683
        %v725 = vunpack.c.l.b16 %v684
        %v726 = vunpack.c.h.b16 %v684
        %v727 = vunpack.c.l.b16 %v685
        %v728 = vunpack.c.h.b16 %v685
        %v729 = vunpack.c.l.b16 %v686
        %v730 = vunpack.c.h.b16 %v686
        %v731 = vpack.c.b16 %v721, %v719
        %v732 = vpack.c.b16 %v722, %v720
        %v733 = vpack.c.b16 %v723, %v723
        %v734 = vpack.c.b16 %v724, %v724
        %v735 = vpack.c.b16 %v727, %v725
        %v736 = vpack.c.b16 %v728, %v726
        %v737 = vpack.c.b16 %v729, %v729
        %v738 = vpack.c.b16 %v730, %v730
        %vm739 = vsmask.f32 7424
        %v741 = vshrl.u32 %v731, 16
        %v743 = vshll.u32 %v731, 16
        %v745 = vrot.slane %v743, 1
        %v746 = vor.u32 %v741, %v745
        %v748 = vshll.u32 %v733, 16
        %v750 = vrot.slane %v748, 1
        %v751 = vsel %vm739, %v746, %v750
        %v753 = vshrl.u32 %v732, 16
        %v755 = vshll.u32 %v732, 16
        %v757 = vrot.slane %v755, 1
        %v758 = vor.u32 %v753, %v757
        %v760 = vshll.u32 %v734, 16
        %v762 = vrot.slane %v760, 1
        %v763 = vsel %vm739, %v758, %v762
        %v765 = vshrl.u32 %v735, 16
        %v767 = vshll.u32 %v735, 16
        %v769 = vrot.slane %v767, 1
        %v770 = vor.u32 %v765, %v769
        %v772 = vshll.u32 %v737, 16
        %v774 = vrot.slane %v772, 1
        %v775 = vsel %vm739, %v770, %v774
        %v777 = vshrl.u32 %v736, 16
        %v779 = vshll.u32 %v736, 16
        %v781 = vrot.slane %v779, 1
        %v782 = vor.u32 %v777, %v781
        %v784 = vshll.u32 %v738, 16
        %v786 = vrot.slane %v784, 1
        %v787 = vsel %vm739, %v782, %v786
        %v794 = vunpack.c.l.b16 %v687
        %v795 = vunpack.c.h.b16 %v687
        %v796 = vunpack.c.l.b16 %v688
        %v797 = vunpack.c.h.b16 %v688
        %v798 = vpack.c.b16 %v721, %v794
        %v799 = vpack.c.b16 %v722, %v795
        %v800 = vpack.c.b16 %v727, %v796
        %v801 = vpack.c.b16 %v728, %v797
        %vm802 = vcmask 1046528
        %v803 = vrot.slane %v798, 1
        %v804 = vrot.slane %v733, 1
        %v805 = vsel %vm802, %v803, %v804
        %v806 = vrot.slane %v799, 1
        %v807 = vrot.slane %v734, 1
        %v808 = vsel %vm802, %v806, %v807
        %v809 = vrot.slane %v800, 1
        %v810 = vrot.slane %v737, 1
        %v811 = vsel %vm802, %v809, %v810
        %v812 = vrot.slane %v801, 1
        %v813 = vrot.slane %v738, 1
        %v814 = vsel %vm802, %v812, %v813
        %v821 = vunpack.c.l.b16 %v689
        %v822 = vunpack.c.h.b16 %v689
        %v823 = vunpack.c.l.b16 %v690
        %v824 = vunpack.c.h.b16 %v690
        %v825 = vpack.c.b16 %v821, %v821
        %v826 = vpack.c.b16 %v822, %v822
        %v827 = vpack.c.b16 %v823, %v823
        %v828 = vpack.c.b16 %v824, %v824
        %vm829 = vsmask.f32 6400
        %v831 = vshrl.u32 %v798, 16
        %v833 = vrot.slane %v831, 1
        %v834 = vshll.u32 %v798, 16
        %v836 = vrot.slane %v834, 2
        %v837 = vor.u32 %v833, %v836
        %v839 = vshrl.u32 %v825, 16
        %v841 = vrot.slane %v839, 1
        %v842 = vshll.u32 %v825, 16
        %v844 = vrot.slane %v842, 2
        %v845 = vor.u32 %v841, %v844
        %v846 = vsel %vm829, %v837, %v845
        %v848 = vshrl.u32 %v799, 16
        %v850 = vrot.slane %v848, 1
        %v851 = vshll.u32 %v799, 16
        %v853 = vrot.slane %v851, 2
        %v854 = vor.u32 %v850, %v853
        %v856 = vshrl.u32 %v826, 16
        %v858 = vrot.slane %v856, 1
        %v859 = vshll.u32 %v826, 16
        %v861 = vrot.slane %v859, 2
        %v862 = vor.u32 %v858, %v861
        %v863 = vsel %vm829, %v854, %v862
        %v865 = vshrl.u32 %v800, 16
        %v867 = vrot.slane %v865, 1
        %v868 = vshll.u32 %v800, 16
        %v870 = vrot.slane %v868, 2
        %v871 = vor.u32 %v867, %v870
        %v873 = vshrl.u32 %v827, 16
        %v875 = vrot.slane %v873, 1
        %v876 = vshll.u32 %v827, 16
        %v878 = vrot.slane %v876, 2
        %v879 = vor.u32 %v875, %v878
        %v880 = vsel %vm829, %v871, %v879
        %v882 = vshrl.u32 %v801, 16
        %v884 = vrot.slane %v882, 1
        %v885 = vshll.u32 %v801, 16
        %v887 = vrot.slane %v885, 2
        %v888 = vor.u32 %v884, %v887
        %v890 = vshrl.u32 %v828, 16
        %v892 = vrot.slane %v890, 1
        %v893 = vshll.u32 %v828, 16
        %v895 = vrot.slane %v893, 2
        %v896 = vor.u32 %v892, %v895
        %v897 = vsel %vm829, %v888, %v896
        %v904 = vunpack.c.l.b16 %v691
        %v905 = vunpack.c.h.b16 %v691
        %v906 = vunpack.c.l.b16 %v692
        %v907 = vunpack.c.h.b16 %v692
        %v908 = vpack.c.b16 %v721, %v904
        %v909 = vpack.c.b16 %v722, %v905
        %v910 = vpack.c.b16 %v727, %v906
        %v911 = vpack.c.b16 %v728, %v907
        %vm912 = vcmask 1045504
        %v913 = vrot.slane %v908, 2
        %v914 = vrot.slane %v825, 2
        %v915 = vsel %vm912, %v913, %v914
        %v916 = vrot.slane %v909, 2
        %v917 = vrot.slane %v826, 2
        %v918 = vsel %vm912, %v916, %v917
        %v919 = vrot.slane %v910, 2
        %v920 = vrot.slane %v827, 2
        %v921 = vsel %vm912, %v919, %v920
        %v922 = vrot.slane %v911, 2
        %v923 = vrot.slane %v828, 2
        %v924 = vsel %vm912, %v922, %v923
        %v929 = vld [vmem:[%s380] sm:$0xff]
        %v930 = vld [vmem:[%s380 + $0x8] sm:$0xff]
        %v931 = vld [vmem:[%s380 + $0x10] sm:$0xff]
        %v932 = vld [vmem:[%s380 + $0x18] sm:$0xff]
        %v933 = vld [vmem:[%s380 + $0x20] sm:$0xff]
        %v934 = vld [vmem:[%s380 + $0x28] sm:$0xff]
        %v935 = vld [vmem:[%s380 + $0x30] sm:$0xff]
        %v936 = vld [vmem:[%s380 + $0x38] sm:$0xff]
        %v937 = vld [vmem:[%s380 + $0x40] sm:$0xff]
        %v938 = vld [vmem:[%s380 + $0x48] sm:$0xff]
        %v939 = vld [vmem:[%s380 + $0x50] sm:$0xff]
        %v940 = vld [vmem:[%s380 + $0x58] sm:$0xff]
        %v941 = vld [vmem:[%s380 + $0x60] sm:$0xff]
        %v942 = vld [vmem:[%s380 + $0x68] sm:$0xff]
        %v943 = vld [vmem:[%s380 + $0x70] sm:$0xff]
        %v944 = vld [vmem:[%s380 + $0x78] sm:$0xff]
        %v945 = vld [vmem:[%s380 + $0x80] sm:$0xff]
        %v946 = vld [vmem:[%s380 + $0x88] sm:$0xff]
        %v947 = vld [vmem:[%s380 + $0x90] sm:$0xff]
        %v948 = vld [vmem:[%s380 + $0x98] sm:$0xff]
        %v949 = vld [vmem:[%s380 + $0xa0] sm:$0xff]
        %v950 = vld [vmem:[%s380 + $0xa8] sm:$0xff]
        %v951 = vld [vmem:[%s380 + $0xb0] sm:$0xff]
        %v952 = vld [vmem:[%s380 + $0xb8] sm:$0xff]
        %v953 = vld [vmem:[%s380 + $0xc0] sm:$0xff]
        %v954 = vld [vmem:[%s380 + $0xc8] sm:$0xff]
        %v955 = vld [vmem:[%s380 + $0xd0] sm:$0xff]
        %v956 = vld [vmem:[%s380 + $0xd8] sm:$0xff]
        %v957 = vld [vmem:[%s380 + $0xe0] sm:$0xff]
        %v958 = vld [vmem:[%s380 + $0xe8] sm:$0xff]
        %v959 = vld [vmem:[%s380 + $0xf0] sm:$0xff]
        %v960 = vld [vmem:[%s380 + $0xf8] sm:$0xff]
        %v961 = vld [vmem:[%s380 + $0x100] sm:$0xff]
        %v962 = vld [vmem:[%s380 + $0x108] sm:$0xff]
        %v963 = vld [vmem:[%s380 + $0x110] sm:$0xff]
        %v964 = vld [vmem:[%s380 + $0x118] sm:$0xff]
        %v965 = vld [vmem:[%s380 + $0x120] sm:$0xff]
        %v966 = vld [vmem:[%s380 + $0x128] sm:$0xff]
        %v967 = vld [vmem:[%s380 + $0x130] sm:$0xff]
        %v968 = vld [vmem:[%s380 + $0x138] sm:$0xff]
        %v969 = vld [vmem:[%s380 + $0x140] sm:$0xff]
        %v970 = vld [vmem:[%s380 + $0x148] sm:$0xff]
        %v971 = vld [vmem:[%s380 + $0x150] sm:$0xff]
        %v972 = vld [vmem:[%s380 + $0x158] sm:$0xff]
        %v973 = vld [vmem:[%s380 + $0x160] sm:$0xff]
        %v974 = vld [vmem:[%s380 + $0x168] sm:$0xff]
        %v975 = vld [vmem:[%s380 + $0x170] sm:$0xff]
        %v976 = vld [vmem:[%s380 + $0x178] sm:$0xff]
        %v977 = vld [vmem:[%s380 + $0x180] sm:$0xff]
        %v978 = vld [vmem:[%s380 + $0x188] sm:$0xff]
        %v979 = vld [vmem:[%s380 + $0x190] sm:$0xff]
        %v980 = vld [vmem:[%s380 + $0x198] sm:$0xff]
        %v981 = vld [vmem:[%s380 + $0x1a0] sm:$0xff]
        %v982 = vld [vmem:[%s380 + $0x1a8] sm:$0xff]
        %v983 = vld [vmem:[%s380 + $0x1b0] sm:$0xff]
        %v984 = vld [vmem:[%s380 + $0x1b8] sm:$0xff]
        %v985 = vld [vmem:[%s380 + $0x1c0] sm:$0xff]
        %v986 = vld [vmem:[%s380 + $0x1c8] sm:$0xff]
        %v987 = vld [vmem:[%s380 + $0x1d0] sm:$0xff]
        %v988 = vld [vmem:[%s380 + $0x1d8] sm:$0xff]
        %v989 = vld [vmem:[%s380 + $0x1e0] sm:$0xff]
        %v990 = vld [vmem:[%s380 + $0x1e8] sm:$0xff]
        %v991 = vld [vmem:[%s380 + $0x1f0] sm:$0xff]
        %v992 = vld [vmem:[%s380 + $0x1f8] sm:$0xff]
        %v993 = vld [vmem:[%s380 + $0x200] sm:$0xff]
        %v994 = vld [vmem:[%s380 + $0x208] sm:$0xff]
        %v995 = vld [vmem:[%s380 + $0x210] sm:$0xff]
        %v996 = vld [vmem:[%s380 + $0x218] sm:$0xff]
        %v997 = vld [vmem:[%s380 + $0x220] sm:$0xff]
        %v998 = vld [vmem:[%s380 + $0x228] sm:$0xff]
        %v999 = vld [vmem:[%s380 + $0x230] sm:$0xff]
        %v1000 = vld [vmem:[%s380 + $0x238] sm:$0xff]
        %v1001 = vld [vmem:[%s380 + $0x240] sm:$0xff]
        %v1002 = vld [vmem:[%s380 + $0x248] sm:$0xff]
        %v1003 = vld [vmem:[%s380 + $0x250] sm:$0xff]
        %v1004 = vld [vmem:[%s380 + $0x258] sm:$0xff]
        %v1005 = vld [vmem:[%s380 + $0x260] sm:$0xff]
        %v1006 = vld [vmem:[%s380 + $0x268] sm:$0xff]
        %v1007 = vld [vmem:[%s380 + $0x270] sm:$0xff]
        %v1008 = vld [vmem:[%s380 + $0x278] sm:$0xff]
        %v1009 = vld [vmem:[%s380 + $0x280] sm:$0xff]
        %v1010 = vld [vmem:[%s380 + $0x288] sm:$0xff]
        %v1011 = vld [vmem:[%s380 + $0x290] sm:$0xff]
        %v1012 = vld [vmem:[%s380 + $0x298] sm:$0xff]
        %v1013 = vld [vmem:[%s380 + $0x2a0] sm:$0xff]
        %v1014 = vld [vmem:[%s380 + $0x2a8] sm:$0xff]
        %v1015 = vld [vmem:[%s380 + $0x2b0] sm:$0xff]
        %v1016 = vld [vmem:[%s380 + $0x2b8] sm:$0xff]
        %v1017 = vld [vmem:[%s380 + $0x2c0] sm:$0xff]
        %v1018 = vld [vmem:[%s380 + $0x2c8] sm:$0xff]
        %v1019 = vld [vmem:[%s380 + $0x2d0] sm:$0xff]
        %v1020 = vld [vmem:[%s380 + $0x2d8] sm:$0xff]
        %v1021 = vld [vmem:[%s380 + $0x2e0] sm:$0xff]
        %v1022 = vld [vmem:[%s380 + $0x2e8] sm:$0xff]
        %v1023 = vld [vmem:[%s380 + $0x2f0] sm:$0xff]
        %v1024 = vld [vmem:[%s380 + $0x2f8] sm:$0xff]
        %v1025 = vld [vmem:[%s380 + $0x300] sm:$0xff]
        %v1026 = vld [vmem:[%s380 + $0x308] sm:$0xff]
        %v1027 = vld [vmem:[%s380 + $0x310] sm:$0xff]
        %v1028 = vld [vmem:[%s380 + $0x318] sm:$0xff]
        %v1029 = vld [vmem:[%s380 + $0x320] sm:$0xff]
        %v1030 = vld [vmem:[%s380 + $0x328] sm:$0xff]
        %v1031 = vld [vmem:[%s380 + $0x330] sm:$0xff]
        %v1032 = vld [vmem:[%s380 + $0x338] sm:$0xff]
        %v1033 = vld [vmem:[%s380 + $0x340] sm:$0xff]
        %v1034 = vld [vmem:[%s380 + $0x348] sm:$0xff]
        %v1035 = vld [vmem:[%s380 + $0x350] sm:$0xff]
        %v1036 = vld [vmem:[%s380 + $0x358] sm:$0xff]
        %v1037 = vld [vmem:[%s380 + $0x360] sm:$0xff]
        %v1038 = vld [vmem:[%s380 + $0x368] sm:$0xff]
        %v1039 = vld [vmem:[%s380 + $0x370] sm:$0xff]
        %v1040 = vld [vmem:[%s380 + $0x378] sm:$0xff]
        %v1041 = vld [vmem:[%s380 + $0x380] sm:$0xff]
        %v1042 = vld [vmem:[%s380 + $0x388] sm:$0xff]
        %v1043 = vld [vmem:[%s380 + $0x390] sm:$0xff]
        %v1044 = vld [vmem:[%s380 + $0x398] sm:$0xff]
        %v1045 = vld [vmem:[%s380 + $0x3a0] sm:$0xff]
        %v1046 = vld [vmem:[%s380 + $0x3a8] sm:$0xff]
        %v1047 = vld [vmem:[%s380 + $0x3b0] sm:$0xff]
        %v1048 = vld [vmem:[%s380 + $0x3b8] sm:$0xff]
        %v1049 = vld [vmem:[%s380 + $0x3c0] sm:$0xff]
        %v1050 = vld [vmem:[%s380 + $0x3c8] sm:$0xff]
        %v1051 = vld [vmem:[%s380 + $0x3d0] sm:$0xff]
        %v1052 = vld [vmem:[%s380 + $0x3d8] sm:$0xff]
        %v1053 = vld [vmem:[%s380 + $0x3e0] sm:$0xff]
        %v1054 = vld [vmem:[%s380 + $0x3e8] sm:$0xff]
        %v1055 = vld [vmem:[%s380 + $0x3f0] sm:$0xff]
        %v1056 = vld [vmem:[%s380 + $0x3f8] sm:$0xff]
        %v1057 = vld [vmem:[%s380 + $0x400] sm:$0xff]
        %v1058 = vld [vmem:[%s380 + $0x408] sm:$0xff]
        %v1059 = vld [vmem:[%s380 + $0x410] sm:$0xff]
        %v1060 = vld [vmem:[%s380 + $0x418] sm:$0xff]
        %v1061 = vld [vmem:[%s380 + $0x420] sm:$0xff]
        %v1062 = vld [vmem:[%s380 + $0x428] sm:$0xff]
        %v1063 = vld [vmem:[%s380 + $0x430] sm:$0xff]
        %v1064 = vld [vmem:[%s380 + $0x438] sm:$0xff]
        %v1065 = vld [vmem:[%s380 + $0x440] sm:$0xff]
        %v1066 = vld [vmem:[%s380 + $0x448] sm:$0xff]
        %v1067 = vld [vmem:[%s380 + $0x450] sm:$0xff]
        %v1068 = vld [vmem:[%s380 + $0x458] sm:$0xff]
        %v1069 = vld [vmem:[%s380 + $0x460] sm:$0xff]
        %v1070 = vld [vmem:[%s380 + $0x468] sm:$0xff]
        %v1071 = vld [vmem:[%s380 + $0x470] sm:$0xff]
        %v1072 = vld [vmem:[%s380 + $0x478] sm:$0xff]
        %v1073 = vld [vmem:[%s380 + $0x480] sm:$0xff]
        %v1074 = vld [vmem:[%s380 + $0x488] sm:$0xff]
        %v1075 = vld [vmem:[%s380 + $0x490] sm:$0xff]
        %v1076 = vld [vmem:[%s380 + $0x498] sm:$0xff]
        %v1077 = vld [vmem:[%s380 + $0x4a0] sm:$0xff]
        %v1078 = vld [vmem:[%s380 + $0x4a8] sm:$0xff]
        %v1079 = vld [vmem:[%s380 + $0x4b0] sm:$0xff]
        %v1080 = vld [vmem:[%s380 + $0x4b8] sm:$0xff]
        %v1081 = vld [vmem:[%s380 + $0x4c0] sm:$0xff]
        %v1082 = vld [vmem:[%s380 + $0x4c8] sm:$0xff]
        %v1083 = vld [vmem:[%s380 + $0x4d0] sm:$0xff]
        %v1084 = vld [vmem:[%s380 + $0x4d8] sm:$0xff]
        %v1085 = vld [vmem:[%s380 + $0x4e0] sm:$0xff]
        %v1086 = vld [vmem:[%s380 + $0x4e8] sm:$0xff]
        %v1087 = vld [vmem:[%s380 + $0x4f0] sm:$0xff]
        %v1088 = vld [vmem:[%s380 + $0x4f8] sm:$0xff]
        %v1249 = vunpack.c.l.b16 %v929
        %v1250 = vunpack.c.h.b16 %v929
        %v1251 = vunpack.c.l.b16 %v930
        %v1252 = vunpack.c.h.b16 %v930
        %v1253 = vunpack.c.l.b16 %v931
        %v1254 = vunpack.c.h.b16 %v931
        %v1255 = vunpack.c.l.b16 %v932
        %v1256 = vunpack.c.h.b16 %v932
        %v1257 = vunpack.c.l.b16 %v933
        %v1258 = vunpack.c.h.b16 %v933
        %v1259 = vunpack.c.l.b16 %v934
        %v1260 = vunpack.c.h.b16 %v934
        %v1261 = vunpack.c.l.b16 %v935
        %v1262 = vunpack.c.h.b16 %v935
        %v1263 = vunpack.c.l.b16 %v936
        %v1264 = vunpack.c.h.b16 %v936
        %v1265 = vunpack.c.l.b16 %v937
        %v1266 = vunpack.c.h.b16 %v937
        %v1267 = vunpack.c.l.b16 %v938
        %v1268 = vunpack.c.h.b16 %v938
        %v1269 = vunpack.c.l.b16 %v939
        %v1270 = vunpack.c.h.b16 %v939
        %v1271 = vunpack.c.l.b16 %v940
        %v1272 = vunpack.c.h.b16 %v940
        %v1273 = vunpack.c.l.b16 %v941
        %v1274 = vunpack.c.h.b16 %v941
        %v1275 = vunpack.c.l.b16 %v942
        %v1276 = vunpack.c.h.b16 %v942
        %v1277 = vunpack.c.l.b16 %v943
        %v1278 = vunpack.c.h.b16 %v943
        %v1279 = vunpack.c.l.b16 %v944
        %v1280 = vunpack.c.h.b16 %v944
        %v1281 = vunpack.c.l.b16 %v945
        %v1282 = vunpack.c.h.b16 %v945
        %v1283 = vunpack.c.l.b16 %v946
        %v1284 = vunpack.c.h.b16 %v946
        %v1285 = vunpack.c.l.b16 %v947
        %v1286 = vunpack.c.h.b16 %v947
        %v1287 = vunpack.c.l.b16 %v948
        %v1288 = vunpack.c.h.b16 %v948
        %v1289 = vunpack.c.l.b16 %v949
        %v1290 = vunpack.c.h.b16 %v949
        %v1291 = vunpack.c.l.b16 %v950
        %v1292 = vunpack.c.h.b16 %v950
        %v1293 = vunpack.c.l.b16 %v951
        %v1294 = vunpack.c.h.b16 %v951
        %v1295 = vunpack.c.l.b16 %v952
        %v1296 = vunpack.c.h.b16 %v952
        %v1297 = vunpack.c.l.b16 %v953
        %v1298 = vunpack.c.h.b16 %v953
        %v1299 = vunpack.c.l.b16 %v954
        %v1300 = vunpack.c.h.b16 %v954
        %v1301 = vunpack.c.l.b16 %v955
        %v1302 = vunpack.c.h.b16 %v955
        %v1303 = vunpack.c.l.b16 %v956
        %v1304 = vunpack.c.h.b16 %v956
        %v1305 = vunpack.c.l.b16 %v957
        %v1306 = vunpack.c.h.b16 %v957
        %v1307 = vunpack.c.l.b16 %v958
        %v1308 = vunpack.c.h.b16 %v958
        %v1309 = vunpack.c.l.b16 %v959
        %v1310 = vunpack.c.h.b16 %v959
        %v1311 = vunpack.c.l.b16 %v960
        %v1312 = vunpack.c.h.b16 %v960
        %v1313 = vunpack.c.l.b16 %v961
        %v1314 = vunpack.c.h.b16 %v961
        %v1315 = vunpack.c.l.b16 %v962
        %v1316 = vunpack.c.h.b16 %v962
        %v1317 = vunpack.c.l.b16 %v963
        %v1318 = vunpack.c.h.b16 %v963
        %v1319 = vunpack.c.l.b16 %v964
        %v1320 = vunpack.c.h.b16 %v964
        %v1321 = vunpack.c.l.b16 %v965
        %v1322 = vunpack.c.h.b16 %v965
        %v1323 = vunpack.c.l.b16 %v966
        %v1324 = vunpack.c.h.b16 %v966
        %v1325 = vunpack.c.l.b16 %v967
        %v1326 = vunpack.c.h.b16 %v967
        %v1327 = vunpack.c.l.b16 %v968
        %v1328 = vunpack.c.h.b16 %v968
        %v1329 = vunpack.c.l.b16 %v969
        %v1330 = vunpack.c.h.b16 %v969
        %v1331 = vunpack.c.l.b16 %v970
        %v1332 = vunpack.c.h.b16 %v970
        %v1333 = vunpack.c.l.b16 %v971
        %v1334 = vunpack.c.h.b16 %v971
        %v1335 = vunpack.c.l.b16 %v972
        %v1336 = vunpack.c.h.b16 %v972
        %v1337 = vunpack.c.l.b16 %v973
        %v1338 = vunpack.c.h.b16 %v973
        %v1339 = vunpack.c.l.b16 %v974
        %v1340 = vunpack.c.h.b16 %v974
        %v1341 = vunpack.c.l.b16 %v975
        %v1342 = vunpack.c.h.b16 %v975
        %v1343 = vunpack.c.l.b16 %v976
        %v1344 = vunpack.c.h.b16 %v976
        %v1345 = vunpack.c.l.b16 %v977
        %v1346 = vunpack.c.h.b16 %v977
        %v1347 = vunpack.c.l.b16 %v978
        %v1348 = vunpack.c.h.b16 %v978
        %v1349 = vunpack.c.l.b16 %v979
        %v1350 = vunpack.c.h.b16 %v979
        %v1351 = vunpack.c.l.b16 %v980
        %v1352 = vunpack.c.h.b16 %v980
        %v1353 = vunpack.c.l.b16 %v981
        %v1354 = vunpack.c.h.b16 %v981
        %v1355 = vunpack.c.l.b16 %v982
        %v1356 = vunpack.c.h.b16 %v982
        %v1357 = vunpack.c.l.b16 %v983
        %v1358 = vunpack.c.h.b16 %v983
        %v1359 = vunpack.c.l.b16 %v984
        %v1360 = vunpack.c.h.b16 %v984
        %v1361 = vunpack.c.l.b16 %v985
        %v1362 = vunpack.c.h.b16 %v985
        %v1363 = vunpack.c.l.b16 %v986
        %v1364 = vunpack.c.h.b16 %v986
        %v1365 = vunpack.c.l.b16 %v987
        %v1366 = vunpack.c.h.b16 %v987
        %v1367 = vunpack.c.l.b16 %v988
        %v1368 = vunpack.c.h.b16 %v988
        %v1369 = vunpack.c.l.b16 %v989
        %v1370 = vunpack.c.h.b16 %v989
        %v1371 = vunpack.c.l.b16 %v990
        %v1372 = vunpack.c.h.b16 %v990
        %v1373 = vunpack.c.l.b16 %v991
        %v1374 = vunpack.c.h.b16 %v991
        %v1375 = vunpack.c.l.b16 %v992
        %v1376 = vunpack.c.h.b16 %v992
        %v1377 = vunpack.c.l.b16 %v993
        %v1378 = vunpack.c.h.b16 %v993
        %v1379 = vunpack.c.l.b16 %v994
        %v1380 = vunpack.c.h.b16 %v994
        %v1381 = vunpack.c.l.b16 %v995
        %v1382 = vunpack.c.h.b16 %v995
        %v1383 = vunpack.c.l.b16 %v996
        %v1384 = vunpack.c.h.b16 %v996
        %v1385 = vunpack.c.l.b16 %v997
        %v1386 = vunpack.c.h.b16 %v997
        %v1387 = vunpack.c.l.b16 %v998
        %v1388 = vunpack.c.h.b16 %v998
        %v1389 = vunpack.c.l.b16 %v999
        %v1390 = vunpack.c.h.b16 %v999
        %v1391 = vunpack.c.l.b16 %v1000
        %v1392 = vunpack.c.h.b16 %v1000
        %v1393 = vunpack.c.l.b16 %v1001
        %v1394 = vunpack.c.h.b16 %v1001
        %v1395 = vunpack.c.l.b16 %v1002
        %v1396 = vunpack.c.h.b16 %v1002
        %v1397 = vunpack.c.l.b16 %v1003
        %v1398 = vunpack.c.h.b16 %v1003
        %v1399 = vunpack.c.l.b16 %v1004
        %v1400 = vunpack.c.h.b16 %v1004
        %v1401 = vunpack.c.l.b16 %v1005
        %v1402 = vunpack.c.h.b16 %v1005
        %v1403 = vunpack.c.l.b16 %v1006
        %v1404 = vunpack.c.h.b16 %v1006
        %v1405 = vunpack.c.l.b16 %v1007
        %v1406 = vunpack.c.h.b16 %v1007
        %v1407 = vunpack.c.l.b16 %v1008
        %v1408 = vunpack.c.h.b16 %v1008
        %v1409 = vunpack.c.l.b16 %v1009
        %v1410 = vunpack.c.h.b16 %v1009
        %v1411 = vunpack.c.l.b16 %v1010
        %v1412 = vunpack.c.h.b16 %v1010
        %v1413 = vunpack.c.l.b16 %v1011
        %v1414 = vunpack.c.h.b16 %v1011
        %v1415 = vunpack.c.l.b16 %v1012
        %v1416 = vunpack.c.h.b16 %v1012
        %v1417 = vunpack.c.l.b16 %v1013
        %v1418 = vunpack.c.h.b16 %v1013
        %v1419 = vunpack.c.l.b16 %v1014
        %v1420 = vunpack.c.h.b16 %v1014
        %v1421 = vunpack.c.l.b16 %v1015
        %v1422 = vunpack.c.h.b16 %v1015
        %v1423 = vunpack.c.l.b16 %v1016
        %v1424 = vunpack.c.h.b16 %v1016
        %v1425 = vunpack.c.l.b16 %v1017
        %v1426 = vunpack.c.h.b16 %v1017
        %v1427 = vunpack.c.l.b16 %v1018
        %v1428 = vunpack.c.h.b16 %v1018
        %v1429 = vunpack.c.l.b16 %v1019
        %v1430 = vunpack.c.h.b16 %v1019
        %v1431 = vunpack.c.l.b16 %v1020
        %v1432 = vunpack.c.h.b16 %v1020
        %v1433 = vunpack.c.l.b16 %v1021
        %v1434 = vunpack.c.h.b16 %v1021
        %v1435 = vunpack.c.l.b16 %v1022
        %v1436 = vunpack.c.h.b16 %v1022
        %v1437 = vunpack.c.l.b16 %v1023
        %v1438 = vunpack.c.h.b16 %v1023
        %v1439 = vunpack.c.l.b16 %v1024
        %v1440 = vunpack.c.h.b16 %v1024
        %v1441 = vunpack.c.l.b16 %v1025
        %v1442 = vunpack.c.h.b16 %v1025
        %v1443 = vunpack.c.l.b16 %v1026
        %v1444 = vunpack.c.h.b16 %v1026
        %v1445 = vunpack.c.l.b16 %v1027
        %v1446 = vunpack.c.h.b16 %v1027
        %v1447 = vunpack.c.l.b16 %v1028
        %v1448 = vunpack.c.h.b16 %v1028
        %v1449 = vunpack.c.l.b16 %v1029
        %v1450 = vunpack.c.h.b16 %v1029
        %v1451 = vunpack.c.l.b16 %v1030
        %v1452 = vunpack.c.h.b16 %v1030
        %v1453 = vunpack.c.l.b16 %v1031
        %v1454 = vunpack.c.h.b16 %v1031
        %v1455 = vunpack.c.l.b16 %v1032
        %v1456 = vunpack.c.h.b16 %v1032
        %v1457 = vunpack.c.l.b16 %v1033
        %v1458 = vunpack.c.h.b16 %v1033
        %v1459 = vunpack.c.l.b16 %v1034
        %v1460 = vunpack.c.h.b16 %v1034
        %v1461 = vunpack.c.l.b16 %v1035
        %v1462 = vunpack.c.h.b16 %v1035
        %v1463 = vunpack.c.l.b16 %v1036
        %v1464 = vunpack.c.h.b16 %v1036
        %v1465 = vunpack.c.l.b16 %v1037
        %v1466 = vunpack.c.h.b16 %v1037
        %v1467 = vunpack.c.l.b16 %v1038
        %v1468 = vunpack.c.h.b16 %v1038
        %v1469 = vunpack.c.l.b16 %v1039
        %v1470 = vunpack.c.h.b16 %v1039
        %v1471 = vunpack.c.l.b16 %v1040
        %v1472 = vunpack.c.h.b16 %v1040
        %v1473 = vunpack.c.l.b16 %v1041
        %v1474 = vunpack.c.h.b16 %v1041
        %v1475 = vunpack.c.l.b16 %v1042
        %v1476 = vunpack.c.h.b16 %v1042
        %v1477 = vunpack.c.l.b16 %v1043
        %v1478 = vunpack.c.h.b16 %v1043
        %v1479 = vunpack.c.l.b16 %v1044
        %v1480 = vunpack.c.h.b16 %v1044
        %v1481 = vunpack.c.l.b16 %v1045
        %v1482 = vunpack.c.h.b16 %v1045
        %v1483 = vunpack.c.l.b16 %v1046
        %v1484 = vunpack.c.h.b16 %v1046
        %v1485 = vunpack.c.l.b16 %v1047
        %v1486 = vunpack.c.h.b16 %v1047
        %v1487 = vunpack.c.l.b16 %v1048
        %v1488 = vunpack.c.h.b16 %v1048
        %v1489 = vunpack.c.l.b16 %v1049
        %v1490 = vunpack.c.h.b16 %v1049
        %v1491 = vunpack.c.l.b16 %v1050
        %v1492 = vunpack.c.h.b16 %v1050
        %v1493 = vunpack.c.l.b16 %v1051
        %v1494 = vunpack.c.h.b16 %v1051
        %v1495 = vunpack.c.l.b16 %v1052
        %v1496 = vunpack.c.h.b16 %v1052
        %v1497 = vunpack.c.l.b16 %v1053
        %v1498 = vunpack.c.h.b16 %v1053
        %v1499 = vunpack.c.l.b16 %v1054
        %v1500 = vunpack.c.h.b16 %v1054
        %v1501 = vunpack.c.l.b16 %v1055
        %v1502 = vunpack.c.h.b16 %v1055
        %v1503 = vunpack.c.l.b16 %v1056
        %v1504 = vunpack.c.h.b16 %v1056
        %v1505 = vunpack.c.l.b16 %v1057
        %v1506 = vunpack.c.h.b16 %v1057
        %v1507 = vunpack.c.l.b16 %v1058
        %v1508 = vunpack.c.h.b16 %v1058
        %v1509 = vunpack.c.l.b16 %v1059
        %v1510 = vunpack.c.h.b16 %v1059
        %v1511 = vunpack.c.l.b16 %v1060
        %v1512 = vunpack.c.h.b16 %v1060
        %v1513 = vunpack.c.l.b16 %v1061
        %v1514 = vunpack.c.h.b16 %v1061
        %v1515 = vunpack.c.l.b16 %v1062
        %v1516 = vunpack.c.h.b16 %v1062
        %v1517 = vunpack.c.l.b16 %v1063
        %v1518 = vunpack.c.h.b16 %v1063
        %v1519 = vunpack.c.l.b16 %v1064
        %v1520 = vunpack.c.h.b16 %v1064
        %v1521 = vunpack.c.l.b16 %v1065
        %v1522 = vunpack.c.h.b16 %v1065
        %v1523 = vunpack.c.l.b16 %v1066
        %v1524 = vunpack.c.h.b16 %v1066
        %v1525 = vunpack.c.l.b16 %v1067
        %v1526 = vunpack.c.h.b16 %v1067
        %v1527 = vunpack.c.l.b16 %v1068
        %v1528 = vunpack.c.h.b16 %v1068
        %v1529 = vunpack.c.l.b16 %v1069
        %v1530 = vunpack.c.h.b16 %v1069
        %v1531 = vunpack.c.l.b16 %v1070
        %v1532 = vunpack.c.h.b16 %v1070
        %v1533 = vunpack.c.l.b16 %v1071
        %v1534 = vunpack.c.h.b16 %v1071
        %v1535 = vunpack.c.l.b16 %v1072
        %v1536 = vunpack.c.h.b16 %v1072
        %v1537 = vunpack.c.l.b16 %v1073
        %v1538 = vunpack.c.h.b16 %v1073
        %v1539 = vunpack.c.l.b16 %v1074
        %v1540 = vunpack.c.h.b16 %v1074
        %v1541 = vunpack.c.l.b16 %v1075
        %v1542 = vunpack.c.h.b16 %v1075
        %v1543 = vunpack.c.l.b16 %v1076
        %v1544 = vunpack.c.h.b16 %v1076
        %v1545 = vunpack.c.l.b16 %v1077
        %v1546 = vunpack.c.h.b16 %v1077
        %v1547 = vunpack.c.l.b16 %v1078
        %v1548 = vunpack.c.h.b16 %v1078
        %v1549 = vunpack.c.l.b16 %v1079
        %v1550 = vunpack.c.h.b16 %v1079
        %v1551 = vunpack.c.l.b16 %v1080
        %v1552 = vunpack.c.h.b16 %v1080
        %v1553 = vunpack.c.l.b16 %v1081
        %v1554 = vunpack.c.h.b16 %v1081
        %v1555 = vunpack.c.l.b16 %v1082
        %v1556 = vunpack.c.h.b16 %v1082
        %v1557 = vunpack.c.l.b16 %v1083
        %v1558 = vunpack.c.h.b16 %v1083
        %v1559 = vunpack.c.l.b16 %v1084
        %v1560 = vunpack.c.h.b16 %v1084
        %v1561 = vunpack.c.l.b16 %v1085
        %v1562 = vunpack.c.h.b16 %v1085
        %v1563 = vunpack.c.l.b16 %v1086
        %v1564 = vunpack.c.h.b16 %v1086
        %v1565 = vunpack.c.l.b16 %v1087
        %v1566 = vunpack.c.h.b16 %v1087
        %v1567 = vunpack.c.l.b16 %v1088
        %v1568 = vunpack.c.h.b16 %v1088
        %v1569 = vpack.c.b16 %v1251, %v1249
        %v1570 = vpack.c.b16 %v1252, %v1250
        %v1571 = vpack.c.b16 %v1255, %v1253
        %v1572 = vpack.c.b16 %v1256, %v1254
        %v1573 = vpack.c.b16 %v1259, %v1257
        %v1574 = vpack.c.b16 %v1260, %v1258
        %v1575 = vpack.c.b16 %v1263, %v1261
        %v1576 = vpack.c.b16 %v1264, %v1262
        %v1577 = vpack.c.b16 %v1267, %v1265
        %v1578 = vpack.c.b16 %v1268, %v1266
        %v1579 = vpack.c.b16 %v1271, %v1269
        %v1580 = vpack.c.b16 %v1272, %v1270
        %v1581 = vpack.c.b16 %v1275, %v1273
        %v1582 = vpack.c.b16 %v1276, %v1274
        %v1583 = vpack.c.b16 %v1279, %v1277
        %v1584 = vpack.c.b16 %v1280, %v1278
        %v1585 = vpack.c.b16 %v1283, %v1281
        %v1586 = vpack.c.b16 %v1284, %v1282
        %v1587 = vpack.c.b16 %v1287, %v1285
        %v1588 = vpack.c.b16 %v1288, %v1286
        %v1589 = vpack.c.b16 %v1291, %v1289
        %v1590 = vpack.c.b16 %v1292, %v1290
        %v1591 = vpack.c.b16 %v1295, %v1293
        %v1592 = vpack.c.b16 %v1296, %v1294
        %v1593 = vpack.c.b16 %v1299, %v1297
        %v1594 = vpack.c.b16 %v1300, %v1298
        %v1595 = vpack.c.b16 %v1303, %v1301
        %v1596 = vpack.c.b16 %v1304, %v1302
        %v1597 = vpack.c.b16 %v1307, %v1305
        %v1598 = vpack.c.b16 %v1308, %v1306
        %v1599 = vpack.c.b16 %v1311, %v1309
        %v1600 = vpack.c.b16 %v1312, %v1310
        %v1601 = vpack.c.b16 %v1315, %v1313
        %v1602 = vpack.c.b16 %v1316, %v1314
        %v1603 = vpack.c.b16 %v1319, %v1317
        %v1604 = vpack.c.b16 %v1320, %v1318
        %v1605 = vpack.c.b16 %v1323, %v1321
        %v1606 = vpack.c.b16 %v1324, %v1322
        %v1607 = vpack.c.b16 %v1327, %v1325
        %v1608 = vpack.c.b16 %v1328, %v1326
        %v1609 = vpack.c.b16 %v1331, %v1329
        %v1610 = vpack.c.b16 %v1332, %v1330
        %v1611 = vpack.c.b16 %v1335, %v1333
        %v1612 = vpack.c.b16 %v1336, %v1334
        %v1613 = vpack.c.b16 %v1339, %v1337
        %v1614 = vpack.c.b16 %v1340, %v1338
        %v1615 = vpack.c.b16 %v1343, %v1341
        %v1616 = vpack.c.b16 %v1344, %v1342
        %v1617 = vpack.c.b16 %v1347, %v1345
        %v1618 = vpack.c.b16 %v1348, %v1346
        %v1619 = vpack.c.b16 %v1351, %v1349
        %v1620 = vpack.c.b16 %v1352, %v1350
        %v1621 = vpack.c.b16 %v1355, %v1353
        %v1622 = vpack.c.b16 %v1356, %v1354
        %v1623 = vpack.c.b16 %v1359, %v1357
        %v1624 = vpack.c.b16 %v1360, %v1358
        %v1625 = vpack.c.b16 %v1363, %v1361
        %v1626 = vpack.c.b16 %v1364, %v1362
        %v1627 = vpack.c.b16 %v1367, %v1365
        %v1628 = vpack.c.b16 %v1368, %v1366
        %v1629 = vpack.c.b16 %v1371, %v1369
        %v1630 = vpack.c.b16 %v1372, %v1370
        %v1631 = vpack.c.b16 %v1375, %v1373
        %v1632 = vpack.c.b16 %v1376, %v1374
        %v1633 = vpack.c.b16 %v1379, %v1377
        %v1634 = vpack.c.b16 %v1380, %v1378
        %v1635 = vpack.c.b16 %v1383, %v1381
        %v1636 = vpack.c.b16 %v1384, %v1382
        %v1637 = vpack.c.b16 %v1387, %v1385
        %v1638 = vpack.c.b16 %v1388, %v1386
        %v1639 = vpack.c.b16 %v1391, %v1389
        %v1640 = vpack.c.b16 %v1392, %v1390
        %v1641 = vpack.c.b16 %v1395, %v1393
        %v1642 = vpack.c.b16 %v1396, %v1394
        %v1643 = vpack.c.b16 %v1399, %v1397
        %v1644 = vpack.c.b16 %v1400, %v1398
        %v1645 = vpack.c.b16 %v1403, %v1401
        %v1646 = vpack.c.b16 %v1404, %v1402
        %v1647 = vpack.c.b16 %v1407, %v1405
        %v1648 = vpack.c.b16 %v1408, %v1406
        %v1649 = vpack.c.b16 %v1411, %v1409
        %v1650 = vpack.c.b16 %v1412, %v1410
        %v1651 = vpack.c.b16 %v1415, %v1413
        %v1652 = vpack.c.b16 %v1416, %v1414
        %v1653 = vpack.c.b16 %v1419, %v1417
        %v1654 = vpack.c.b16 %v1420, %v1418
        %v1655 = vpack.c.b16 %v1423, %v1421
        %v1656 = vpack.c.b16 %v1424, %v1422
        %v1657 = vpack.c.b16 %v1427, %v1425
        %v1658 = vpack.c.b16 %v1428, %v1426
        %v1659 = vpack.c.b16 %v1431, %v1429
        %v1660 = vpack.c.b16 %v1432, %v1430
        %v1661 = vpack.c.b16 %v1435, %v1433
        %v1662 = vpack.c.b16 %v1436, %v1434
        %v1663 = vpack.c.b16 %v1439, %v1437
        %v1664 = vpack.c.b16 %v1440, %v1438
        %v1665 = vpack.c.b16 %v1443, %v1441
        %v1666 = vpack.c.b16 %v1444, %v1442
        %v1667 = vpack.c.b16 %v1447, %v1445
        %v1668 = vpack.c.b16 %v1448, %v1446
        %v1669 = vpack.c.b16 %v1451, %v1449
        %v1670 = vpack.c.b16 %v1452, %v1450
        %v1671 = vpack.c.b16 %v1455, %v1453
        %v1672 = vpack.c.b16 %v1456, %v1454
        %v1673 = vpack.c.b16 %v1459, %v1457
        %v1674 = vpack.c.b16 %v1460, %v1458
        %v1675 = vpack.c.b16 %v1463, %v1461
        %v1676 = vpack.c.b16 %v1464, %v1462
        %v1677 = vpack.c.b16 %v1467, %v1465
        %v1678 = vpack.c.b16 %v1468, %v1466
        %v1679 = vpack.c.b16 %v1471, %v1469
        %v1680 = vpack.c.b16 %v1472, %v1470
        %v1681 = vpack.c.b16 %v1475, %v1473
        %v1682 = vpack.c.b16 %v1476, %v1474
        %v1683 = vpack.c.b16 %v1479, %v1477
        %v1684 = vpack.c.b16 %v1480, %v1478
        %v1685 = vpack.c.b16 %v1483, %v1481
        %v1686 = vpack.c.b16 %v1484, %v1482
        %v1687 = vpack.c.b16 %v1487, %v1485
        %v1688 = vpack.c.b16 %v1488, %v1486
        %v1689 = vpack.c.b16 %v1491, %v1489
        %v1690 = vpack.c.b16 %v1492, %v1490
        %v1691 = vpack.c.b16 %v1495, %v1493
        %v1692 = vpack.c.b16 %v1496, %v1494
        %v1693 = vpack.c.b16 %v1499, %v1497
        %v1694 = vpack.c.b16 %v1500, %v1498
        %v1695 = vpack.c.b16 %v1503, %v1501
        %v1696 = vpack.c.b16 %v1504, %v1502
        %v1697 = vpack.c.b16 %v1507, %v1505
        %v1698 = vpack.c.b16 %v1508, %v1506
        %v1699 = vpack.c.b16 %v1511, %v1509
        %v1700 = vpack.c.b16 %v1512, %v1510
        %v1701 = vpack.c.b16 %v1515, %v1513
        %v1702 = vpack.c.b16 %v1516, %v1514
        %v1703 = vpack.c.b16 %v1519, %v1517
        %v1704 = vpack.c.b16 %v1520, %v1518
        %v1705 = vpack.c.b16 %v1523, %v1521
        %v1706 = vpack.c.b16 %v1524, %v1522
        %v1707 = vpack.c.b16 %v1527, %v1525
        %v1708 = vpack.c.b16 %v1528, %v1526
        %v1709 = vpack.c.b16 %v1531, %v1529
        %v1710 = vpack.c.b16 %v1532, %v1530
        %v1711 = vpack.c.b16 %v1535, %v1533
        %v1712 = vpack.c.b16 %v1536, %v1534
        %v1713 = vpack.c.b16 %v1539, %v1537
        %v1714 = vpack.c.b16 %v1540, %v1538
        %v1715 = vpack.c.b16 %v1543, %v1541
        %v1716 = vpack.c.b16 %v1544, %v1542
        %v1717 = vpack.c.b16 %v1547, %v1545
        %v1718 = vpack.c.b16 %v1548, %v1546
        %v1719 = vpack.c.b16 %v1551, %v1549
        %v1720 = vpack.c.b16 %v1552, %v1550
        %v1721 = vpack.c.b16 %v1555, %v1553
        %v1722 = vpack.c.b16 %v1556, %v1554
        %v1723 = vpack.c.b16 %v1559, %v1557
        %v1724 = vpack.c.b16 %v1560, %v1558
        %v1725 = vpack.c.b16 %v1563, %v1561
        %v1726 = vpack.c.b16 %v1564, %v1562
        %v1727 = vpack.c.b16 %v1567, %v1565
        %v1728 = vpack.c.b16 %v1568, %v1566
        %1889 = vmatpush.bf16.msra.mxu0 %v1583
        %1890 = vmatpush.bf16.msra.mxu0 %v1581
        %1891 = vmatpush.bf16.msra.mxu0 %v1579
        %1892 = vmatpush.bf16.msra.mxu0 %v1577
        %1893 = vmatpush.bf16.msra.mxu0 %v1575
        %1894 = vmatpush.bf16.msra.mxu0 %v1573
        %1895 = vmatpush.bf16.msra.mxu0 %v1571
        %1896 = vmatpush.bf16.msra.mxu0 %v1569
        %1897 = vmatmul.bf16.gmra.mxu0 %v705
        %v1898 = vpop.f32.mrf.mxu0
        %v1899 = vadd.f32 0.0, %v1898
        %v1900 = vpop.f32.mrf.mxu0
        %v1901 = vadd.f32 0.0, %v1900
        %1902 = vmatmul.bf16.gmra.mxu0 %v707
        %v1903 = vpop.f32.mrf.mxu0
        %v1904 = vadd.f32 0.0, %v1903
        %v1905 = vpop.f32.mrf.mxu0
        %v1906 = vadd.f32 0.0, %v1905
        %1907 = vdwg.mxu0
        %1908 = vmatpush.bf16.msra.mxu0 %v1599
        %1909 = vmatpush.bf16.msra.mxu0 %v1597
        %1910 = vmatpush.bf16.msra.mxu0 %v1595
        %1911 = vmatpush.bf16.msra.mxu0 %v1593
        %1912 = vmatpush.bf16.msra.mxu0 %v1591
        %1913 = vmatpush.bf16.msra.mxu0 %v1589
        %1914 = vmatpush.bf16.msra.mxu0 %v1587
        %1915 = vmatpush.bf16.msra.mxu0 %v1585
        %1916 = vmatmul.bf16.gmra.mxu0 %v706
        %v1917 = vpop.f32.mrf.mxu0
        %v1918 = vadd.f32 %v1899, %v1917
        %v1919 = vpop.f32.mrf.mxu0
        %v1920 = vadd.f32 %v1901, %v1919
        %1921 = vmatmul.bf16.gmra.mxu0 %v708
        %v1922 = vpop.f32.mrf.mxu0
        %v1923 = vadd.f32 %v1904, %v1922
        %v1924 = vpop.f32.mrf.mxu0
        %v1925 = vadd.f32 %v1906, %v1924
        %1926 = vdwg.mxu0
        %1927 = vmatpush.bf16.msra.mxu0 %v1615
        %1928 = vmatpush.bf16.msra.mxu0 %v1613
        %1929 = vmatpush.bf16.msra.mxu0 %v1611
        %1930 = vmatpush.bf16.msra.mxu0 %v1609
        %1931 = vmatpush.bf16.msra.mxu0 %v1607
        %1932 = vmatpush.bf16.msra.mxu0 %v1605
        %1933 = vmatpush.bf16.msra.mxu0 %v1603
        %1934 = vmatpush.bf16.msra.mxu0 %v1601
        %1935 = vmatmul.bf16.gmra.mxu0 %v751
        %v1936 = vpop.f32.mrf.mxu0
        %v1937 = vadd.f32 %v1918, %v1936
        %v1938 = vpop.f32.mrf.mxu0
        %v1939 = vadd.f32 %v1920, %v1938
        %1940 = vmatmul.bf16.gmra.mxu0 %v775
        %v1941 = vpop.f32.mrf.mxu0
        %v1942 = vadd.f32 %v1923, %v1941
        %v1943 = vpop.f32.mrf.mxu0
        %v1944 = vadd.f32 %v1925, %v1943
        %1945 = vdwg.mxu0
        %1946 = vmatpush.bf16.msra.mxu0 %v1631
        %1947 = vmatpush.bf16.msra.mxu0 %v1629
        %1948 = vmatpush.bf16.msra.mxu0 %v1627
        %1949 = vmatpush.bf16.msra.mxu0 %v1625
        %1950 = vmatpush.bf16.msra.mxu0 %v1623
        %1951 = vmatpush.bf16.msra.mxu0 %v1621
        %1952 = vmatpush.bf16.msra.mxu0 %v1619
        %1953 = vmatpush.bf16.msra.mxu0 %v1617
        %1954 = vmatmul.bf16.gmra.mxu0 %v763
        %v1955 = vpop.f32.mrf.mxu0
        %v1956 = vadd.f32 %v1937, %v1955
        %v1957 = vpop.f32.mrf.mxu0
        %v1958 = vadd.f32 %v1939, %v1957
        %1959 = vmatmul.bf16.gmra.mxu0 %v787
        %v1960 = vpop.f32.mrf.mxu0
        %v1961 = vadd.f32 %v1942, %v1960
        %v1962 = vpop.f32.mrf.mxu0
        %v1963 = vadd.f32 %v1944, %v1962
        %1964 = vdwg.mxu0
        %1965 = vmatpush.bf16.msra.mxu0 %v1647
        %1966 = vmatpush.bf16.msra.mxu0 %v1645
        %1967 = vmatpush.bf16.msra.mxu0 %v1643
        %1968 = vmatpush.bf16.msra.mxu0 %v1641
        %1969 = vmatpush.bf16.msra.mxu0 %v1639
        %1970 = vmatpush.bf16.msra.mxu0 %v1637
        %1971 = vmatpush.bf16.msra.mxu0 %v1635
        %1972 = vmatpush.bf16.msra.mxu0 %v1633
        %1973 = vmatmul.bf16.gmra.mxu0 %v805
        %v1974 = vpop.f32.mrf.mxu0
        %v1975 = vadd.f32 %v1956, %v1974
        %v1976 = vpop.f32.mrf.mxu0
        %v1977 = vadd.f32 %v1958, %v1976
        %1978 = vmatmul.bf16.gmra.mxu0 %v811
        %v1979 = vpop.f32.mrf.mxu0
        %v1980 = vadd.f32 %v1961, %v1979
        %v1981 = vpop.f32.mrf.mxu0
        %v1982 = vadd.f32 %v1963, %v1981
        %1983 = vdwg.mxu0
        %1984 = vmatpush.bf16.msra.mxu0 %v1663
        %1985 = vmatpush.bf16.msra.mxu0 %v1661
        %1986 = vmatpush.bf16.msra.mxu0 %v1659
        %1987 = vmatpush.bf16.msra.mxu0 %v1657
        %1988 = vmatpush.bf16.msra.mxu0 %v1655
        %1989 = vmatpush.bf16.msra.mxu0 %v1653
        %1990 = vmatpush.bf16.msra.mxu0 %v1651
        %1991 = vmatpush.bf16.msra.mxu0 %v1649
        %1992 = vmatmul.bf16.gmra.mxu0 %v808
        %v1993 = vpop.f32.mrf.mxu0
        %v1994 = vadd.f32 %v1975, %v1993
        %v1995 = vpop.f32.mrf.mxu0
        %v1996 = vadd.f32 %v1977, %v1995
        %1997 = vmatmul.bf16.gmra.mxu0 %v814
        %v1998 = vpop.f32.mrf.mxu0
        %v1999 = vadd.f32 %v1980, %v1998
        %v2000 = vpop.f32.mrf.mxu0
        %v2001 = vadd.f32 %v1982, %v2000
        %2002 = vdwg.mxu0
        %2003 = vmatpush.bf16.msra.mxu0 %v1679
        %2004 = vmatpush.bf16.msra.mxu0 %v1677
        %2005 = vmatpush.bf16.msra.mxu0 %v1675
        %2006 = vmatpush.bf16.msra.mxu0 %v1673
        %2007 = vmatpush.bf16.msra.mxu0 %v1671
        %2008 = vmatpush.bf16.msra.mxu0 %v1669
        %2009 = vmatpush.bf16.msra.mxu0 %v1667
        %2010 = vmatpush.bf16.msra.mxu0 %v1665
        %2011 = vmatmul.bf16.gmra.mxu0 %v846
        %v2012 = vpop.f32.mrf.mxu0
        %v2013 = vadd.f32 %v1994, %v2012
        %v2014 = vpop.f32.mrf.mxu0
        %v2015 = vadd.f32 %v1996, %v2014
        %2016 = vmatmul.bf16.gmra.mxu0 %v880
        %v2017 = vpop.f32.mrf.mxu0
        %v2018 = vadd.f32 %v1999, %v2017
        %v2019 = vpop.f32.mrf.mxu0
        %v2020 = vadd.f32 %v2001, %v2019
        %2021 = vdwg.mxu0
        %2022 = vmatpush.bf16.msra.mxu0 %v1695
        %2023 = vmatpush.bf16.msra.mxu0 %v1693
        %2024 = vmatpush.bf16.msra.mxu0 %v1691
        %2025 = vmatpush.bf16.msra.mxu0 %v1689
        %2026 = vmatpush.bf16.msra.mxu0 %v1687
        %2027 = vmatpush.bf16.msra.mxu0 %v1685
        %2028 = vmatpush.bf16.msra.mxu0 %v1683
        %2029 = vmatpush.bf16.msra.mxu0 %v1681
        %2030 = vmatmul.bf16.gmra.mxu0 %v863
        %v2031 = vpop.f32.mrf.mxu0
        %v2032 = vadd.f32 %v2013, %v2031
        %v2033 = vpop.f32.mrf.mxu0
        %v2034 = vadd.f32 %v2015, %v2033
        %2035 = vmatmul.bf16.gmra.mxu0 %v897
        %v2036 = vpop.f32.mrf.mxu0
        %v2037 = vadd.f32 %v2018, %v2036
        %v2038 = vpop.f32.mrf.mxu0
        %v2039 = vadd.f32 %v2020, %v2038
        %2040 = vdwg.mxu0
        %2041 = vmatpush.bf16.msra.mxu0 %v1711
        %2042 = vmatpush.bf16.msra.mxu0 %v1709
        %2043 = vmatpush.bf16.msra.mxu0 %v1707
        %2044 = vmatpush.bf16.msra.mxu0 %v1705
        %2045 = vmatpush.bf16.msra.mxu0 %v1703
        %2046 = vmatpush.bf16.msra.mxu0 %v1701
        %2047 = vmatpush.bf16.msra.mxu0 %v1699
        %2048 = vmatpush.bf16.msra.mxu0 %v1697
        %2049 = vmatmul.bf16.gmra.mxu0 %v915
        %v2050 = vpop.f32.mrf.mxu0
        %v2051 = vadd.f32 %v2032, %v2050
        %v2052 = vpop.f32.mrf.mxu0
        %v2053 = vadd.f32 %v2034, %v2052
        %2054 = vmatmul.bf16.gmra.mxu0 %v921
        %v2055 = vpop.f32.mrf.mxu0
        %v2056 = vadd.f32 %v2037, %v2055
        %v2057 = vpop.f32.mrf.mxu0
        %v2058 = vadd.f32 %v2039, %v2057
        %2059 = vdwg.mxu0
        %2060 = vmatpush.bf16.msra.mxu0 %v1727
        %2061 = vmatpush.bf16.msra.mxu0 %v1725
        %2062 = vmatpush.bf16.msra.mxu0 %v1723
        %2063 = vmatpush.bf16.msra.mxu0 %v1721
        %2064 = vmatpush.bf16.msra.mxu0 %v1719
        %2065 = vmatpush.bf16.msra.mxu0 %v1717
        %2066 = vmatpush.bf16.msra.mxu0 %v1715
        %2067 = vmatpush.bf16.msra.mxu0 %v1713
        %2068 = vmatmul.bf16.gmra.mxu0 %v918
        %v2069 = vpop.f32.mrf.mxu0
        %v2070 = vadd.f32 %v2051, %v2069
        %v2071 = vpop.f32.mrf.mxu0
        %v2072 = vadd.f32 %v2053, %v2071
        %2073 = vmatmul.bf16.gmra.mxu0 %v924
        %v2074 = vpop.f32.mrf.mxu0
        %v2075 = vadd.f32 %v2056, %v2074
        %v2076 = vpop.f32.mrf.mxu0
        %v2077 = vadd.f32 %v2058, %v2076
        %2078 = vdwg.mxu0
        %2079 = vmatpush.bf16.msra.mxu0 %v1584
        %2080 = vmatpush.bf16.msra.mxu0 %v1582
        %2081 = vmatpush.bf16.msra.mxu0 %v1580
        %2082 = vmatpush.bf16.msra.mxu0 %v1578
        %2083 = vmatpush.bf16.msra.mxu0 %v1576
        %2084 = vmatpush.bf16.msra.mxu0 %v1574
        %2085 = vmatpush.bf16.msra.mxu0 %v1572
        %2086 = vmatpush.bf16.msra.mxu0 %v1570
        %2087 = vmatmul.bf16.gmra.mxu0 %v705
        %v2088 = vpop.f32.mrf.mxu0
        %v2089 = vadd.f32 0.0, %v2088
        %v2090 = vpop.f32.mrf.mxu0
        %v2091 = vadd.f32 0.0, %v2090
        %2092 = vmatmul.bf16.gmra.mxu0 %v707
        %v2093 = vpop.f32.mrf.mxu0
        %v2094 = vadd.f32 0.0, %v2093
        %v2095 = vpop.f32.mrf.mxu0
        %v2096 = vadd.f32 0.0, %v2095
        %2097 = vdwg.mxu0
        %2098 = vmatpush.bf16.msra.mxu0 %v1600
        %2099 = vmatpush.bf16.msra.mxu0 %v1598
        %2100 = vmatpush.bf16.msra.mxu0 %v1596
        %2101 = vmatpush.bf16.msra.mxu0 %v1594
        %2102 = vmatpush.bf16.msra.mxu0 %v1592
        %2103 = vmatpush.bf16.msra.mxu0 %v1590
        %2104 = vmatpush.bf16.msra.mxu0 %v1588
        %2105 = vmatpush.bf16.msra.mxu0 %v1586
        %2106 = vmatmul.bf16.gmra.mxu0 %v706
        %v2107 = vpop.f32.mrf.mxu0
        %v2108 = vadd.f32 %v2089, %v2107
        %v2109 = vpop.f32.mrf.mxu0
        %v2110 = vadd.f32 %v2091, %v2109
        %2111 = vmatmul.bf16.gmra.mxu0 %v708
        %v2112 = vpop.f32.mrf.mxu0
        %v2113 = vadd.f32 %v2094, %v2112
        %v2114 = vpop.f32.mrf.mxu0
        %v2115 = vadd.f32 %v2096, %v2114
        %2116 = vdwg.mxu0
        %2117 = vmatpush.bf16.msra.mxu0 %v1616
        %2118 = vmatpush.bf16.msra.mxu0 %v1614
        %2119 = vmatpush.bf16.msra.mxu0 %v1612
        %2120 = vmatpush.bf16.msra.mxu0 %v1610
        %2121 = vmatpush.bf16.msra.mxu0 %v1608
        %2122 = vmatpush.bf16.msra.mxu0 %v1606
        %2123 = vmatpush.bf16.msra.mxu0 %v1604
        %2124 = vmatpush.bf16.msra.mxu0 %v1602
        %2125 = vmatmul.bf16.gmra.mxu0 %v751
        %v2126 = vpop.f32.mrf.mxu0
        %v2127 = vadd.f32 %v2108, %v2126
        %v2128 = vpop.f32.mrf.mxu0
        %v2129 = vadd.f32 %v2110, %v2128
        %2130 = vmatmul.bf16.gmra.mxu0 %v775
        %v2131 = vpop.f32.mrf.mxu0
        %v2132 = vadd.f32 %v2113, %v2131
        %v2133 = vpop.f32.mrf.mxu0
        %v2134 = vadd.f32 %v2115, %v2133
        %2135 = vdwg.mxu0
        %2136 = vmatpush.bf16.msra.mxu0 %v1632
        %2137 = vmatpush.bf16.msra.mxu0 %v1630
        %2138 = vmatpush.bf16.msra.mxu0 %v1628
        %2139 = vmatpush.bf16.msra.mxu0 %v1626
        %2140 = vmatpush.bf16.msra.mxu0 %v1624
        %2141 = vmatpush.bf16.msra.mxu0 %v1622
        %2142 = vmatpush.bf16.msra.mxu0 %v1620
        %2143 = vmatpush.bf16.msra.mxu0 %v1618
        %2144 = vmatmul.bf16.gmra.mxu0 %v763
        %v2145 = vpop.f32.mrf.mxu0
        %v2146 = vadd.f32 %v2127, %v2145
        %v2147 = vpop.f32.mrf.mxu0
        %v2148 = vadd.f32 %v2129, %v2147
        %2149 = vmatmul.bf16.gmra.mxu0 %v787
        %v2150 = vpop.f32.mrf.mxu0
        %v2151 = vadd.f32 %v2132, %v2150
        %v2152 = vpop.f32.mrf.mxu0
        %v2153 = vadd.f32 %v2134, %v2152
        %2154 = vdwg.mxu0
        %2155 = vmatpush.bf16.msra.mxu0 %v1648
        %2156 = vmatpush.bf16.msra.mxu0 %v1646
        %2157 = vmatpush.bf16.msra.mxu0 %v1644
        %2158 = vmatpush.bf16.msra.mxu0 %v1642
        %2159 = vmatpush.bf16.msra.mxu0 %v1640
        %2160 = vmatpush.bf16.msra.mxu0 %v1638
        %2161 = vmatpush.bf16.msra.mxu0 %v1636
        %2162 = vmatpush.bf16.msra.mxu0 %v1634
        %2163 = vmatmul.bf16.gmra.mxu0 %v805
        %v2164 = vpop.f32.mrf.mxu0
        %v2165 = vadd.f32 %v2146, %v2164
        %v2166 = vpop.f32.mrf.mxu0
        %v2167 = vadd.f32 %v2148, %v2166
        %2168 = vmatmul.bf16.gmra.mxu0 %v811
        %v2169 = vpop.f32.mrf.mxu0
        %v2170 = vadd.f32 %v2151, %v2169
        %v2171 = vpop.f32.mrf.mxu0
        %v2172 = vadd.f32 %v2153, %v2171
        %2173 = vdwg.mxu0
        %2174 = vmatpush.bf16.msra.mxu0 %v1664
        %2175 = vmatpush.bf16.msra.mxu0 %v1662
        %2176 = vmatpush.bf16.msra.mxu0 %v1660
        %2177 = vmatpush.bf16.msra.mxu0 %v1658
        %2178 = vmatpush.bf16.msra.mxu0 %v1656
        %2179 = vmatpush.bf16.msra.mxu0 %v1654
        %2180 = vmatpush.bf16.msra.mxu0 %v1652
        %2181 = vmatpush.bf16.msra.mxu0 %v1650
        %2182 = vmatmul.bf16.gmra.mxu0 %v808
        %v2183 = vpop.f32.mrf.mxu0
        %v2184 = vadd.f32 %v2165, %v2183
        %v2185 = vpop.f32.mrf.mxu0
        %v2186 = vadd.f32 %v2167, %v2185
        %2187 = vmatmul.bf16.gmra.mxu0 %v814
        %v2188 = vpop.f32.mrf.mxu0
        %v2189 = vadd.f32 %v2170, %v2188
        %v2190 = vpop.f32.mrf.mxu0
        %v2191 = vadd.f32 %v2172, %v2190
        %2192 = vdwg.mxu0
        %2193 = vmatpush.bf16.msra.mxu0 %v1680
        %2194 = vmatpush.bf16.msra.mxu0 %v1678
        %2195 = vmatpush.bf16.msra.mxu0 %v1676
        %2196 = vmatpush.bf16.msra.mxu0 %v1674
        %2197 = vmatpush.bf16.msra.mxu0 %v1672
        %2198 = vmatpush.bf16.msra.mxu0 %v1670
        %2199 = vmatpush.bf16.msra.mxu0 %v1668
        %2200 = vmatpush.bf16.msra.mxu0 %v1666
        %2201 = vmatmul.bf16.gmra.mxu0 %v846
        %v2202 = vpop.f32.mrf.mxu0
        %v2203 = vadd.f32 %v2184, %v2202
        %v2204 = vpop.f32.mrf.mxu0
        %v2205 = vadd.f32 %v2186, %v2204
        %2206 = vmatmul.bf16.gmra.mxu0 %v880
        %v2207 = vpop.f32.mrf.mxu0
        %v2208 = vadd.f32 %v2189, %v2207
        %v2209 = vpop.f32.mrf.mxu0
        %v2210 = vadd.f32 %v2191, %v2209
        %2211 = vdwg.mxu0
        %2212 = vmatpush.bf16.msra.mxu0 %v1696
        %2213 = vmatpush.bf16.msra.mxu0 %v1694
        %2214 = vmatpush.bf16.msra.mxu0 %v1692
        %2215 = vmatpush.bf16.msra.mxu0 %v1690
        %2216 = vmatpush.bf16.msra.mxu0 %v1688
        %2217 = vmatpush.bf16.msra.mxu0 %v1686
        %2218 = vmatpush.bf16.msra.mxu0 %v1684
        %2219 = vmatpush.bf16.msra.mxu0 %v1682
        %2220 = vmatmul.bf16.gmra.mxu0 %v863
        %v2221 = vpop.f32.mrf.mxu0
        %v2222 = vadd.f32 %v2203, %v2221
        %v2223 = vpop.f32.mrf.mxu0
        %v2224 = vadd.f32 %v2205, %v2223
        %2225 = vmatmul.bf16.gmra.mxu0 %v897
        %v2226 = vpop.f32.mrf.mxu0
        %v2227 = vadd.f32 %v2208, %v2226
        %v2228 = vpop.f32.mrf.mxu0
        %v2229 = vadd.f32 %v2210, %v2228
        %2230 = vdwg.mxu0
        %2231 = vmatpush.bf16.msra.mxu0 %v1712
        %2232 = vmatpush.bf16.msra.mxu0 %v1710
        %2233 = vmatpush.bf16.msra.mxu0 %v1708
        %2234 = vmatpush.bf16.msra.mxu0 %v1706
        %2235 = vmatpush.bf16.msra.mxu0 %v1704
        %2236 = vmatpush.bf16.msra.mxu0 %v1702
        %2237 = vmatpush.bf16.msra.mxu0 %v1700
        %2238 = vmatpush.bf16.msra.mxu0 %v1698
        %2239 = vmatmul.bf16.gmra.mxu0 %v915
        %v2240 = vpop.f32.mrf.mxu0
        %v2241 = vadd.f32 %v2222, %v2240
        %v2242 = vpop.f32.mrf.mxu0
        %v2243 = vadd.f32 %v2224, %v2242
        %2244 = vmatmul.bf16.gmra.mxu0 %v921
        %v2245 = vpop.f32.mrf.mxu0
        %v2246 = vadd.f32 %v2227, %v2245
        %v2247 = vpop.f32.mrf.mxu0
        %v2248 = vadd.f32 %v2229, %v2247
        %2249 = vdwg.mxu0
        %2250 = vmatpush.bf16.msra.mxu0 %v1728
        %2251 = vmatpush.bf16.msra.mxu0 %v1726
        %2252 = vmatpush.bf16.msra.mxu0 %v1724
        %2253 = vmatpush.bf16.msra.mxu0 %v1722
        %2254 = vmatpush.bf16.msra.mxu0 %v1720
        %2255 = vmatpush.bf16.msra.mxu0 %v1718
        %2256 = vmatpush.bf16.msra.mxu0 %v1716
        %2257 = vmatpush.bf16.msra.mxu0 %v1714
        %2258 = vmatmul.bf16.gmra.mxu0 %v918
        %v2259 = vpop.f32.mrf.mxu0
        %v2260 = vadd.f32 %v2241, %v2259
        %v2261 = vpop.f32.mrf.mxu0
        %v2262 = vadd.f32 %v2243, %v2261
        %2263 = vmatmul.bf16.gmra.mxu0 %v924
        %v2264 = vpop.f32.mrf.mxu0
        %v2265 = vadd.f32 %v2246, %v2264
        %v2266 = vpop.f32.mrf.mxu0
        %v2267 = vadd.f32 %v2248, %v2266
        %2268 = vdwg.mxu0
        %v2269 = vld [vmem:[%s390] sm:$0x3]
        %v2271 = vperm.slane %v2269, 0
        %v2272 = vperm.slane %v2269, 1
        %v2275 = vadd.f32 %v2070, %v2271
        %v2276 = vadd.f32 %v2260, %v2272
        %v2277 = vadd.f32 %v2072, %v2271
        %v2278 = vadd.f32 %v2262, %v2272
        %v2279 = vadd.f32 %v2075, %v2271
        %v2280 = vadd.f32 %v2265, %v2272
        %v2281 = vadd.f32 %v2077, %v2271
        %v2282 = vadd.f32 %v2267, %v2272
        %v2283 = vmul.f32 %v2275, 0.2
        %v2284 = vmul.f32 %v2276, 0.2
        %v2285 = vmul.f32 %v2277, 0.2
        %v2286 = vmul.f32 %v2278, 0.2
        %v2287 = vmul.f32 %v2279, 0.2
        %v2288 = vmul.f32 %v2280, 0.2
        %v2289 = vmul.f32 %v2281, 0.2
        %v2290 = vmul.f32 %v2282, 0.2
        %v2291 = vmax.f32 %v2275, %v2283
        %v2292 = vmax.f32 %v2276, %v2284
        %v2293 = vmax.f32 %v2277, %v2285
        %v2294 = vmax.f32 %v2278, %v2286
        %v2295 = vmax.f32 %v2279, %v2287
        %v2296 = vmax.f32 %v2280, %v2288
        %v2297 = vmax.f32 %v2281, %v2289
        %v2298 = vmax.f32 %v2282, %v2290
        %v2299 = vpack.c.bf16 %v2292, %v2291
        %v2300 = vpack.c.bf16 %v2294, %v2293
        %v2301 = vpack.c.bf16 %v2296, %v2295
        %v2302 = vpack.c.bf16 %v2298, %v2297
        %v2307 = vrot.slane %v2299, 7
        %v2308 = vrot.slane %v2307, 4
        %v2309 = vrot.slane %v2300, 7
        %v2310 = vsel %vm654, %v2308, %v2309
        %v2311 = vrot.slane %v2309, 4
        %v2312 = vrot.slane %v2301, 7
        %v2313 = vrot.slane %v2312, 4
        %v2314 = vrot.slane %v2302, 7
        %v2315 = vsel %vm654, %v2313, %v2314
        %v2316 = vrot.slane %v2314, 4
        %2323 = vst [vmem:[#allocation3] sm:$0xee] %v2307
        %2324 = vst [vmem:[#allocation3 + $0x8] sm:$0xff] %v2310
        %2325 = vst [vmem:[#allocation3 + $0x10] sm:$0x11] %v2311
        %2326 = vst [vmem:[#allocation3 + $0x18] sm:$0xee] %v2312
        %2327 = vst [vmem:[#allocation3 + $0x20] sm:$0xff] %v2315
        %2328 = vst [vmem:[#allocation3 + $0x28] sm:$0x11] %v2316
        %v2329 = vld [vmem:[#allocation3] sm:$0xff]
        %v2330 = vld [vmem:[#allocation3 + $0x8] sm:$0xff]
        %v2331 = vld [vmem:[#allocation3 + $0x18] sm:$0xff]
        %v2332 = vld [vmem:[#allocation3 + $0x20] sm:$0xff]
        %v2333 = vld [vmem:[#allocation3] sm:$0xff]
        %v2334 = vld [vmem:[#allocation3 + $0x8] sm:$0xff]
        %v2335 = vld [vmem:[#allocation3 + $0x10] sm:$0x11]
        %v2336 = vld [vmem:[#allocation3 + $0x18] sm:$0xff]
        %v2337 = vld [vmem:[#allocation3 + $0x20] sm:$0xff]
        %v2338 = vld [vmem:[#allocation3 + $0x28] sm:$0x11]
        %v2339 = vld [vmem:[#allocation3] sm:$0xee]
        %v2340 = vld [vmem:[#allocation3 + $0x18] sm:$0xee]
        %v2341 = vld [vmem:[#allocation3 + $0x10] sm:$0x33]
        %v2342 = vld [vmem:[#allocation3 + $0x28] sm:$0x33]
        %v2343 = vld [vmem:[#allocation3] sm:$0xcc]
        %v2344 = vld [vmem:[#allocation3 + $0x18] sm:$0xcc]
        %v2349 = vunpack.c.l.b16 %v2329
        %v2350 = vunpack.c.h.b16 %v2329
        %v2351 = vunpack.c.l.b16 %v2330
        %v2352 = vunpack.c.h.b16 %v2330
        %v2353 = vunpack.c.l.b16 %v2331
        %v2354 = vunpack.c.h.b16 %v2331
        %v2355 = vunpack.c.l.b16 %v2332
        %v2356 = vunpack.c.h.b16 %v2332
        %v2357 = vpack.c.b16 %v2351, %v2349
        %v2358 = vpack.c.b16 %v2352, %v2350
        %v2359 = vpack.c.b16 %v2355, %v2353
        %v2360 = vpack.c.b16 %v2356, %v2354
        %v2371 = vunpack.c.l.b16 %v2333
        %v2372 = vunpack.c.h.b16 %v2333
        %v2373 = vunpack.c.l.b16 %v2334
        %v2374 = vunpack.c.h.b16 %v2334
        %v2375 = vunpack.c.l.b16 %v2335
        %v2376 = vunpack.c.h.b16 %v2335
        %v2377 = vunpack.c.l.b16 %v2336
        %v2378 = vunpack.c.h.b16 %v2336
        %v2379 = vunpack.c.l.b16 %v2337
        %v2380 = vunpack.c.h.b16 %v2337
        %v2381 = vunpack.c.l.b16 %v2338
        %v2382 = vunpack.c.h.b16 %v2338
        %v2383 = vpack.c.b16 %v2373, %v2371
        %v2384 = vpack.c.b16 %v2374, %v2372
        %v2385 = vpack.c.b16 %v2375, %v2375
        %v2386 = vpack.c.b16 %v2376, %v2376
        %v2387 = vpack.c.b16 %v2379, %v2377
        %v2388 = vpack.c.b16 %v2380, %v2378
        %v2389 = vpack.c.b16 %v2381, %v2381
        %v2390 = vpack.c.b16 %v2382, %v2382
        %v2392 = vshrl.u32 %v2383, 16
        %v2394 = vshll.u32 %v2383, 16
        %v2396 = vrot.slane %v2394, 1
        %v2397 = vor.u32 %v2392, %v2396
        %v2399 = vshll.u32 %v2385, 16
        %v2401 = vrot.slane %v2399, 1
        %v2402 = vsel %vm739, %v2397, %v2401
        %v2404 = vshrl.u32 %v2384, 16
        %v2406 = vshll.u32 %v2384, 16
        %v2408 = vrot.slane %v2406, 1
        %v2409 = vor.u32 %v2404, %v2408
        %v2411 = vshll.u32 %v2386, 16
        %v2413 = vrot.slane %v2411, 1
        %v2414 = vsel %vm739, %v2409, %v2413
        %v2416 = vshrl.u32 %v2387, 16
        %v2418 = vshll.u32 %v2387, 16
        %v2420 = vrot.slane %v2418, 1
        %v2421 = vor.u32 %v2416, %v2420
        %v2423 = vshll.u32 %v2389, 16
        %v2425 = vrot.slane %v2423, 1
        %v2426 = vsel %vm739, %v2421, %v2425
        %v2428 = vshrl.u32 %v2388, 16
        %v2430 = vshll.u32 %v2388, 16
        %v2432 = vrot.slane %v2430, 1
        %v2433 = vor.u32 %v2428, %v2432
        %v2435 = vshll.u32 %v2390, 16
        %v2437 = vrot.slane %v2435, 1
        %v2438 = vsel %vm739, %v2433, %v2437
        %v2445 = vunpack.c.l.b16 %v2339
        %v2446 = vunpack.c.h.b16 %v2339
        %v2447 = vunpack.c.l.b16 %v2340
        %v2448 = vunpack.c.h.b16 %v2340
        %v2449 = vpack.c.b16 %v2373, %v2445
        %v2450 = vpack.c.b16 %v2374, %v2446
        %v2451 = vpack.c.b16 %v2379, %v2447
        %v2452 = vpack.c.b16 %v2380, %v2448
        %v2453 = vrot.slane %v2449, 1
        %v2454 = vrot.slane %v2385, 1
        %v2455 = vsel %vm802, %v2453, %v2454
        %v2456 = vrot.slane %v2450, 1
        %v2457 = vrot.slane %v2386, 1
        %v2458 = vsel %vm802, %v2456, %v2457
        %v2459 = vrot.slane %v2451, 1
        %v2460 = vrot.slane %v2389, 1
        %v2461 = vsel %vm802, %v2459, %v2460
        %v2462 = vrot.slane %v2452, 1
        %v2463 = vrot.slane %v2390, 1
        %v2464 = vsel %vm802, %v2462, %v2463
        %v2471 = vunpack.c.l.b16 %v2341
        %v2472 = vunpack.c.h.b16 %v2341
        %v2473 = vunpack.c.l.b16 %v2342
        %v2474 = vunpack.c.h.b16 %v2342
        %v2475 = vpack.c.b16 %v2471, %v2471
        %v2476 = vpack.c.b16 %v2472, %v2472
        %v2477 = vpack.c.b16 %v2473, %v2473
        %v2478 = vpack.c.b16 %v2474, %v2474
        %v2480 = vshrl.u32 %v2449, 16
        %v2482 = vrot.slane %v2480, 1
        %v2483 = vshll.u32 %v2449, 16
        %v2485 = vrot.slane %v2483, 2
        %v2486 = vor.u32 %v2482, %v2485
        %v2488 = vshrl.u32 %v2475, 16
        %v2490 = vrot.slane %v2488, 1
        %v2491 = vshll.u32 %v2475, 16
        %v2493 = vrot.slane %v2491, 2
        %v2494 = vor.u32 %v2490, %v2493
        %v2495 = vsel %vm829, %v2486, %v2494
        %v2497 = vshrl.u32 %v2450, 16
        %v2499 = vrot.slane %v2497, 1
        %v2500 = vshll.u32 %v2450, 16
        %v2502 = vrot.slane %v2500, 2
        %v2503 = vor.u32 %v2499, %v2502
        %v2505 = vshrl.u32 %v2476, 16
        %v2507 = vrot.slane %v2505, 1
        %v2508 = vshll.u32 %v2476, 16
        %v2510 = vrot.slane %v2508, 2
        %v2511 = vor.u32 %v2507, %v2510
        %v2512 = vsel %vm829, %v2503, %v2511
        %v2514 = vshrl.u32 %v2451, 16
        %v2516 = vrot.slane %v2514, 1
        %v2517 = vshll.u32 %v2451, 16
        %v2519 = vrot.slane %v2517, 2
        %v2520 = vor.u32 %v2516, %v2519
        %v2522 = vshrl.u32 %v2477, 16
        %v2524 = vrot.slane %v2522, 1
        %v2525 = vshll.u32 %v2477, 16
        %v2527 = vrot.slane %v2525, 2
        %v2528 = vor.u32 %v2524, %v2527
        %v2529 = vsel %vm829, %v2520, %v2528
        %v2531 = vshrl.u32 %v2452, 16
        %v2533 = vrot.slane %v2531, 1
        %v2534 = vshll.u32 %v2452, 16
        %v2536 = vrot.slane %v2534, 2
        %v2537 = vor.u32 %v2533, %v2536
        %v2539 = vshrl.u32 %v2478, 16
        %v2541 = vrot.slane %v2539, 1
        %v2542 = vshll.u32 %v2478, 16
        %v2544 = vrot.slane %v2542, 2
        %v2545 = vor.u32 %v2541, %v2544
        %v2546 = vsel %vm829, %v2537, %v2545
        %v2553 = vunpack.c.l.b16 %v2343
        %v2554 = vunpack.c.h.b16 %v2343
        %v2555 = vunpack.c.l.b16 %v2344
        %v2556 = vunpack.c.h.b16 %v2344
        %v2557 = vpack.c.b16 %v2373, %v2553
        %v2558 = vpack.c.b16 %v2374, %v2554
        %v2559 = vpack.c.b16 %v2379, %v2555
        %v2560 = vpack.c.b16 %v2380, %v2556
        %v2561 = vrot.slane %v2557, 2
        %v2562 = vrot.slane %v2475, 2
        %v2563 = vsel %vm912, %v2561, %v2562
        %v2564 = vrot.slane %v2558, 2
        %v2565 = vrot.slane %v2476, 2
        %v2566 = vsel %vm912, %v2564, %v2565
        %v2567 = vrot.slane %v2559, 2
        %v2568 = vrot.slane %v2477, 2
        %v2569 = vsel %vm912, %v2567, %v2568
        %v2570 = vrot.slane %v2560, 2
        %v2571 = vrot.slane %v2478, 2
        %v2572 = vsel %vm912, %v2570, %v2571
        %s2577 = scalar_lea.vmem %s380, 1280 [#allocation12]
        %v2578 = vld [vmem:[%s2577] sm:$0xff]
        %v2579 = vld [vmem:[%s2577 + $0x8] sm:$0xff]
        %v2580 = vld [vmem:[%s2577 + $0x10] sm:$0xff]
        %v2581 = vld [vmem:[%s2577 + $0x18] sm:$0xff]
        %v2582 = vld [vmem:[%s2577 + $0x20] sm:$0xff]
        %v2583 = vld [vmem:[%s2577 + $0x28] sm:$0xff]
        %v2584 = vld [vmem:[%s2577 + $0x30] sm:$0xff]
        %v2585 = vld [vmem:[%s2577 + $0x38] sm:$0xff]
        %v2586 = vld [vmem:[%s2577 + $0x40] sm:$0xff]
        %v2587 = vld [vmem:[%s2577 + $0x48] sm:$0xff]
        %v2588 = vld [vmem:[%s2577 + $0x50] sm:$0xff]
        %v2589 = vld [vmem:[%s2577 + $0x58] sm:$0xff]
        %v2590 = vld [vmem:[%s2577 + $0x60] sm:$0xff]
        %v2591 = vld [vmem:[%s2577 + $0x68] sm:$0xff]
        %v2592 = vld [vmem:[%s2577 + $0x70] sm:$0xff]
        %v2593 = vld [vmem:[%s2577 + $0x78] sm:$0xff]
        %v2594 = vld [vmem:[%s2577 + $0x80] sm:$0xff]
        %v2595 = vld [vmem:[%s2577 + $0x88] sm:$0xff]
        %v2596 = vld [vmem:[%s2577 + $0x90] sm:$0xff]
        %v2597 = vld [vmem:[%s2577 + $0x98] sm:$0xff]
        %v2598 = vld [vmem:[%s2577 + $0xa0] sm:$0xff]
        %v2599 = vld [vmem:[%s2577 + $0xa8] sm:$0xff]
        %v2600 = vld [vmem:[%s2577 + $0xb0] sm:$0xff]
        %v2601 = vld [vmem:[%s2577 + $0xb8] sm:$0xff]
        %v2602 = vld [vmem:[%s2577 + $0xc0] sm:$0xff]
        %v2603 = vld [vmem:[%s2577 + $0xc8] sm:$0xff]
        %v2604 = vld [vmem:[%s2577 + $0xd0] sm:$0xff]
        %v2605 = vld [vmem:[%s2577 + $0xd8] sm:$0xff]
        %v2606 = vld [vmem:[%s2577 + $0xe0] sm:$0xff]
        %v2607 = vld [vmem:[%s2577 + $0xe8] sm:$0xff]
        %v2608 = vld [vmem:[%s2577 + $0xf0] sm:$0xff]
        %v2609 = vld [vmem:[%s2577 + $0xf8] sm:$0xff]
        %v2610 = vld [vmem:[%s2577 + $0x100] sm:$0xff]
        %v2611 = vld [vmem:[%s2577 + $0x108] sm:$0xff]
        %v2612 = vld [vmem:[%s2577 + $0x110] sm:$0xff]
        %v2613 = vld [vmem:[%s2577 + $0x118] sm:$0xff]
        %v2614 = vld [vmem:[%s2577 + $0x120] sm:$0xff]
        %v2615 = vld [vmem:[%s2577 + $0x128] sm:$0xff]
        %v2616 = vld [vmem:[%s2577 + $0x130] sm:$0xff]
        %v2617 = vld [vmem:[%s2577 + $0x138] sm:$0xff]
        %v2618 = vld [vmem:[%s2577 + $0x140] sm:$0xff]
        %v2619 = vld [vmem:[%s2577 + $0x148] sm:$0xff]
        %v2620 = vld [vmem:[%s2577 + $0x150] sm:$0xff]
        %v2621 = vld [vmem:[%s2577 + $0x158] sm:$0xff]
        %v2622 = vld [vmem:[%s2577 + $0x160] sm:$0xff]
        %v2623 = vld [vmem:[%s2577 + $0x168] sm:$0xff]
        %v2624 = vld [vmem:[%s2577 + $0x170] sm:$0xff]
        %v2625 = vld [vmem:[%s2577 + $0x178] sm:$0xff]
        %v2626 = vld [vmem:[%s2577 + $0x180] sm:$0xff]
        %v2627 = vld [vmem:[%s2577 + $0x188] sm:$0xff]
        %v2628 = vld [vmem:[%s2577 + $0x190] sm:$0xff]
        %v2629 = vld [vmem:[%s2577 + $0x198] sm:$0xff]
        %v2630 = vld [vmem:[%s2577 + $0x1a0] sm:$0xff]
        %v2631 = vld [vmem:[%s2577 + $0x1a8] sm:$0xff]
        %v2632 = vld [vmem:[%s2577 + $0x1b0] sm:$0xff]
        %v2633 = vld [vmem:[%s2577 + $0x1b8] sm:$0xff]
        %v2634 = vld [vmem:[%s2577 + $0x1c0] sm:$0xff]
        %v2635 = vld [vmem:[%s2577 + $0x1c8] sm:$0xff]
        %v2636 = vld [vmem:[%s2577 + $0x1d0] sm:$0xff]
        %v2637 = vld [vmem:[%s2577 + $0x1d8] sm:$0xff]
        %v2638 = vld [vmem:[%s2577 + $0x1e0] sm:$0xff]
        %v2639 = vld [vmem:[%s2577 + $0x1e8] sm:$0xff]
        %v2640 = vld [vmem:[%s2577 + $0x1f0] sm:$0xff]
        %v2641 = vld [vmem:[%s2577 + $0x1f8] sm:$0xff]
        %v2642 = vld [vmem:[%s2577 + $0x200] sm:$0xff]
        %v2643 = vld [vmem:[%s2577 + $0x208] sm:$0xff]
        %v2644 = vld [vmem:[%s2577 + $0x210] sm:$0xff]
        %v2645 = vld [vmem:[%s2577 + $0x218] sm:$0xff]
        %v2646 = vld [vmem:[%s2577 + $0x220] sm:$0xff]
        %v2647 = vld [vmem:[%s2577 + $0x228] sm:$0xff]
        %v2648 = vld [vmem:[%s2577 + $0x230] sm:$0xff]
        %v2649 = vld [vmem:[%s2577 + $0x238] sm:$0xff]
        %v2650 = vld [vmem:[%s2577 + $0x240] sm:$0xff]
        %v2651 = vld [vmem:[%s2577 + $0x248] sm:$0xff]
        %v2652 = vld [vmem:[%s2577 + $0x250] sm:$0xff]
        %v2653 = vld [vmem:[%s2577 + $0x258] sm:$0xff]
        %v2654 = vld [vmem:[%s2577 + $0x260] sm:$0xff]
        %v2655 = vld [vmem:[%s2577 + $0x268] sm:$0xff]
        %v2656 = vld [vmem:[%s2577 + $0x270] sm:$0xff]
        %v2657 = vld [vmem:[%s2577 + $0x278] sm:$0xff]
        %v2658 = vld [vmem:[%s2577 + $0x280] sm:$0xff]
        %v2659 = vld [vmem:[%s2577 + $0x288] sm:$0xff]
        %v2660 = vld [vmem:[%s2577 + $0x290] sm:$0xff]
        %v2661 = vld [vmem:[%s2577 + $0x298] sm:$0xff]
        %v2662 = vld [vmem:[%s2577 + $0x2a0] sm:$0xff]
        %v2663 = vld [vmem:[%s2577 + $0x2a8] sm:$0xff]
        %v2664 = vld [vmem:[%s2577 + $0x2b0] sm:$0xff]
        %v2665 = vld [vmem:[%s2577 + $0x2b8] sm:$0xff]
        %v2666 = vld [vmem:[%s2577 + $0x2c0] sm:$0xff]
        %v2667 = vld [vmem:[%s2577 + $0x2c8] sm:$0xff]
        %v2668 = vld [vmem:[%s2577 + $0x2d0] sm:$0xff]
        %v2669 = vld [vmem:[%s2577 + $0x2d8] sm:$0xff]
        %v2670 = vld [vmem:[%s2577 + $0x2e0] sm:$0xff]
        %v2671 = vld [vmem:[%s2577 + $0x2e8] sm:$0xff]
        %v2672 = vld [vmem:[%s2577 + $0x2f0] sm:$0xff]
        %v2673 = vld [vmem:[%s2577 + $0x2f8] sm:$0xff]
        %v2674 = vld [vmem:[%s2577 + $0x300] sm:$0xff]
        %v2675 = vld [vmem:[%s2577 + $0x308] sm:$0xff]
        %v2676 = vld [vmem:[%s2577 + $0x310] sm:$0xff]
        %v2677 = vld [vmem:[%s2577 + $0x318] sm:$0xff]
        %v2678 = vld [vmem:[%s2577 + $0x320] sm:$0xff]
        %v2679 = vld [vmem:[%s2577 + $0x328] sm:$0xff]
        %v2680 = vld [vmem:[%s2577 + $0x330] sm:$0xff]
        %v2681 = vld [vmem:[%s2577 + $0x338] sm:$0xff]
        %v2682 = vld [vmem:[%s2577 + $0x340] sm:$0xff]
        %v2683 = vld [vmem:[%s2577 + $0x348] sm:$0xff]
        %v2684 = vld [vmem:[%s2577 + $0x350] sm:$0xff]
        %v2685 = vld [vmem:[%s2577 + $0x358] sm:$0xff]
        %v2686 = vld [vmem:[%s2577 + $0x360] sm:$0xff]
        %v2687 = vld [vmem:[%s2577 + $0x368] sm:$0xff]
        %v2688 = vld [vmem:[%s2577 + $0x370] sm:$0xff]
        %v2689 = vld [vmem:[%s2577 + $0x378] sm:$0xff]
        %v2690 = vld [vmem:[%s2577 + $0x380] sm:$0xff]
        %v2691 = vld [vmem:[%s2577 + $0x388] sm:$0xff]
        %v2692 = vld [vmem:[%s2577 + $0x390] sm:$0xff]
        %v2693 = vld [vmem:[%s2577 + $0x398] sm:$0xff]
        %v2694 = vld [vmem:[%s2577 + $0x3a0] sm:$0xff]
        %v2695 = vld [vmem:[%s2577 + $0x3a8] sm:$0xff]
        %v2696 = vld [vmem:[%s2577 + $0x3b0] sm:$0xff]
        %v2697 = vld [vmem:[%s2577 + $0x3b8] sm:$0xff]
        %v2698 = vld [vmem:[%s2577 + $0x3c0] sm:$0xff]
        %v2699 = vld [vmem:[%s2577 + $0x3c8] sm:$0xff]
        %v2700 = vld [vmem:[%s2577 + $0x3d0] sm:$0xff]
        %v2701 = vld [vmem:[%s2577 + $0x3d8] sm:$0xff]
        %v2702 = vld [vmem:[%s2577 + $0x3e0] sm:$0xff]
        %v2703 = vld [vmem:[%s2577 + $0x3e8] sm:$0xff]
        %v2704 = vld [vmem:[%s2577 + $0x3f0] sm:$0xff]
        %v2705 = vld [vmem:[%s2577 + $0x3f8] sm:$0xff]
        %v2706 = vld [vmem:[%s2577 + $0x400] sm:$0xff]
        %v2707 = vld [vmem:[%s2577 + $0x408] sm:$0xff]
        %v2708 = vld [vmem:[%s2577 + $0x410] sm:$0xff]
        %v2709 = vld [vmem:[%s2577 + $0x418] sm:$0xff]
        %v2710 = vld [vmem:[%s2577 + $0x420] sm:$0xff]
        %v2711 = vld [vmem:[%s2577 + $0x428] sm:$0xff]
        %v2712 = vld [vmem:[%s2577 + $0x430] sm:$0xff]
        %v2713 = vld [vmem:[%s2577 + $0x438] sm:$0xff]
        %v2714 = vld [vmem:[%s2577 + $0x440] sm:$0xff]
        %v2715 = vld [vmem:[%s2577 + $0x448] sm:$0xff]
        %v2716 = vld [vmem:[%s2577 + $0x450] sm:$0xff]
        %v2717 = vld [vmem:[%s2577 + $0x458] sm:$0xff]
        %v2718 = vld [vmem:[%s2577 + $0x460] sm:$0xff]
        %v2719 = vld [vmem:[%s2577 + $0x468] sm:$0xff]
        %v2720 = vld [vmem:[%s2577 + $0x470] sm:$0xff]
        %v2721 = vld [vmem:[%s2577 + $0x478] sm:$0xff]
        %v2722 = vld [vmem:[%s2577 + $0x480] sm:$0xff]
        %v2723 = vld [vmem:[%s2577 + $0x488] sm:$0xff]
        %v2724 = vld [vmem:[%s2577 + $0x490] sm:$0xff]
        %v2725 = vld [vmem:[%s2577 + $0x498] sm:$0xff]
        %v2726 = vld [vmem:[%s2577 + $0x4a0] sm:$0xff]
        %v2727 = vld [vmem:[%s2577 + $0x4a8] sm:$0xff]
        %v2728 = vld [vmem:[%s2577 + $0x4b0] sm:$0xff]
        %v2729 = vld [vmem:[%s2577 + $0x4b8] sm:$0xff]
        %v2730 = vld [vmem:[%s2577 + $0x4c0] sm:$0xff]
        %v2731 = vld [vmem:[%s2577 + $0x4c8] sm:$0xff]
        %v2732 = vld [vmem:[%s2577 + $0x4d0] sm:$0xff]
        %v2733 = vld [vmem:[%s2577 + $0x4d8] sm:$0xff]
        %v2734 = vld [vmem:[%s2577 + $0x4e0] sm:$0xff]
        %v2735 = vld [vmem:[%s2577 + $0x4e8] sm:$0xff]
        %v2736 = vld [vmem:[%s2577 + $0x4f0] sm:$0xff]
        %v2737 = vld [vmem:[%s2577 + $0x4f8] sm:$0xff]
        %v2898 = vunpack.c.l.b16 %v2578
        %v2899 = vunpack.c.h.b16 %v2578
        %v2900 = vunpack.c.l.b16 %v2579
        %v2901 = vunpack.c.h.b16 %v2579
        %v2902 = vunpack.c.l.b16 %v2580
        %v2903 = vunpack.c.h.b16 %v2580
        %v2904 = vunpack.c.l.b16 %v2581
        %v2905 = vunpack.c.h.b16 %v2581
        %v2906 = vunpack.c.l.b16 %v2582
        %v2907 = vunpack.c.h.b16 %v2582
        %v2908 = vunpack.c.l.b16 %v2583
        %v2909 = vunpack.c.h.b16 %v2583
        %v2910 = vunpack.c.l.b16 %v2584
        %v2911 = vunpack.c.h.b16 %v2584
        %v2912 = vunpack.c.l.b16 %v2585
        %v2913 = vunpack.c.h.b16 %v2585
        %v2914 = vunpack.c.l.b16 %v2586
        %v2915 = vunpack.c.h.b16 %v2586
        %v2916 = vunpack.c.l.b16 %v2587
        %v2917 = vunpack.c.h.b16 %v2587
        %v2918 = vunpack.c.l.b16 %v2588
        %v2919 = vunpack.c.h.b16 %v2588
        %v2920 = vunpack.c.l.b16 %v2589
        %v2921 = vunpack.c.h.b16 %v2589
        %v2922 = vunpack.c.l.b16 %v2590
        %v2923 = vunpack.c.h.b16 %v2590
        %v2924 = vunpack.c.l.b16 %v2591
        %v2925 = vunpack.c.h.b16 %v2591
        %v2926 = vunpack.c.l.b16 %v2592
        %v2927 = vunpack.c.h.b16 %v2592
        %v2928 = vunpack.c.l.b16 %v2593
        %v2929 = vunpack.c.h.b16 %v2593
        %v2930 = vunpack.c.l.b16 %v2594
        %v2931 = vunpack.c.h.b16 %v2594
        %v2932 = vunpack.c.l.b16 %v2595
        %v2933 = vunpack.c.h.b16 %v2595
        %v2934 = vunpack.c.l.b16 %v2596
        %v2935 = vunpack.c.h.b16 %v2596
        %v2936 = vunpack.c.l.b16 %v2597
        %v2937 = vunpack.c.h.b16 %v2597
        %v2938 = vunpack.c.l.b16 %v2598
        %v2939 = vunpack.c.h.b16 %v2598
        %v2940 = vunpack.c.l.b16 %v2599
        %v2941 = vunpack.c.h.b16 %v2599
        %v2942 = vunpack.c.l.b16 %v2600
        %v2943 = vunpack.c.h.b16 %v2600
        %v2944 = vunpack.c.l.b16 %v2601
        %v2945 = vunpack.c.h.b16 %v2601
        %v2946 = vunpack.c.l.b16 %v2602
        %v2947 = vunpack.c.h.b16 %v2602
        %v2948 = vunpack.c.l.b16 %v2603
        %v2949 = vunpack.c.h.b16 %v2603
        %v2950 = vunpack.c.l.b16 %v2604
        %v2951 = vunpack.c.h.b16 %v2604
        %v2952 = vunpack.c.l.b16 %v2605
        %v2953 = vunpack.c.h.b16 %v2605
        %v2954 = vunpack.c.l.b16 %v2606
        %v2955 = vunpack.c.h.b16 %v2606
        %v2956 = vunpack.c.l.b16 %v2607
        %v2957 = vunpack.c.h.b16 %v2607
        %v2958 = vunpack.c.l.b16 %v2608
        %v2959 = vunpack.c.h.b16 %v2608
        %v2960 = vunpack.c.l.b16 %v2609
        %v2961 = vunpack.c.h.b16 %v2609
        %v2962 = vunpack.c.l.b16 %v2610
        %v2963 = vunpack.c.h.b16 %v2610
        %v2964 = vunpack.c.l.b16 %v2611
        %v2965 = vunpack.c.h.b16 %v2611
        %v2966 = vunpack.c.l.b16 %v2612
        %v2967 = vunpack.c.h.b16 %v2612
        %v2968 = vunpack.c.l.b16 %v2613
        %v2969 = vunpack.c.h.b16 %v2613
        %v2970 = vunpack.c.l.b16 %v2614
        %v2971 = vunpack.c.h.b16 %v2614
        %v2972 = vunpack.c.l.b16 %v2615
        %v2973 = vunpack.c.h.b16 %v2615
        %v2974 = vunpack.c.l.b16 %v2616
        %v2975 = vunpack.c.h.b16 %v2616
        %v2976 = vunpack.c.l.b16 %v2617
        %v2977 = vunpack.c.h.b16 %v2617
        %v2978 = vunpack.c.l.b16 %v2618
        %v2979 = vunpack.c.h.b16 %v2618
        %v2980 = vunpack.c.l.b16 %v2619
        %v2981 = vunpack.c.h.b16 %v2619
        %v2982 = vunpack.c.l.b16 %v2620
        %v2983 = vunpack.c.h.b16 %v2620
        %v2984 = vunpack.c.l.b16 %v2621
        %v2985 = vunpack.c.h.b16 %v2621
        %v2986 = vunpack.c.l.b16 %v2622
        %v2987 = vunpack.c.h.b16 %v2622
        %v2988 = vunpack.c.l.b16 %v2623
        %v2989 = vunpack.c.h.b16 %v2623
        %v2990 = vunpack.c.l.b16 %v2624
        %v2991 = vunpack.c.h.b16 %v2624
        %v2992 = vunpack.c.l.b16 %v2625
        %v2993 = vunpack.c.h.b16 %v2625
        %v2994 = vunpack.c.l.b16 %v2626
        %v2995 = vunpack.c.h.b16 %v2626
        %v2996 = vunpack.c.l.b16 %v2627
        %v2997 = vunpack.c.h.b16 %v2627
        %v2998 = vunpack.c.l.b16 %v2628
        %v2999 = vunpack.c.h.b16 %v2628
        %v3000 = vunpack.c.l.b16 %v2629
        %v3001 = vunpack.c.h.b16 %v2629
        %v3002 = vunpack.c.l.b16 %v2630
        %v3003 = vunpack.c.h.b16 %v2630
        %v3004 = vunpack.c.l.b16 %v2631
        %v3005 = vunpack.c.h.b16 %v2631
        %v3006 = vunpack.c.l.b16 %v2632
        %v3007 = vunpack.c.h.b16 %v2632
        %v3008 = vunpack.c.l.b16 %v2633
        %v3009 = vunpack.c.h.b16 %v2633
        %v3010 = vunpack.c.l.b16 %v2634
        %v3011 = vunpack.c.h.b16 %v2634
        %v3012 = vunpack.c.l.b16 %v2635
        %v3013 = vunpack.c.h.b16 %v2635
        %v3014 = vunpack.c.l.b16 %v2636
        %v3015 = vunpack.c.h.b16 %v2636
        %v3016 = vunpack.c.l.b16 %v2637
        %v3017 = vunpack.c.h.b16 %v2637
        %v3018 = vunpack.c.l.b16 %v2638
        %v3019 = vunpack.c.h.b16 %v2638
        %v3020 = vunpack.c.l.b16 %v2639
        %v3021 = vunpack.c.h.b16 %v2639
        %v3022 = vunpack.c.l.b16 %v2640
        %v3023 = vunpack.c.h.b16 %v2640
        %v3024 = vunpack.c.l.b16 %v2641
        %v3025 = vunpack.c.h.b16 %v2641
        %v3026 = vunpack.c.l.b16 %v2642
        %v3027 = vunpack.c.h.b16 %v2642
        %v3028 = vunpack.c.l.b16 %v2643
        %v3029 = vunpack.c.h.b16 %v2643
        %v3030 = vunpack.c.l.b16 %v2644
        %v3031 = vunpack.c.h.b16 %v2644
        %v3032 = vunpack.c.l.b16 %v2645
        %v3033 = vunpack.c.h.b16 %v2645
        %v3034 = vunpack.c.l.b16 %v2646
        %v3035 = vunpack.c.h.b16 %v2646
        %v3036 = vunpack.c.l.b16 %v2647
        %v3037 = vunpack.c.h.b16 %v2647
        %v3038 = vunpack.c.l.b16 %v2648
        %v3039 = vunpack.c.h.b16 %v2648
        %v3040 = vunpack.c.l.b16 %v2649
        %v3041 = vunpack.c.h.b16 %v2649
        %v3042 = vunpack.c.l.b16 %v2650
        %v3043 = vunpack.c.h.b16 %v2650
        %v3044 = vunpack.c.l.b16 %v2651
        %v3045 = vunpack.c.h.b16 %v2651
        %v3046 = vunpack.c.l.b16 %v2652
        %v3047 = vunpack.c.h.b16 %v2652
        %v3048 = vunpack.c.l.b16 %v2653
        %v3049 = vunpack.c.h.b16 %v2653
        %v3050 = vunpack.c.l.b16 %v2654
        %v3051 = vunpack.c.h.b16 %v2654
        %v3052 = vunpack.c.l.b16 %v2655
        %v3053 = vunpack.c.h.b16 %v2655
        %v3054 = vunpack.c.l.b16 %v2656
        %v3055 = vunpack.c.h.b16 %v2656
        %v3056 = vunpack.c.l.b16 %v2657
        %v3057 = vunpack.c.h.b16 %v2657
        %v3058 = vunpack.c.l.b16 %v2658
        %v3059 = vunpack.c.h.b16 %v2658
        %v3060 = vunpack.c.l.b16 %v2659
        %v3061 = vunpack.c.h.b16 %v2659
        %v3062 = vunpack.c.l.b16 %v2660
        %v3063 = vunpack.c.h.b16 %v2660
        %v3064 = vunpack.c.l.b16 %v2661
        %v3065 = vunpack.c.h.b16 %v2661
        %v3066 = vunpack.c.l.b16 %v2662
        %v3067 = vunpack.c.h.b16 %v2662
        %v3068 = vunpack.c.l.b16 %v2663
        %v3069 = vunpack.c.h.b16 %v2663
        %v3070 = vunpack.c.l.b16 %v2664
        %v3071 = vunpack.c.h.b16 %v2664
        %v3072 = vunpack.c.l.b16 %v2665
        %v3073 = vunpack.c.h.b16 %v2665
        %v3074 = vunpack.c.l.b16 %v2666
        %v3075 = vunpack.c.h.b16 %v2666
        %v3076 = vunpack.c.l.b16 %v2667
        %v3077 = vunpack.c.h.b16 %v2667
        %v3078 = vunpack.c.l.b16 %v2668
        %v3079 = vunpack.c.h.b16 %v2668
        %v3080 = vunpack.c.l.b16 %v2669
        %v3081 = vunpack.c.h.b16 %v2669
        %v3082 = vunpack.c.l.b16 %v2670
        %v3083 = vunpack.c.h.b16 %v2670
        %v3084 = vunpack.c.l.b16 %v2671
        %v3085 = vunpack.c.h.b16 %v2671
        %v3086 = vunpack.c.l.b16 %v2672
        %v3087 = vunpack.c.h.b16 %v2672
        %v3088 = vunpack.c.l.b16 %v2673
        %v3089 = vunpack.c.h.b16 %v2673
        %v3090 = vunpack.c.l.b16 %v2674
        %v3091 = vunpack.c.h.b16 %v2674
        %v3092 = vunpack.c.l.b16 %v2675
        %v3093 = vunpack.c.h.b16 %v2675
        %v3094 = vunpack.c.l.b16 %v2676
        %v3095 = vunpack.c.h.b16 %v2676
        %v3096 = vunpack.c.l.b16 %v2677
        %v3097 = vunpack.c.h.b16 %v2677
        %v3098 = vunpack.c.l.b16 %v2678
        %v3099 = vunpack.c.h.b16 %v2678
        %v3100 = vunpack.c.l.b16 %v2679
        %v3101 = vunpack.c.h.b16 %v2679
        %v3102 = vunpack.c.l.b16 %v2680
        %v3103 = vunpack.c.h.b16 %v2680
        %v3104 = vunpack.c.l.b16 %v2681
        %v3105 = vunpack.c.h.b16 %v2681
        %v3106 = vunpack.c.l.b16 %v2682
        %v3107 = vunpack.c.h.b16 %v2682
        %v3108 = vunpack.c.l.b16 %v2683
        %v3109 = vunpack.c.h.b16 %v2683
        %v3110 = vunpack.c.l.b16 %v2684
        %v3111 = vunpack.c.h.b16 %v2684
        %v3112 = vunpack.c.l.b16 %v2685
        %v3113 = vunpack.c.h.b16 %v2685
        %v3114 = vunpack.c.l.b16 %v2686
        %v3115 = vunpack.c.h.b16 %v2686
        %v3116 = vunpack.c.l.b16 %v2687
        %v3117 = vunpack.c.h.b16 %v2687
        %v3118 = vunpack.c.l.b16 %v2688
        %v3119 = vunpack.c.h.b16 %v2688
        %v3120 = vunpack.c.l.b16 %v2689
        %v3121 = vunpack.c.h.b16 %v2689
        %v3122 = vunpack.c.l.b16 %v2690
        %v3123 = vunpack.c.h.b16 %v2690
        %v3124 = vunpack.c.l.b16 %v2691
        %v3125 = vunpack.c.h.b16 %v2691
        %v3126 = vunpack.c.l.b16 %v2692
        %v3127 = vunpack.c.h.b16 %v2692
        %v3128 = vunpack.c.l.b16 %v2693
        %v3129 = vunpack.c.h.b16 %v2693
        %v3130 = vunpack.c.l.b16 %v2694
        %v3131 = vunpack.c.h.b16 %v2694
        %v3132 = vunpack.c.l.b16 %v2695
        %v3133 = vunpack.c.h.b16 %v2695
        %v3134 = vunpack.c.l.b16 %v2696
        %v3135 = vunpack.c.h.b16 %v2696
        %v3136 = vunpack.c.l.b16 %v2697
        %v3137 = vunpack.c.h.b16 %v2697
        %v3138 = vunpack.c.l.b16 %v2698
        %v3139 = vunpack.c.h.b16 %v2698
        %v3140 = vunpack.c.l.b16 %v2699
        %v3141 = vunpack.c.h.b16 %v2699
        %v3142 = vunpack.c.l.b16 %v2700
        %v3143 = vunpack.c.h.b16 %v2700
        %v3144 = vunpack.c.l.b16 %v2701
        %v3145 = vunpack.c.h.b16 %v2701
        %v3146 = vunpack.c.l.b16 %v2702
        %v3147 = vunpack.c.h.b16 %v2702
        %v3148 = vunpack.c.l.b16 %v2703
        %v3149 = vunpack.c.h.b16 %v2703
        %v3150 = vunpack.c.l.b16 %v2704
        %v3151 = vunpack.c.h.b16 %v2704
        %v3152 = vunpack.c.l.b16 %v2705
        %v3153 = vunpack.c.h.b16 %v2705
        %v3154 = vunpack.c.l.b16 %v2706
        %v3155 = vunpack.c.h.b16 %v2706
        %v3156 = vunpack.c.l.b16 %v2707
        %v3157 = vunpack.c.h.b16 %v2707
        %v3158 = vunpack.c.l.b16 %v2708
        %v3159 = vunpack.c.h.b16 %v2708
        %v3160 = vunpack.c.l.b16 %v2709
        %v3161 = vunpack.c.h.b16 %v2709
        %v3162 = vunpack.c.l.b16 %v2710
        %v3163 = vunpack.c.h.b16 %v2710
        %v3164 = vunpack.c.l.b16 %v2711
        %v3165 = vunpack.c.h.b16 %v2711
        %v3166 = vunpack.c.l.b16 %v2712
        %v3167 = vunpack.c.h.b16 %v2712
        %v3168 = vunpack.c.l.b16 %v2713
        %v3169 = vunpack.c.h.b16 %v2713
        %v3170 = vunpack.c.l.b16 %v2714
        %v3171 = vunpack.c.h.b16 %v2714
        %v3172 = vunpack.c.l.b16 %v2715
        %v3173 = vunpack.c.h.b16 %v2715
        %v3174 = vunpack.c.l.b16 %v2716
        %v3175 = vunpack.c.h.b16 %v2716
        %v3176 = vunpack.c.l.b16 %v2717
        %v3177 = vunpack.c.h.b16 %v2717
        %v3178 = vunpack.c.l.b16 %v2718
        %v3179 = vunpack.c.h.b16 %v2718
        %v3180 = vunpack.c.l.b16 %v2719
        %v3181 = vunpack.c.h.b16 %v2719
        %v3182 = vunpack.c.l.b16 %v2720
        %v3183 = vunpack.c.h.b16 %v2720
        %v3184 = vunpack.c.l.b16 %v2721
        %v3185 = vunpack.c.h.b16 %v2721
        %v3186 = vunpack.c.l.b16 %v2722
        %v3187 = vunpack.c.h.b16 %v2722
        %v3188 = vunpack.c.l.b16 %v2723
        %v3189 = vunpack.c.h.b16 %v2723
        %v3190 = vunpack.c.l.b16 %v2724
        %v3191 = vunpack.c.h.b16 %v2724
        %v3192 = vunpack.c.l.b16 %v2725
        %v3193 = vunpack.c.h.b16 %v2725
        %v3194 = vunpack.c.l.b16 %v2726
        %v3195 = vunpack.c.h.b16 %v2726
        %v3196 = vunpack.c.l.b16 %v2727
        %v3197 = vunpack.c.h.b16 %v2727
        %v3198 = vunpack.c.l.b16 %v2728
        %v3199 = vunpack.c.h.b16 %v2728
        %v3200 = vunpack.c.l.b16 %v2729
        %v3201 = vunpack.c.h.b16 %v2729
        %v3202 = vunpack.c.l.b16 %v2730
        %v3203 = vunpack.c.h.b16 %v2730
        %v3204 = vunpack.c.l.b16 %v2731
        %v3205 = vunpack.c.h.b16 %v2731
        %v3206 = vunpack.c.l.b16 %v2732
        %v3207 = vunpack.c.h.b16 %v2732
        %v3208 = vunpack.c.l.b16 %v2733
        %v3209 = vunpack.c.h.b16 %v2733
        %v3210 = vunpack.c.l.b16 %v2734
        %v3211 = vunpack.c.h.b16 %v2734
        %v3212 = vunpack.c.l.b16 %v2735
        %v3213 = vunpack.c.h.b16 %v2735
        %v3214 = vunpack.c.l.b16 %v2736
        %v3215 = vunpack.c.h.b16 %v2736
        %v3216 = vunpack.c.l.b16 %v2737
        %v3217 = vunpack.c.h.b16 %v2737
        %v3218 = vpack.c.b16 %v2900, %v2898
        %v3219 = vpack.c.b16 %v2901, %v2899
        %v3220 = vpack.c.b16 %v2904, %v2902
        %v3221 = vpack.c.b16 %v2905, %v2903
        %v3222 = vpack.c.b16 %v2908, %v2906
        %v3223 = vpack.c.b16 %v2909, %v2907
        %v3224 = vpack.c.b16 %v2912, %v2910
        %v3225 = vpack.c.b16 %v2913, %v2911
        %v3226 = vpack.c.b16 %v2916, %v2914
        %v3227 = vpack.c.b16 %v2917, %v2915
        %v3228 = vpack.c.b16 %v2920, %v2918
        %v3229 = vpack.c.b16 %v2921, %v2919
        %v3230 = vpack.c.b16 %v2924, %v2922
        %v3231 = vpack.c.b16 %v2925, %v2923
        %v3232 = vpack.c.b16 %v2928, %v2926
        %v3233 = vpack.c.b16 %v2929, %v2927
        %v3234 = vpack.c.b16 %v2932, %v2930
        %v3235 = vpack.c.b16 %v2933, %v2931
        %v3236 = vpack.c.b16 %v2936, %v2934
        %v3237 = vpack.c.b16 %v2937, %v2935
        %v3238 = vpack.c.b16 %v2940, %v2938
        %v3239 = vpack.c.b16 %v2941, %v2939
        %v3240 = vpack.c.b16 %v2944, %v2942
        %v3241 = vpack.c.b16 %v2945, %v2943
        %v3242 = vpack.c.b16 %v2948, %v2946
        %v3243 = vpack.c.b16 %v2949, %v2947
        %v3244 = vpack.c.b16 %v2952, %v2950
        %v3245 = vpack.c.b16 %v2953, %v2951
        %v3246 = vpack.c.b16 %v2956, %v2954
        %v3247 = vpack.c.b16 %v2957, %v2955
        %v3248 = vpack.c.b16 %v2960, %v2958
        %v3249 = vpack.c.b16 %v2961, %v2959
        %v3250 = vpack.c.b16 %v2964, %v2962
        %v3251 = vpack.c.b16 %v2965, %v2963
        %v3252 = vpack.c.b16 %v2968, %v2966
        %v3253 = vpack.c.b16 %v2969, %v2967
        %v3254 = vpack.c.b16 %v2972, %v2970
        %v3255 = vpack.c.b16 %v2973, %v2971
        %v3256 = vpack.c.b16 %v2976, %v2974
        %v3257 = vpack.c.b16 %v2977, %v2975
        %v3258 = vpack.c.b16 %v2980, %v2978
        %v3259 = vpack.c.b16 %v2981, %v2979
        %v3260 = vpack.c.b16 %v2984, %v2982
        %v3261 = vpack.c.b16 %v2985, %v2983
        %v3262 = vpack.c.b16 %v2988, %v2986
        %v3263 = vpack.c.b16 %v2989, %v2987
        %v3264 = vpack.c.b16 %v2992, %v2990
        %v3265 = vpack.c.b16 %v2993, %v2991
        %v3266 = vpack.c.b16 %v2996, %v2994
        %v3267 = vpack.c.b16 %v2997, %v2995
        %v3268 = vpack.c.b16 %v3000, %v2998
        %v3269 = vpack.c.b16 %v3001, %v2999
        %v3270 = vpack.c.b16 %v3004, %v3002
        %v3271 = vpack.c.b16 %v3005, %v3003
        %v3272 = vpack.c.b16 %v3008, %v3006
        %v3273 = vpack.c.b16 %v3009, %v3007
        %v3274 = vpack.c.b16 %v3012, %v3010
        %v3275 = vpack.c.b16 %v3013, %v3011
        %v3276 = vpack.c.b16 %v3016, %v3014
        %v3277 = vpack.c.b16 %v3017, %v3015
        %v3278 = vpack.c.b16 %v3020, %v3018
        %v3279 = vpack.c.b16 %v3021, %v3019
        %v3280 = vpack.c.b16 %v3024, %v3022
        %v3281 = vpack.c.b16 %v3025, %v3023
        %v3282 = vpack.c.b16 %v3028, %v3026
        %v3283 = vpack.c.b16 %v3029, %v3027
        %v3284 = vpack.c.b16 %v3032, %v3030
        %v3285 = vpack.c.b16 %v3033, %v3031
        %v3286 = vpack.c.b16 %v3036, %v3034
        %v3287 = vpack.c.b16 %v3037, %v3035
        %v3288 = vpack.c.b16 %v3040, %v3038
        %v3289 = vpack.c.b16 %v3041, %v3039
        %v3290 = vpack.c.b16 %v3044, %v3042
        %v3291 = vpack.c.b16 %v3045, %v3043
        %v3292 = vpack.c.b16 %v3048, %v3046
        %v3293 = vpack.c.b16 %v3049, %v3047
        %v3294 = vpack.c.b16 %v3052, %v3050
        %v3295 = vpack.c.b16 %v3053, %v3051
        %v3296 = vpack.c.b16 %v3056, %v3054
        %v3297 = vpack.c.b16 %v3057, %v3055
        %v3298 = vpack.c.b16 %v3060, %v3058
        %v3299 = vpack.c.b16 %v3061, %v3059
        %v3300 = vpack.c.b16 %v3064, %v3062
        %v3301 = vpack.c.b16 %v3065, %v3063
        %v3302 = vpack.c.b16 %v3068, %v3066
        %v3303 = vpack.c.b16 %v3069, %v3067
        %v3304 = vpack.c.b16 %v3072, %v3070
        %v3305 = vpack.c.b16 %v3073, %v3071
        %v3306 = vpack.c.b16 %v3076, %v3074
        %v3307 = vpack.c.b16 %v3077, %v3075
        %v3308 = vpack.c.b16 %v3080, %v3078
        %v3309 = vpack.c.b16 %v3081, %v3079
        %v3310 = vpack.c.b16 %v3084, %v3082
        %v3311 = vpack.c.b16 %v3085, %v3083
        %v3312 = vpack.c.b16 %v3088, %v3086
        %v3313 = vpack.c.b16 %v3089, %v3087
        %v3314 = vpack.c.b16 %v3092, %v3090
        %v3315 = vpack.c.b16 %v3093, %v3091
        %v3316 = vpack.c.b16 %v3096, %v3094
        %v3317 = vpack.c.b16 %v3097, %v3095
        %v3318 = vpack.c.b16 %v3100, %v3098
        %v3319 = vpack.c.b16 %v3101, %v3099
        %v3320 = vpack.c.b16 %v3104, %v3102
        %v3321 = vpack.c.b16 %v3105, %v3103
        %v3322 = vpack.c.b16 %v3108, %v3106
        %v3323 = vpack.c.b16 %v3109, %v3107
        %v3324 = vpack.c.b16 %v3112, %v3110
        %v3325 = vpack.c.b16 %v3113, %v3111
        %v3326 = vpack.c.b16 %v3116, %v3114
        %v3327 = vpack.c.b16 %v3117, %v3115
        %v3328 = vpack.c.b16 %v3120, %v3118
        %v3329 = vpack.c.b16 %v3121, %v3119
        %v3330 = vpack.c.b16 %v3124, %v3122
        %v3331 = vpack.c.b16 %v3125, %v3123
        %v3332 = vpack.c.b16 %v3128, %v3126
        %v3333 = vpack.c.b16 %v3129, %v3127
        %v3334 = vpack.c.b16 %v3132, %v3130
        %v3335 = vpack.c.b16 %v3133, %v3131
        %v3336 = vpack.c.b16 %v3136, %v3134
        %v3337 = vpack.c.b16 %v3137, %v3135
        %v3338 = vpack.c.b16 %v3140, %v3138
        %v3339 = vpack.c.b16 %v3141, %v3139
        %v3340 = vpack.c.b16 %v3144, %v3142
        %v3341 = vpack.c.b16 %v3145, %v3143
        %v3342 = vpack.c.b16 %v3148, %v3146
        %v3343 = vpack.c.b16 %v3149, %v3147
        %v3344 = vpack.c.b16 %v3152, %v3150
        %v3345 = vpack.c.b16 %v3153, %v3151
        %v3346 = vpack.c.b16 %v3156, %v3154
        %v3347 = vpack.c.b16 %v3157, %v3155
        %v3348 = vpack.c.b16 %v3160, %v3158
        %v3349 = vpack.c.b16 %v3161, %v3159
        %v3350 = vpack.c.b16 %v3164, %v3162
        %v3351 = vpack.c.b16 %v3165, %v3163
        %v3352 = vpack.c.b16 %v3168, %v3166
        %v3353 = vpack.c.b16 %v3169, %v3167
        %v3354 = vpack.c.b16 %v3172, %v3170
        %v3355 = vpack.c.b16 %v3173, %v3171
        %v3356 = vpack.c.b16 %v3176, %v3174
        %v3357 = vpack.c.b16 %v3177, %v3175
        %v3358 = vpack.c.b16 %v3180, %v3178
        %v3359 = vpack.c.b16 %v3181, %v3179
        %v3360 = vpack.c.b16 %v3184, %v3182
        %v3361 = vpack.c.b16 %v3185, %v3183
        %v3362 = vpack.c.b16 %v3188, %v3186
        %v3363 = vpack.c.b16 %v3189, %v3187
        %v3364 = vpack.c.b16 %v3192, %v3190
        %v3365 = vpack.c.b16 %v3193, %v3191
        %v3366 = vpack.c.b16 %v3196, %v3194
        %v3367 = vpack.c.b16 %v3197, %v3195
        %v3368 = vpack.c.b16 %v3200, %v3198
        %v3369 = vpack.c.b16 %v3201, %v3199
        %v3370 = vpack.c.b16 %v3204, %v3202
        %v3371 = vpack.c.b16 %v3205, %v3203
        %v3372 = vpack.c.b16 %v3208, %v3206
        %v3373 = vpack.c.b16 %v3209, %v3207
        %v3374 = vpack.c.b16 %v3212, %v3210
        %v3375 = vpack.c.b16 %v3213, %v3211
        %v3376 = vpack.c.b16 %v3216, %v3214
        %v3377 = vpack.c.b16 %v3217, %v3215
        %3538 = vmatpush.bf16.msra.mxu0 %v3232
        %3539 = vmatpush.bf16.msra.mxu0 %v3230
        %3540 = vmatpush.bf16.msra.mxu0 %v3228
        %3541 = vmatpush.bf16.msra.mxu0 %v3226
        %3542 = vmatpush.bf16.msra.mxu0 %v3224
        %3543 = vmatpush.bf16.msra.mxu0 %v3222
        %3544 = vmatpush.bf16.msra.mxu0 %v3220
        %3545 = vmatpush.bf16.msra.mxu0 %v3218
        %3546 = vmatmul.bf16.gmra.mxu0 %v2357
        %v3547 = vpop.f32.mrf.mxu0
        %v3548 = vadd.f32 0.0, %v3547
        %v3549 = vpop.f32.mrf.mxu0
        %v3550 = vadd.f32 0.0, %v3549
        %3551 = vmatmul.bf16.gmra.mxu0 %v2359
        %v3552 = vpop.f32.mrf.mxu0
        %v3553 = vadd.f32 0.0, %v3552
        %v3554 = vpop.f32.mrf.mxu0
        %v3555 = vadd.f32 0.0, %v3554
        %3556 = vdwg.mxu0
        %3557 = vmatpush.bf16.msra.mxu0 %v3248
        %3558 = vmatpush.bf16.msra.mxu0 %v3246
        %3559 = vmatpush.bf16.msra.mxu0 %v3244
        %3560 = vmatpush.bf16.msra.mxu0 %v3242
        %3561 = vmatpush.bf16.msra.mxu0 %v3240
        %3562 = vmatpush.bf16.msra.mxu0 %v3238
        %3563 = vmatpush.bf16.msra.mxu0 %v3236
        %3564 = vmatpush.bf16.msra.mxu0 %v3234
        %3565 = vmatmul.bf16.gmra.mxu0 %v2358
        %v3566 = vpop.f32.mrf.mxu0
        %v3567 = vadd.f32 %v3548, %v3566
        %v3568 = vpop.f32.mrf.mxu0
        %v3569 = vadd.f32 %v3550, %v3568
        %3570 = vmatmul.bf16.gmra.mxu0 %v2360
        %v3571 = vpop.f32.mrf.mxu0
        %v3572 = vadd.f32 %v3553, %v3571
        %v3573 = vpop.f32.mrf.mxu0
        %v3574 = vadd.f32 %v3555, %v3573
        %3575 = vdwg.mxu0
        %3576 = vmatpush.bf16.msra.mxu0 %v3264
        %3577 = vmatpush.bf16.msra.mxu0 %v3262
        %3578 = vmatpush.bf16.msra.mxu0 %v3260
        %3579 = vmatpush.bf16.msra.mxu0 %v3258
        %3580 = vmatpush.bf16.msra.mxu0 %v3256
        %3581 = vmatpush.bf16.msra.mxu0 %v3254
        %3582 = vmatpush.bf16.msra.mxu0 %v3252
        %3583 = vmatpush.bf16.msra.mxu0 %v3250
        %3584 = vmatmul.bf16.gmra.mxu0 %v2402
        %v3585 = vpop.f32.mrf.mxu0
        %v3586 = vadd.f32 %v3567, %v3585
        %v3587 = vpop.f32.mrf.mxu0
        %v3588 = vadd.f32 %v3569, %v3587
        %3589 = vmatmul.bf16.gmra.mxu0 %v2426
        %v3590 = vpop.f32.mrf.mxu0
        %v3591 = vadd.f32 %v3572, %v3590
        %v3592 = vpop.f32.mrf.mxu0
        %v3593 = vadd.f32 %v3574, %v3592
        %3594 = vdwg.mxu0
        %3595 = vmatpush.bf16.msra.mxu0 %v3280
        %3596 = vmatpush.bf16.msra.mxu0 %v3278
        %3597 = vmatpush.bf16.msra.mxu0 %v3276
        %3598 = vmatpush.bf16.msra.mxu0 %v3274
        %3599 = vmatpush.bf16.msra.mxu0 %v3272
        %3600 = vmatpush.bf16.msra.mxu0 %v3270
        %3601 = vmatpush.bf16.msra.mxu0 %v3268
        %3602 = vmatpush.bf16.msra.mxu0 %v3266
        %3603 = vmatmul.bf16.gmra.mxu0 %v2414
        %v3604 = vpop.f32.mrf.mxu0
        %v3605 = vadd.f32 %v3586, %v3604
        %v3606 = vpop.f32.mrf.mxu0
        %v3607 = vadd.f32 %v3588, %v3606
        %3608 = vmatmul.bf16.gmra.mxu0 %v2438
        %v3609 = vpop.f32.mrf.mxu0
        %v3610 = vadd.f32 %v3591, %v3609
        %v3611 = vpop.f32.mrf.mxu0
        %v3612 = vadd.f32 %v3593, %v3611
        %3613 = vdwg.mxu0
        %3614 = vmatpush.bf16.msra.mxu0 %v3296
        %3615 = vmatpush.bf16.msra.mxu0 %v3294
        %3616 = vmatpush.bf16.msra.mxu0 %v3292
        %3617 = vmatpush.bf16.msra.mxu0 %v3290
        %3618 = vmatpush.bf16.msra.mxu0 %v3288
        %3619 = vmatpush.bf16.msra.mxu0 %v3286
        %3620 = vmatpush.bf16.msra.mxu0 %v3284
        %3621 = vmatpush.bf16.msra.mxu0 %v3282
        %3622 = vmatmul.bf16.gmra.mxu0 %v2455
        %v3623 = vpop.f32.mrf.mxu0
        %v3624 = vadd.f32 %v3605, %v3623
        %v3625 = vpop.f32.mrf.mxu0
        %v3626 = vadd.f32 %v3607, %v3625
        %3627 = vmatmul.bf16.gmra.mxu0 %v2461
        %v3628 = vpop.f32.mrf.mxu0
        %v3629 = vadd.f32 %v3610, %v3628
        %v3630 = vpop.f32.mrf.mxu0
        %v3631 = vadd.f32 %v3612, %v3630
        %3632 = vdwg.mxu0
        %3633 = vmatpush.bf16.msra.mxu0 %v3312
        %3634 = vmatpush.bf16.msra.mxu0 %v3310
        %3635 = vmatpush.bf16.msra.mxu0 %v3308
        %3636 = vmatpush.bf16.msra.mxu0 %v3306
        %3637 = vmatpush.bf16.msra.mxu0 %v3304
        %3638 = vmatpush.bf16.msra.mxu0 %v3302
        %3639 = vmatpush.bf16.msra.mxu0 %v3300
        %3640 = vmatpush.bf16.msra.mxu0 %v3298
        %3641 = vmatmul.bf16.gmra.mxu0 %v2458
        %v3642 = vpop.f32.mrf.mxu0
        %v3643 = vadd.f32 %v3624, %v3642
        %v3644 = vpop.f32.mrf.mxu0
        %v3645 = vadd.f32 %v3626, %v3644
        %3646 = vmatmul.bf16.gmra.mxu0 %v2464
        %v3647 = vpop.f32.mrf.mxu0
        %v3648 = vadd.f32 %v3629, %v3647
        %v3649 = vpop.f32.mrf.mxu0
        %v3650 = vadd.f32 %v3631, %v3649
        %3651 = vdwg.mxu0
        %3652 = vmatpush.bf16.msra.mxu0 %v3328
        %3653 = vmatpush.bf16.msra.mxu0 %v3326
        %3654 = vmatpush.bf16.msra.mxu0 %v3324
        %3655 = vmatpush.bf16.msra.mxu0 %v3322
        %3656 = vmatpush.bf16.msra.mxu0 %v3320
        %3657 = vmatpush.bf16.msra.mxu0 %v3318
        %3658 = vmatpush.bf16.msra.mxu0 %v3316
        %3659 = vmatpush.bf16.msra.mxu0 %v3314
        %3660 = vmatmul.bf16.gmra.mxu0 %v2495
        %v3661 = vpop.f32.mrf.mxu0
        %v3662 = vadd.f32 %v3643, %v3661
        %v3663 = vpop.f32.mrf.mxu0
        %v3664 = vadd.f32 %v3645, %v3663
        %3665 = vmatmul.bf16.gmra.mxu0 %v2529
        %v3666 = vpop.f32.mrf.mxu0
        %v3667 = vadd.f32 %v3648, %v3666
        %v3668 = vpop.f32.mrf.mxu0
        %v3669 = vadd.f32 %v3650, %v3668
        %3670 = vdwg.mxu0
        %3671 = vmatpush.bf16.msra.mxu0 %v3344
        %3672 = vmatpush.bf16.msra.mxu0 %v3342
        %3673 = vmatpush.bf16.msra.mxu0 %v3340
        %3674 = vmatpush.bf16.msra.mxu0 %v3338
        %3675 = vmatpush.bf16.msra.mxu0 %v3336
        %3676 = vmatpush.bf16.msra.mxu0 %v3334
        %3677 = vmatpush.bf16.msra.mxu0 %v3332
        %3678 = vmatpush.bf16.msra.mxu0 %v3330
        %3679 = vmatmul.bf16.gmra.mxu0 %v2512
        %v3680 = vpop.f32.mrf.mxu0
        %v3681 = vadd.f32 %v3662, %v3680
        %v3682 = vpop.f32.mrf.mxu0
        %v3683 = vadd.f32 %v3664, %v3682
        %3684 = vmatmul.bf16.gmra.mxu0 %v2546
        %v3685 = vpop.f32.mrf.mxu0
        %v3686 = vadd.f32 %v3667, %v3685
        %v3687 = vpop.f32.mrf.mxu0
        %v3688 = vadd.f32 %v3669, %v3687
        %3689 = vdwg.mxu0
        %3690 = vmatpush.bf16.msra.mxu0 %v3360
        %3691 = vmatpush.bf16.msra.mxu0 %v3358
        %3692 = vmatpush.bf16.msra.mxu0 %v3356
        %3693 = vmatpush.bf16.msra.mxu0 %v3354
        %3694 = vmatpush.bf16.msra.mxu0 %v3352
        %3695 = vmatpush.bf16.msra.mxu0 %v3350
        %3696 = vmatpush.bf16.msra.mxu0 %v3348
        %3697 = vmatpush.bf16.msra.mxu0 %v3346
        %3698 = vmatmul.bf16.gmra.mxu0 %v2563
        %v3699 = vpop.f32.mrf.mxu0
        %v3700 = vadd.f32 %v3681, %v3699
        %v3701 = vpop.f32.mrf.mxu0
        %v3702 = vadd.f32 %v3683, %v3701
        %3703 = vmatmul.bf16.gmra.mxu0 %v2569
        %v3704 = vpop.f32.mrf.mxu0
        %v3705 = vadd.f32 %v3686, %v3704
        %v3706 = vpop.f32.mrf.mxu0
        %v3707 = vadd.f32 %v3688, %v3706
        %3708 = vdwg.mxu0
        %3709 = vmatpush.bf16.msra.mxu0 %v3376
        %3710 = vmatpush.bf16.msra.mxu0 %v3374
        %3711 = vmatpush.bf16.msra.mxu0 %v3372
        %3712 = vmatpush.bf16.msra.mxu0 %v3370
        %3713 = vmatpush.bf16.msra.mxu0 %v3368
        %3714 = vmatpush.bf16.msra.mxu0 %v3366
        %3715 = vmatpush.bf16.msra.mxu0 %v3364
        %3716 = vmatpush.bf16.msra.mxu0 %v3362
        %3717 = vmatmul.bf16.gmra.mxu0 %v2566
        %v3718 = vpop.f32.mrf.mxu0
        %v3719 = vadd.f32 %v3700, %v3718
        %v3720 = vpop.f32.mrf.mxu0
        %v3721 = vadd.f32 %v3702, %v3720
        %3722 = vmatmul.bf16.gmra.mxu0 %v2572
        %v3723 = vpop.f32.mrf.mxu0
        %v3724 = vadd.f32 %v3705, %v3723
        %v3725 = vpop.f32.mrf.mxu0
        %v3726 = vadd.f32 %v3707, %v3725
        %3727 = vdwg.mxu0
        %3728 = vmatpush.bf16.msra.mxu0 %v3233
        %3729 = vmatpush.bf16.msra.mxu0 %v3231
        %3730 = vmatpush.bf16.msra.mxu0 %v3229
        %3731 = vmatpush.bf16.msra.mxu0 %v3227
        %3732 = vmatpush.bf16.msra.mxu0 %v3225
        %3733 = vmatpush.bf16.msra.mxu0 %v3223
        %3734 = vmatpush.bf16.msra.mxu0 %v3221
        %3735 = vmatpush.bf16.msra.mxu0 %v3219
        %3736 = vmatmul.bf16.gmra.mxu0 %v2357
        %v3737 = vpop.f32.mrf.mxu0
        %v3738 = vadd.f32 0.0, %v3737
        %v3739 = vpop.f32.mrf.mxu0
        %v3740 = vadd.f32 0.0, %v3739
        %3741 = vmatmul.bf16.gmra.mxu0 %v2359
        %v3742 = vpop.f32.mrf.mxu0
        %v3743 = vadd.f32 0.0, %v3742
        %v3744 = vpop.f32.mrf.mxu0
        %v3745 = vadd.f32 0.0, %v3744
        %3746 = vdwg.mxu0
        %3747 = vmatpush.bf16.msra.mxu0 %v3249
        %3748 = vmatpush.bf16.msra.mxu0 %v3247
        %3749 = vmatpush.bf16.msra.mxu0 %v3245
        %3750 = vmatpush.bf16.msra.mxu0 %v3243
        %3751 = vmatpush.bf16.msra.mxu0 %v3241
        %3752 = vmatpush.bf16.msra.mxu0 %v3239
        %3753 = vmatpush.bf16.msra.mxu0 %v3237
        %3754 = vmatpush.bf16.msra.mxu0 %v3235
        %3755 = vmatmul.bf16.gmra.mxu0 %v2358
        %v3756 = vpop.f32.mrf.mxu0
        %v3757 = vadd.f32 %v3738, %v3756
        %v3758 = vpop.f32.mrf.mxu0
        %v3759 = vadd.f32 %v3740, %v3758
        %3760 = vmatmul.bf16.gmra.mxu0 %v2360
        %v3761 = vpop.f32.mrf.mxu0
        %v3762 = vadd.f32 %v3743, %v3761
        %v3763 = vpop.f32.mrf.mxu0
        %v3764 = vadd.f32 %v3745, %v3763
        %3765 = vdwg.mxu0
        %3766 = vmatpush.bf16.msra.mxu0 %v3265
        %3767 = vmatpush.bf16.msra.mxu0 %v3263
        %3768 = vmatpush.bf16.msra.mxu0 %v3261
        %3769 = vmatpush.bf16.msra.mxu0 %v3259
        %3770 = vmatpush.bf16.msra.mxu0 %v3257
        %3771 = vmatpush.bf16.msra.mxu0 %v3255
        %3772 = vmatpush.bf16.msra.mxu0 %v3253
        %3773 = vmatpush.bf16.msra.mxu0 %v3251
        %3774 = vmatmul.bf16.gmra.mxu0 %v2402
        %v3775 = vpop.f32.mrf.mxu0
        %v3776 = vadd.f32 %v3757, %v3775
        %v3777 = vpop.f32.mrf.mxu0
        %v3778 = vadd.f32 %v3759, %v3777
        %3779 = vmatmul.bf16.gmra.mxu0 %v2426
        %v3780 = vpop.f32.mrf.mxu0
        %v3781 = vadd.f32 %v3762, %v3780
        %v3782 = vpop.f32.mrf.mxu0
        %v3783 = vadd.f32 %v3764, %v3782
        %3784 = vdwg.mxu0
        %3785 = vmatpush.bf16.msra.mxu0 %v3281
        %3786 = vmatpush.bf16.msra.mxu0 %v3279
        %3787 = vmatpush.bf16.msra.mxu0 %v3277
        %3788 = vmatpush.bf16.msra.mxu0 %v3275
        %3789 = vmatpush.bf16.msra.mxu0 %v3273
        %3790 = vmatpush.bf16.msra.mxu0 %v3271
        %3791 = vmatpush.bf16.msra.mxu0 %v3269
        %3792 = vmatpush.bf16.msra.mxu0 %v3267
        %3793 = vmatmul.bf16.gmra.mxu0 %v2414
        %v3794 = vpop.f32.mrf.mxu0
        %v3795 = vadd.f32 %v3776, %v3794
        %v3796 = vpop.f32.mrf.mxu0
        %v3797 = vadd.f32 %v3778, %v3796
        %3798 = vmatmul.bf16.gmra.mxu0 %v2438
        %v3799 = vpop.f32.mrf.mxu0
        %v3800 = vadd.f32 %v3781, %v3799
        %v3801 = vpop.f32.mrf.mxu0
        %v3802 = vadd.f32 %v3783, %v3801
        %3803 = vdwg.mxu0
        %3804 = vmatpush.bf16.msra.mxu0 %v3297
        %3805 = vmatpush.bf16.msra.mxu0 %v3295
        %3806 = vmatpush.bf16.msra.mxu0 %v3293
        %3807 = vmatpush.bf16.msra.mxu0 %v3291
        %3808 = vmatpush.bf16.msra.mxu0 %v3289
        %3809 = vmatpush.bf16.msra.mxu0 %v3287
        %3810 = vmatpush.bf16.msra.mxu0 %v3285
        %3811 = vmatpush.bf16.msra.mxu0 %v3283
        %3812 = vmatmul.bf16.gmra.mxu0 %v2455
        %v3813 = vpop.f32.mrf.mxu0
        %v3814 = vadd.f32 %v3795, %v3813
        %v3815 = vpop.f32.mrf.mxu0
        %v3816 = vadd.f32 %v3797, %v3815
        %3817 = vmatmul.bf16.gmra.mxu0 %v2461
        %v3818 = vpop.f32.mrf.mxu0
        %v3819 = vadd.f32 %v3800, %v3818
        %v3820 = vpop.f32.mrf.mxu0
        %v3821 = vadd.f32 %v3802, %v3820
        %3822 = vdwg.mxu0
        %3823 = vmatpush.bf16.msra.mxu0 %v3313
        %3824 = vmatpush.bf16.msra.mxu0 %v3311
        %3825 = vmatpush.bf16.msra.mxu0 %v3309
        %3826 = vmatpush.bf16.msra.mxu0 %v3307
        %3827 = vmatpush.bf16.msra.mxu0 %v3305
        %3828 = vmatpush.bf16.msra.mxu0 %v3303
        %3829 = vmatpush.bf16.msra.mxu0 %v3301
        %3830 = vmatpush.bf16.msra.mxu0 %v3299
        %3831 = vmatmul.bf16.gmra.mxu0 %v2458
        %v3832 = vpop.f32.mrf.mxu0
        %v3833 = vadd.f32 %v3814, %v3832
        %v3834 = vpop.f32.mrf.mxu0
        %v3835 = vadd.f32 %v3816, %v3834
        %3836 = vmatmul.bf16.gmra.mxu0 %v2464
        %v3837 = vpop.f32.mrf.mxu0
        %v3838 = vadd.f32 %v3819, %v3837
        %v3839 = vpop.f32.mrf.mxu0
        %v3840 = vadd.f32 %v3821, %v3839
        %3841 = vdwg.mxu0
        %3842 = vmatpush.bf16.msra.mxu0 %v3329
        %3843 = vmatpush.bf16.msra.mxu0 %v3327
        %3844 = vmatpush.bf16.msra.mxu0 %v3325
        %3845 = vmatpush.bf16.msra.mxu0 %v3323
        %3846 = vmatpush.bf16.msra.mxu0 %v3321
        %3847 = vmatpush.bf16.msra.mxu0 %v3319
        %3848 = vmatpush.bf16.msra.mxu0 %v3317
        %3849 = vmatpush.bf16.msra.mxu0 %v3315
        %3850 = vmatmul.bf16.gmra.mxu0 %v2495
        %v3851 = vpop.f32.mrf.mxu0
        %v3852 = vadd.f32 %v3833, %v3851
        %v3853 = vpop.f32.mrf.mxu0
        %v3854 = vadd.f32 %v3835, %v3853
        %3855 = vmatmul.bf16.gmra.mxu0 %v2529
        %v3856 = vpop.f32.mrf.mxu0
        %v3857 = vadd.f32 %v3838, %v3856
        %v3858 = vpop.f32.mrf.mxu0
        %v3859 = vadd.f32 %v3840, %v3858
        %3860 = vdwg.mxu0
        %3861 = vmatpush.bf16.msra.mxu0 %v3345
        %3862 = vmatpush.bf16.msra.mxu0 %v3343
        %3863 = vmatpush.bf16.msra.mxu0 %v3341
        %3864 = vmatpush.bf16.msra.mxu0 %v3339
        %3865 = vmatpush.bf16.msra.mxu0 %v3337
        %3866 = vmatpush.bf16.msra.mxu0 %v3335
        %3867 = vmatpush.bf16.msra.mxu0 %v3333
        %3868 = vmatpush.bf16.msra.mxu0 %v3331
        %3869 = vmatmul.bf16.gmra.mxu0 %v2512
        %v3870 = vpop.f32.mrf.mxu0
        %v3871 = vadd.f32 %v3852, %v3870
        %v3872 = vpop.f32.mrf.mxu0
        %v3873 = vadd.f32 %v3854, %v3872
        %3874 = vmatmul.bf16.gmra.mxu0 %v2546
        %v3875 = vpop.f32.mrf.mxu0
        %v3876 = vadd.f32 %v3857, %v3875
        %v3877 = vpop.f32.mrf.mxu0
        %v3878 = vadd.f32 %v3859, %v3877
        %3879 = vdwg.mxu0
        %3880 = vmatpush.bf16.msra.mxu0 %v3361
        %3881 = vmatpush.bf16.msra.mxu0 %v3359
        %3882 = vmatpush.bf16.msra.mxu0 %v3357
        %3883 = vmatpush.bf16.msra.mxu0 %v3355
        %3884 = vmatpush.bf16.msra.mxu0 %v3353
        %3885 = vmatpush.bf16.msra.mxu0 %v3351
        %3886 = vmatpush.bf16.msra.mxu0 %v3349
        %3887 = vmatpush.bf16.msra.mxu0 %v3347
        %3888 = vmatmul.bf16.gmra.mxu0 %v2563
        %v3889 = vpop.f32.mrf.mxu0
        %v3890 = vadd.f32 %v3871, %v3889
        %v3891 = vpop.f32.mrf.mxu0
        %v3892 = vadd.f32 %v3873, %v3891
        %3893 = vmatmul.bf16.gmra.mxu0 %v2569
        %v3894 = vpop.f32.mrf.mxu0
        %v3895 = vadd.f32 %v3876, %v3894
        %v3896 = vpop.f32.mrf.mxu0
        %v3897 = vadd.f32 %v3878, %v3896
        %3898 = vdwg.mxu0
        %3899 = vmatpush.bf16.msra.mxu0 %v3377
        %3900 = vmatpush.bf16.msra.mxu0 %v3375
        %3901 = vmatpush.bf16.msra.mxu0 %v3373
        %3902 = vmatpush.bf16.msra.mxu0 %v3371
        %3903 = vmatpush.bf16.msra.mxu0 %v3369
        %3904 = vmatpush.bf16.msra.mxu0 %v3367
        %3905 = vmatpush.bf16.msra.mxu0 %v3365
        %3906 = vmatpush.bf16.msra.mxu0 %v3363
        %3907 = vmatmul.bf16.gmra.mxu0 %v2566
        %v3908 = vpop.f32.mrf.mxu0
        %v3909 = vadd.f32 %v3890, %v3908
        %v3910 = vpop.f32.mrf.mxu0
        %v3911 = vadd.f32 %v3892, %v3910
        %3912 = vmatmul.bf16.gmra.mxu0 %v2572
        %v3913 = vpop.f32.mrf.mxu0
        %v3914 = vadd.f32 %v3895, %v3913
        %v3915 = vpop.f32.mrf.mxu0
        %v3916 = vadd.f32 %v3897, %v3915
        %3917 = vdwg.mxu0
        %s3918 = scalar_lea.vmem %s390, 2 [#allocation13]
        %v3919 = vld [vmem:[%s3918] sm:$0x3]
        %v3921 = vperm.slane %v3919, 0
        %v3922 = vperm.slane %v3919, 1
        %v3925 = vadd.f32 %v3719, %v3921
        %v3926 = vadd.f32 %v3909, %v3922
        %v3927 = vadd.f32 %v3721, %v3921
        %v3928 = vadd.f32 %v3911, %v3922
        %v3929 = vadd.f32 %v3724, %v3921
        %v3930 = vadd.f32 %v3914, %v3922
        %v3931 = vadd.f32 %v3726, %v3921
        %v3932 = vadd.f32 %v3916, %v3922
        %v3933 = vadd.f32 %v636, %v3925
        %v3934 = vadd.f32 %v637, %v3926
        %v3935 = vadd.f32 %v638, %v3927
        %v3936 = vadd.f32 %v639, %v3928
        %v3937 = vadd.f32 %v640, %v3929
        %v3938 = vadd.f32 %v641, %v3930
        %v3939 = vadd.f32 %v642, %v3931
        %v3940 = vadd.f32 %v643, %v3932
        %3941 = vst [vmem:[#allocation2] sm:$0xff] %v3933
        %3942 = vst [vmem:[#allocation2 + $0x8] sm:$0xff] %v3934
        %3943 = vst [vmem:[#allocation2 + $0x10] sm:$0xff] %v3935
        %3944 = vst [vmem:[#allocation2 + $0x18] sm:$0xff] %v3936
        %3945 = vst [vmem:[#allocation2 + $0x20] sm:$0xff] %v3937
        %3946 = vst [vmem:[#allocation2 + $0x28] sm:$0xff] %v3938
        %3947 = vst [vmem:[#allocation2 + $0x30] sm:$0xff] %v3939
        %3948 = vst [vmem:[#allocation2 + $0x38] sm:$0xff] %v3940
        %p3949 = scmp.eq.s32.totalorder %s24, 5
        // Predicated region
        $region85: #{tpu_custom_call.1} parent=51 // pred_check
          %p3950 = pneg %p3949
        $region86: #{tpu_custom_call.1} parent=51 // pred_check_branch
          %3952 = sbr.rel (%p3950) target = $region88
        $region87: #{tpu_custom_call.1} parent=51 // pred_region
          %v3953 = vld [vmem:[#allocation2] sm:$0xff]
          %v3954 = vld [vmem:[#allocation2 + $0x8] sm:$0xff]
          %v3955 = vld [vmem:[#allocation2 + $0x10] sm:$0xff]
          %v3956 = vld [vmem:[#allocation2 + $0x18] sm:$0xff]
          %v3957 = vld [vmem:[#allocation2 + $0x20] sm:$0xff]
          %v3958 = vld [vmem:[#allocation2 + $0x28] sm:$0xff]
          %v3959 = vld [vmem:[#allocation2 + $0x30] sm:$0xff]
          %v3960 = vld [vmem:[#allocation2 + $0x38] sm:$0xff]
          %v3961 = vld [vmem:[#allocation14] sm:$0x3]
          %v3963 = vperm.slane %v3961, 0
          %v3964 = vperm.slane %v3961, 1
          %v3967 = vmul.f32 %v3953, %v3963
          %v3968 = vmul.f32 %v3954, %v3964
          %v3969 = vmul.f32 %v3955, %v3963
          %v3970 = vmul.f32 %v3956, %v3964
          %v3971 = vmul.f32 %v3957, %v3963
          %v3972 = vmul.f32 %v3958, %v3964
          %v3973 = vmul.f32 %v3959, %v3963
          %v3974 = vmul.f32 %v3960, %v3964
          %v3975 = vadd.f32 %v3967, %v3968
          %3976 = vadd.xlane.f32.xlu0 %v3975
          %v3977 = vpop.xlane.xlu0 %3976
          %v3978 = vadd.f32 %v3969, %v3970
          %3979 = vadd.xlane.f32.xlu0 %v3978
          %v3980 = vpop.xlane.xlu0 %3979
          %v3981 = vadd.f32 %v3971, %v3972
          %3982 = vadd.xlane.f32.xlu0 %v3981
          %v3983 = vpop.xlane.xlu0 %3982
          %v3984 = vadd.f32 %v3973, %v3974
          %3985 = vadd.xlane.f32.xlu0 %v3984
          %v3986 = vpop.xlane.xlu0 %3985
          %v3987 = vld [vmem:[#allocation4] sm:$0x1]
          %v3989 = vperm.slane %v3987, 0
          %v3991 = vadd.f32 %v3977, %v3989
          %v3992 = vadd.f32 %v3980, %v3989
          %v3993 = vadd.f32 %v3983, %v3989
          %v3994 = vadd.f32 %v3986, %v3989
          %v3995 = vmul.f32 %v3991, 0.2
          %v3996 = vmul.f32 %v3992, 0.2
          %v3997 = vmul.f32 %v3993, 0.2
          %v3998 = vmul.f32 %v3994, 0.2
          %v3999 = vmax.f32 %v3991, %v3995
          %v4000 = vmax.f32 %v3992, %v3996
          %v4001 = vmax.f32 %v3993, %v3997
          %v4002 = vmax.f32 %v3994, %v3998
          %vm4003 = vcmask 7168
          %v4004 = vsel %vm4003, %v3999, 0.0
          %v4005 = vsel %vm4003, %v4000, 0.0
          %v4006 = vadd.f32 %v4004, %v4005
          %v4007 = vrot.slane %v4006, 4
          %v4008 = vadd.f32 %v4006, %v4007
          %v4009 = vrot.slane %v4008, 2
          %v4010 = vadd.f32 %v4008, %v4009
          %v4011 = vrot.slane %v4010, 1
          %v4012 = vadd.f32 %v4010, %v4011
          %v4013 = vsel %vm4003, %v4001, 0.0
          %v4014 = vsel %vm4003, %v4002, 0.0
          %v4015 = vadd.f32 %v4013, %v4014
          %v4016 = vrot.slane %v4015, 4
          %v4017 = vadd.f32 %v4015, %v4016
          %v4018 = vrot.slane %v4017, 2
          %v4019 = vadd.f32 %v4017, %v4018
          %v4020 = vrot.slane %v4019, 1
          %v4021 = vadd.f32 %v4019, %v4020
          %v4022 = vrcp.pop 16.0
          %v4023 = vmul.f32 16.0, %v4022
          %v4024 = vsub.f32 1.0, %v4023
          %v4025 = vmul.f32 %v4022, %v4024
          %v4026 = vadd.f32 %v4022, %v4025
          %vm4027 = vweird.f32 %v4022
          %v4028 = vsel %vm4027, %v4022, %v4026
          %v4029 = vmul.f32 %v4012, %v4028
          %v4030 = vmul.f32 %v4021, %v4028
          %vm4031 = vcmask 0
          %4032 = vst.msk [vmem:[%s8] sm:$0x1] %vm4031, %v4029
          %4033 = vst.msk [vmem:[%s8 + $0x1] sm:$0x1] %vm4031, %v4030
        $region88: #{tpu_custom_call.1} parent=51 // pred_fallthru
          _
        // Predicated region
        $region89: #{tpu_custom_call.1} parent=51 // pred_check
          %p4034 = pneg %p215
        $region90: #{tpu_custom_call.1} parent=51 // pred_check_branch
          %4036 = sbr.rel (%p4034) target = $region92
        $region91: #{tpu_custom_call.1} parent=51 // pred_region
          _
        $region92: #{tpu_custom_call.1} parent=51 // pred_fallthru
          _
        // Predicated region
        $region93: #{tpu_custom_call.1} parent=51 // pred_check
          %p4037 = pneg %p215
        $region94: #{tpu_custom_call.1} parent=51 // pred_check_branch
          %4039 = sbr.rel (%p4037) target = $region96
        $region95: #{tpu_custom_call.1} parent=51 // pred_region
          _
        $region96: #{tpu_custom_call.1} parent=51 // pred_fallthru
          _
      $region52: #{tpu_custom_call.1} parent=5 // pred_fallthru
        _
      %p4040 = scmp.le.s32.totalorder 2, %s19
      // Predicated region
      $region97: #{tpu_custom_call.1} parent=5 // pred_check
        %p4041 = pneg %p4040
      $region98: #{tpu_custom_call.1} parent=5 // pred_check_branch
        %4043 = sbr.rel (%p4041) target = $region100
      $region99: #{tpu_custom_call.1} parent=5 // pred_region
        %s4044 = ssub.s32 %s19, 2
      $region100: #{tpu_custom_call.1} parent=5 // pred_fallthru
        _
    $region6: #{tpu_custom_call.1} parent=1 // loop_footer
      %s23 = sadd.s32 1, %s19
    $region7: #{tpu_custom_call.1} parent=1 // loop_footer_branch
      %18 = sbr.rel target = $region3
    $region8: #{tpu_custom_call.1} parent=1 // loop_exit
      _
    %4045 = vsyncpa [#allocation6], 1
    %s4046 = scalar_lea.sflag [#allocation6], 1
    %4047 = vsyncpa %s4046, 1
    %4048 = vsyncpa [#allocation8], 1
    %4049 = vsyncpa [#allocation11], 1

</llo_original>
